<compile_context>
chip_gen: v5e
topology: v5e:2x2
jax: 0.10.0
libtpu: 0.0.40
codegen_flags: <defaults>
</compile_context>

<pallas_src>
import math
from functools import partial

import numpy as np
import jax
import jax.numpy as jnp
from jax.experimental import pallas as pl
from jax.experimental.pallas import tpu as pltpu


# ----------------------------------------------------------------------------
# Shared math (traced both inside the Pallas kernels and by the pure-JAX ref)
# ----------------------------------------------------------------------------
def _mm(a, b):
    """MXU matmul: bf16 operands, f32 accumulation."""
    return jnp.dot(a.astype(jnp.bfloat16), b.astype(jnp.bfloat16),
                   preferred_element_type=jnp.float32)


def _layer_norm(x, g, b, eps=1e-5):
    mu = jnp.mean(x, axis=-1, keepdims=True)
    var = jnp.mean((x - mu) ** 2, axis=-1, keepdims=True)
    return (x - mu) * jax.lax.rsqrt(var + eps) * g + b


def _mha(q_in, kv_in, wq, wk, wv, bq, bk, bv, wo, bo, n_heads, approx_recip):
    """torch.nn.MultiheadAttention forward (no mask, dropout=0); heads batched.

    q_in: [Sq, H], kv_in: [Sk, H]; weights in the x @ W convention."""
    H = q_in.shape[-1]
    hd = H // n_heads
    sq, sk = q_in.shape[0], kv_in.shape[0]
    scale = 1.0 / math.sqrt(hd)

    q = (_mm(q_in, wq) + bq) * scale            # fold 1/sqrt(hd) into q, not scores
    k = _mm(kv_in, wk) + bk
    v = _mm(kv_in, wv) + bv

    qh = q.reshape(sq, n_heads, hd)
    kh = k.reshape(sk, n_heads, hd)
    vh = v.reshape(sk, n_heads, hd)

    # All heads in one batched contraction (heads on the dot_general batch dim).
    s = jnp.einsum('qhd,khd->hqk', qh.astype(jnp.bfloat16), kh.astype(jnp.bfloat16),
                   preferred_element_type=jnp.float32)              # [h, sq, sk]
    s = s - jnp.max(s, axis=-1, keepdims=True)
    p = jnp.exp(s)                                                  # f32 softmax
    l = jnp.sum(p, axis=-1, keepdims=True)                          # [h, sq, 1]
    o = jnp.einsum('hqk,khd->hqd', p.astype(jnp.bfloat16), vh.astype(jnp.bfloat16),
                   preferred_element_type=jnp.float32)              # [h, sq, hd]
    inv_l = pl.reciprocal(l, approx=True) if approx_recip else 1.0 / l
    o = o * inv_l                                                   # normalize PV output
    a = jnp.transpose(o, (1, 0, 2)).reshape(sq, H)                  # back to [sq, H]
    return _mm(a, wo) + bo


def _encoder_layer_math(x, p, n_heads, approx_recip):
    # post-norm TransformerEncoderLayer, activation=relu, dropout=0
    a = _mha(x, x, p['wq'], p['wk'], p['wv'], p['bq'], p['bk'], p['bv'],
             p['wo'], p['bo'], n_heads, approx_recip)
    x = _layer_norm(x + a, p['ln1g'], p['ln1b'])
    h = jnp.maximum(_mm(x, p['w1']) + p['b1'], 0.0)
    ff = _mm(h, p['w2']) + p['b2']
    return _layer_norm(x + ff, p['ln2g'], p['ln2b'])


def _decoder_layer_math(y, mem, p, n_heads, approx_recip):
    # post-norm TransformerDecoderLayer (self-attn, cross-attn, FFN), dropout=0
    a = _mha(y, y, p['s_wq'], p['s_wk'], p['s_wv'], p['s_bq'], p['s_bk'],
             p['s_bv'], p['s_wo'], p['s_bo'], n_heads, approx_recip)
    y = _layer_norm(y + a, p['ln1g'], p['ln1b'])
    a = _mha(y, mem, p['c_wq'], p['c_wk'], p['c_wv'], p['c_bq'], p['c_bk'],
             p['c_bv'], p['c_wo'], p['c_bo'], n_heads, approx_recip)
    y = _layer_norm(y + a, p['ln2g'], p['ln2b'])
    h = jnp.maximum(_mm(y, p['w1']) + p['b1'], 0.0)
    ff = _mm(h, p['w2']) + p['b2']
    return _layer_norm(y + ff, p['ln3g'], p['ln3b'])


# ----------------------------------------------------------------------------
# Pallas kernels: one kernel == full encoder (or decoder) stack for one batch
# element, iterated over layers by the grid (layer weights streamed per step,
# activations resident in VMEM scratch).
# ----------------------------------------------------------------------------
ENC_WEIGHT_NAMES = ['wq', 'wk', 'wv', 'bq', 'bk', 'bv', 'wo', 'bo',
                    'ln1g', 'ln1b', 'w1', 'b1', 'w2', 'b2', 'ln2g', 'ln2b']

DEC_WEIGHT_NAMES = ['s_wq', 's_wk', 's_wv', 's_bq', 's_bk', 's_bv', 's_wo', 's_bo',
                    'ln1g', 'ln1b',
                    'c_wq', 'c_wk', 'c_wv', 'c_bq', 'c_bk', 'c_bv', 'c_wo', 'c_bo',
                    'ln2g', 'ln2b',
                    'w1', 'b1', 'w2', 'b2', 'ln3g', 'ln3b']

# Matrices used as MXU operands are stored/shipped in bf16; biases/LN stay f32.
MATMUL_WEIGHT_NAMES = frozenset({'wq', 'wk', 'wv', 'wo', 'w1', 'w2',
                                 's_wq', 's_wk', 's_wv', 's_wo',
                                 'c_wq', 'c_wk', 'c_wv', 'c_wo'})


def _encoder_stack_kernel(x_ref, pos_ref, *refs, n_heads):
    n_w = len(ENC_WEIGHT_NAMES)
    p = {nm: r[...] for nm, r in zip(ENC_WEIGHT_NAMES, refs[:n_w])}
    out_ref, acc_ref = refs[n_w:]
    layer = pl.program_id(1)

    @pl.when(layer == 0)
    def _():
        # Fused positional-encoding add; activations then stay resident in VMEM.
        acc_ref[...] = x_ref[...].astype(jnp.float32) + pos_ref[...]

    x_new = _encoder_layer_math(acc_ref[...], p, n_heads, approx_recip=True)
    acc_ref[...] = x_new

    @pl.when(layer == pl.num_programs(1) - 1)
    def _():
        out_ref[...] = x_new.astype(out_ref.dtype)


def _decoder_stack_kernel(toks_ref, mem_ref, *refs, n_heads):
    n_w = len(DEC_WEIGHT_NAMES)
    p = {nm: r[...] for nm, r in zip(DEC_WEIGHT_NAMES, refs[:n_w])}
    out_ref, acc_ref = refs[n_w:]
    layer = pl.program_id(1)

    @pl.when(layer == 0)
    def _():
        acc_ref[...] = toks_ref[...].astype(jnp.float32)

    y_new = _decoder_layer_math(acc_ref[...], mem_ref[...], p, n_heads,
                                approx_recip=True)
    acc_ref[...] = y_new

    @pl.when(layer == pl.num_programs(1) - 1)
    def _():
        out_ref[...] = y_new.astype(out_ref.dtype)


def _stack_weights(layers, names):
    """Stack per-layer params along a new leading layer axis; bf16 for MXU mats."""
    ws = []
    for nm in names:
        w = jnp.stack([lp[nm] for lp in layers], axis=0)
        if nm in MATMUL_WEIGHT_NAMES:
            w = w.astype(jnp.bfloat16)
        ws.append(w)
    return ws


def _stacked_w_spec(shape):
    """BlockSpec for a layer-stacked weight: pick layer `l`, squeeze that dim."""
    rest = tuple(shape[1:])
    zeros = (0,) * len(rest)
    return pl.BlockSpec((None,) + rest, lambda b, l, _z=zeros: (l,) + _z)


def encoder_stack_pallas(x, pos, layers, n_heads):
    B, S, H = x.shape
    L = len(layers)
    weights = _stack_weights(layers, ENC_WEIGHT_NAMES)
    return pl.pallas_call(
        partial(_encoder_stack_kernel, n_heads=n_heads),
        out_shape=jax.ShapeDtypeStruct((B, S, H), x.dtype),
        grid=(B, L),
        in_specs=[pl.BlockSpec((None, S, H), lambda b, l: (b, 0, 0)),   # x (per batch)
                  pl.BlockSpec((S, H), lambda b, l: (0, 0))]            # pos-enc table
                 + [_stacked_w_spec(w.shape) for w in weights],
        out_specs=pl.BlockSpec((None, S, H), lambda b, l: (b, 0, 0)),
        scratch_shapes=[pltpu.VMEM((S, H), jnp.float32)],               # resident acts
        compiler_params=pltpu.CompilerParams(
            dimension_semantics=("parallel", "arbitrary")),
    )(x, pos, *weights)


def decoder_stack_pallas(toks, mem, layers, n_heads):
    B, S, H = mem.shape
    Sq = toks.shape[0]
    L = len(layers)
    weights = _stack_weights(layers, DEC_WEIGHT_NAMES)
    return pl.pallas_call(
        partial(_decoder_stack_kernel, n_heads=n_heads),
        out_shape=jax.ShapeDtypeStruct((B, Sq, H), mem.dtype),
        grid=(B, L),
        in_specs=[pl.BlockSpec((Sq, H), lambda b, l: (0, 0)),           # decoder tokens
                  pl.BlockSpec((None, S, H), lambda b, l: (b, 0, 0))]   # memory (once/batch)
                 + [_stacked_w_spec(w.shape) for w in weights],
        out_specs=pl.BlockSpec((None, Sq, H), lambda b, l: (b, 0, 0)),
        scratch_shapes=[pltpu.VMEM((Sq, H), jnp.float32)],              # resident tokens
        compiler_params=pltpu.CompilerParams(
            dimension_semantics=("parallel", "arbitrary")),
    )(toks, mem, *weights)


# ----------------------------------------------------------------------------
# Glue: 2D positional encoding, parameter init, full forward
# ----------------------------------------------------------------------------
def positional_encoding_2d(m1, m2, ch):
    """positional_encodings.PositionalEncoding2D semantics for [b, x, y, ch]."""
    channels = int(np.ceil(ch / 4) * 2)
    inv_freq = 1.0 / (10000.0 ** (np.arange(0, channels, 2, dtype=np.float32) / channels))
    pos_x = np.arange(m1, dtype=np.float32)
    pos_y = np.arange(m2, dtype=np.float32)
    sin_x = np.einsum("i,j->ij", pos_x, inv_freq)
    sin_y = np.einsum("i,j->ij", pos_y, inv_freq)

    def get_emb(s):
        return np.stack([np.sin(s), np.cos(s)], axis=-1).reshape(s.shape[0], -1)

    emb_x = get_emb(sin_x)[:, None, :]            # [m1, 1, channels]
    emb_y = get_emb(sin_y)[None, :, :]            # [1, m2, channels]
    emb = np.zeros((m1, m2, 2 * channels), dtype=np.float32)
    emb[:, :, :channels] = emb_x
    emb[:, :, channels:2 * channels] = emb_y
    return jnp.asarray(emb[:, :, :ch])


def init_params(key, hidden, ff, n_layers):
    keys = iter(jax.random.split(key, 8 + 24 * n_layers * 2))

    def linear(fan_in, fan_out):
        lim = 1.0 / math.sqrt(fan_in)
        w = jax.random.uniform(next(keys), (fan_in, fan_out), jnp.float32, -lim, lim)
        b = jax.random.uniform(next(keys), (1, fan_out), jnp.float32, -lim, lim)
        return w, b

    def ln():
        return jnp.ones((1, hidden), jnp.float32), jnp.zeros((1, hidden), jnp.float32)

    def attn_block(prefix):
        p = {}
        for nm in ('q', 'k', 'v', 'o'):
            w, b = linear(hidden, hidden)
            p[prefix + 'w' + nm] = w
            p[prefix + 'b' + nm] = b
        return p

    enc_layers = []
    for _ in range(n_layers):
        p = attn_block('')
        p['ln1g'], p['ln1b'] = ln()
        p['w1'], p['b1'] = linear(hidden, ff)
        p['w2'], p['b2'] = linear(ff, hidden)
        p['ln2g'], p['ln2b'] = ln()
        enc_layers.append(p)

    dec_layers = []
    for _ in range(n_layers):
        p = attn_block('s_')
        p['ln1g'], p['ln1b'] = ln()
        p.update(attn_block('c_'))
        p['ln2g'], p['ln2b'] = ln()
        p['w1'], p['b1'] = linear(hidden, ff)
        p['w2'], p['b2'] = linear(ff, hidden)
        p['ln3g'], p['ln3b'] = ln()
        dec_layers.append(p)

    decoder_toks = jax.random.normal(next(keys), (2, hidden), jnp.float32)
    return {'encoder': enc_layers, 'decoder': dec_layers, 'decoder_toks': decoder_toks}


def transformer_features_extractor(tiles, params, n_heads):
    """Pallas forward. tiles: [B, hidden, M, M] -> (x: [B, M*M, hidden], y: [B, 2, hidden])."""
    B, H, M1, M2 = tiles.shape
    x = jnp.transpose(tiles, (0, 2, 3, 1)).reshape(B, M1 * M2, H)   # b h m1 m2 -> b (m1 m2) h
    pos = positional_encoding_2d(M1, M2, H).reshape(M1 * M2, H)     # added inside layer 0
    x = encoder_stack_pallas(x, pos, params['encoder'], n_heads)
    y = decoder_stack_pallas(params['decoder_toks'], x, params['decoder'], n_heads)
    return x, y


def reference_forward(tiles, params, n_heads):
    """Pure-JAX reference using the same math helpers (no Pallas, exact reciprocal)."""
    B, H, M1, M2 = tiles.shape
    x = jnp.transpose(tiles, (0, 2, 3, 1))
    x = x + positional_encoding_2d(M1, M2, H)[None]
    x = x.reshape(B, M1 * M2, H)
    for lp in params['encoder']:
        x = jax.vmap(lambda xb, p=lp: _encoder_layer_math(xb, p, n_heads,
                                                          approx_recip=False))(x)
    y = jnp.broadcast_to(params['decoder_toks'][None], (B, 2, H))
    for lp in params['decoder']:
        y = jax.vmap(lambda yb, mb, p=lp: _decoder_layer_math(yb, mb, p, n_heads,
                                                              approx_recip=False))(y, x)
    return x, y


if __name__ == "__main__":
    hidden_size, n_heads, ff_size, n_layers = 32, 4, 64, 2
    batch_size, map_size = 2, 4

    key = jax.random.PRNGKey(0)
    k_params, k_x = jax.random.split(key)
    params = init_params(k_params, hidden_size, ff_size, n_layers)
    tiles = jax.random.normal(k_x, (batch_size, hidden_size, map_size, map_size), jnp.float32)

    x_out, y_out = transformer_features_extractor(tiles, params, n_heads)
    jax.block_until_ready((x_out, y_out))

    assert x_out.shape == (batch_size, map_size * map_size, hidden_size)
    assert y_out.shape == (batch_size, 2, hidden_size)

    x_ref, y_ref = reference_forward(tiles, params, n_heads)
    np.testing.assert_allclose(np.asarray(x_out), np.asarray(x_ref), rtol=1e-2, atol=1e-2)
    np.testing.assert_allclose(np.asarray(y_out), np.asarray(y_ref), rtol=1e-2, atol=1e-2)

    print("KERNEL_OK")
</pallas_src>

<mosaic_0001>
module attributes {stable_mosaic.version = 11 : i64} {
  func.func @_encoder_stack_kernel(%arg0: i32, %arg1: i32, %arg2: memref<1x16x32xf32, #tpu.memory_space<vmem>>, %arg3: memref<16x32xf32, #tpu.memory_space<vmem>>, %arg4: memref<1x32x32xbf16, #tpu.memory_space<vmem>>, %arg5: memref<1x32x32xbf16, #tpu.memory_space<vmem>>, %arg6: memref<1x32x32xbf16, #tpu.memory_space<vmem>>, %arg7: memref<1x1x32xf32, #tpu.memory_space<vmem>>, %arg8: memref<1x1x32xf32, #tpu.memory_space<vmem>>, %arg9: memref<1x1x32xf32, #tpu.memory_space<vmem>>, %arg10: memref<1x32x32xbf16, #tpu.memory_space<vmem>>, %arg11: memref<1x1x32xf32, #tpu.memory_space<vmem>>, %arg12: memref<1x1x32xf32, #tpu.memory_space<vmem>>, %arg13: memref<1x1x32xf32, #tpu.memory_space<vmem>>, %arg14: memref<1x32x64xbf16, #tpu.memory_space<vmem>>, %arg15: memref<1x1x64xf32, #tpu.memory_space<vmem>>, %arg16: memref<1x64x32xbf16, #tpu.memory_space<vmem>>, %arg17: memref<1x1x32xf32, #tpu.memory_space<vmem>>, %arg18: memref<1x1x32xf32, #tpu.memory_space<vmem>>, %arg19: memref<1x1x32xf32, #tpu.memory_space<vmem>>, %arg20: memref<1x16x32xf32, #tpu.memory_space<vmem>>, %arg21: memref<16x32xf32, #tpu.memory_space<vmem>>) attributes {dimension_semantics = [#tpu.dimension_semantics<parallel>, #tpu.dimension_semantics<arbitrary>], iteration_bounds = array<i64: 2, 2>, scalar_prefetch = 0 : i64, scratch_operands = 1 : i64, tpu.core_type = #tpu.core_type<tc>, window_params = [{transform_indices = @transform_0, window_bounds = array<i64: 1, 16, 32>}, {pipeline_mode = #tpu.pipeline_mode<synchronous>, transform_indices = @transform_1, window_bounds = array<i64: 16, 32>}, {transform_indices = @transform_2, window_bounds = array<i64: 1, 32, 32>}, {transform_indices = @transform_3, window_bounds = array<i64: 1, 32, 32>}, {transform_indices = @transform_4, window_bounds = array<i64: 1, 32, 32>}, {transform_indices = @transform_5, window_bounds = array<i64: 1, 1, 32>}, {transform_indices = @transform_6, window_bounds = array<i64: 1, 1, 32>}, {transform_indices = @transform_7, window_bounds = array<i64: 1, 1, 32>}, {transform_indices = @transform_8, window_bounds = array<i64: 1, 32, 32>}, {transform_indices = @transform_9, window_bounds = array<i64: 1, 1, 32>}, {transform_indices = @transform_10, window_bounds = array<i64: 1, 1, 32>}, {transform_indices = @transform_11, window_bounds = array<i64: 1, 1, 32>}, {transform_indices = @transform_12, window_bounds = array<i64: 1, 32, 64>}, {transform_indices = @transform_13, window_bounds = array<i64: 1, 1, 64>}, {transform_indices = @transform_14, window_bounds = array<i64: 1, 64, 32>}, {transform_indices = @transform_15, window_bounds = array<i64: 1, 1, 32>}, {transform_indices = @transform_16, window_bounds = array<i64: 1, 1, 32>}, {transform_indices = @transform_17, window_bounds = array<i64: 1, 1, 32>}, {transform_indices = @transform_18, window_bounds = array<i64: 1, 16, 32>}]} {
    %c0 = arith.constant 0 : index
    %c0_0 = arith.constant 0 : index
    %c0_1 = arith.constant 0 : index
    %0 = vector.load %arg4[%c0, %c0_0, %c0_1] : memref<1x32x32xbf16, #tpu.memory_space<vmem>>, vector<1x32x32xbf16>
    %1 = vector.shape_cast %0 : vector<1x32x32xbf16> to vector<32x32xbf16>
    %c0_2 = arith.constant 0 : index
    %c0_3 = arith.constant 0 : index
    %c0_4 = arith.constant 0 : index
    %2 = vector.load %arg5[%c0_2, %c0_3, %c0_4] : memref<1x32x32xbf16, #tpu.memory_space<vmem>>, vector<1x32x32xbf16>
    %3 = vector.shape_cast %2 : vector<1x32x32xbf16> to vector<32x32xbf16>
    %c0_5 = arith.constant 0 : index
    %c0_6 = arith.constant 0 : index
    %c0_7 = arith.constant 0 : index
    %4 = vector.load %arg6[%c0_5, %c0_6, %c0_7] : memref<1x32x32xbf16, #tpu.memory_space<vmem>>, vector<1x32x32xbf16>
    %5 = vector.shape_cast %4 : vector<1x32x32xbf16> to vector<32x32xbf16>
    %c0_8 = arith.constant 0 : index
    %c0_9 = arith.constant 0 : index
    %c0_10 = arith.constant 0 : index
    %6 = vector.load %arg7[%c0_8, %c0_9, %c0_10] : memref<1x1x32xf32, #tpu.memory_space<vmem>>, vector<1x1x32xf32>
    %7 = vector.shape_cast %6 : vector<1x1x32xf32> to vector<1x32xf32>
    %c0_11 = arith.constant 0 : index
    %c0_12 = arith.constant 0 : index
    %c0_13 = arith.constant 0 : index
    %8 = vector.load %arg8[%c0_11, %c0_12, %c0_13] : memref<1x1x32xf32, #tpu.memory_space<vmem>>, vector<1x1x32xf32>
    %9 = vector.shape_cast %8 : vector<1x1x32xf32> to vector<1x32xf32>
    %c0_14 = arith.constant 0 : index
    %c0_15 = arith.constant 0 : index
    %c0_16 = arith.constant 0 : index
    %10 = vector.load %arg9[%c0_14, %c0_15, %c0_16] : memref<1x1x32xf32, #tpu.memory_space<vmem>>, vector<1x1x32xf32>
    %11 = vector.shape_cast %10 : vector<1x1x32xf32> to vector<1x32xf32>
    %c0_17 = arith.constant 0 : index
    %c0_18 = arith.constant 0 : index
    %c0_19 = arith.constant 0 : index
    %12 = vector.load %arg10[%c0_17, %c0_18, %c0_19] : memref<1x32x32xbf16, #tpu.memory_space<vmem>>, vector<1x32x32xbf16>
    %13 = vector.shape_cast %12 : vector<1x32x32xbf16> to vector<32x32xbf16>
    %c0_20 = arith.constant 0 : index
    %c0_21 = arith.constant 0 : index
    %c0_22 = arith.constant 0 : index
    %14 = vector.load %arg11[%c0_20, %c0_21, %c0_22] : memref<1x1x32xf32, #tpu.memory_space<vmem>>, vector<1x1x32xf32>
    %15 = vector.shape_cast %14 : vector<1x1x32xf32> to vector<1x32xf32>
    %c0_23 = arith.constant 0 : index
    %c0_24 = arith.constant 0 : index
    %c0_25 = arith.constant 0 : index
    %16 = vector.load %arg12[%c0_23, %c0_24, %c0_25] : memref<1x1x32xf32, #tpu.memory_space<vmem>>, vector<1x1x32xf32>
    %17 = vector.shape_cast %16 : vector<1x1x32xf32> to vector<1x32xf32>
    %c0_26 = arith.constant 0 : index
    %c0_27 = arith.constant 0 : index
    %c0_28 = arith.constant 0 : index
    %18 = vector.load %arg13[%c0_26, %c0_27, %c0_28] : memref<1x1x32xf32, #tpu.memory_space<vmem>>, vector<1x1x32xf32>
    %19 = vector.shape_cast %18 : vector<1x1x32xf32> to vector<1x32xf32>
    %c0_29 = arith.constant 0 : index
    %c0_30 = arith.constant 0 : index
    %c0_31 = arith.constant 0 : index
    %20 = vector.load %arg14[%c0_29, %c0_30, %c0_31] : memref<1x32x64xbf16, #tpu.memory_space<vmem>>, vector<1x32x64xbf16>
    %21 = vector.shape_cast %20 : vector<1x32x64xbf16> to vector<32x64xbf16>
    %c0_32 = arith.constant 0 : index
    %c0_33 = arith.constant 0 : index
    %c0_34 = arith.constant 0 : index
    %22 = vector.load %arg15[%c0_32, %c0_33, %c0_34] : memref<1x1x64xf32, #tpu.memory_space<vmem>>, vector<1x1x64xf32>
    %23 = vector.shape_cast %22 : vector<1x1x64xf32> to vector<1x64xf32>
    %c0_35 = arith.constant 0 : index
    %c0_36 = arith.constant 0 : index
    %c0_37 = arith.constant 0 : index
    %24 = vector.load %arg16[%c0_35, %c0_36, %c0_37] : memref<1x64x32xbf16, #tpu.memory_space<vmem>>, vector<1x64x32xbf16>
    %25 = vector.shape_cast %24 : vector<1x64x32xbf16> to vector<64x32xbf16>
    %c0_38 = arith.constant 0 : index
    %c0_39 = arith.constant 0 : index
    %c0_40 = arith.constant 0 : index
    %26 = vector.load %arg17[%c0_38, %c0_39, %c0_40] : memref<1x1x32xf32, #tpu.memory_space<vmem>>, vector<1x1x32xf32>
    %27 = vector.shape_cast %26 : vector<1x1x32xf32> to vector<1x32xf32>
    %c0_41 = arith.constant 0 : index
    %c0_42 = arith.constant 0 : index
    %c0_43 = arith.constant 0 : index
    %28 = vector.load %arg18[%c0_41, %c0_42, %c0_43] : memref<1x1x32xf32, #tpu.memory_space<vmem>>, vector<1x1x32xf32>
    %29 = vector.shape_cast %28 : vector<1x1x32xf32> to vector<1x32xf32>
    %c0_44 = arith.constant 0 : index
    %c0_45 = arith.constant 0 : index
    %c0_46 = arith.constant 0 : index
    %30 = vector.load %arg19[%c0_44, %c0_45, %c0_46] : memref<1x1x32xf32, #tpu.memory_space<vmem>>, vector<1x1x32xf32>
    %31 = vector.shape_cast %30 : vector<1x1x32xf32> to vector<1x32xf32>
    %c0_i32 = arith.constant 0 : i32
    %32 = arith.cmpi eq, %arg1, %c0_i32 : i32
    %33 = arith.extui %32 : i1 to i32
    %c0_i32_47 = arith.constant 0 : i32
    %34 = arith.cmpi ne, %33, %c0_i32_47 : i32
    scf.if %34 {
      %c0_74 = arith.constant 0 : index
      %c0_75 = arith.constant 0 : index
      %c0_76 = arith.constant 0 : index
      %135 = vector.load %arg2[%c0_74, %c0_75, %c0_76] : memref<1x16x32xf32, #tpu.memory_space<vmem>>, vector<1x16x32xf32>
      %136 = vector.shape_cast %135 : vector<1x16x32xf32> to vector<16x32xf32>
      %c0_77 = arith.constant 0 : index
      %c0_78 = arith.constant 0 : index
      %137 = vector.load %arg3[%c0_77, %c0_78] : memref<16x32xf32, #tpu.memory_space<vmem>>, vector<16x32xf32>
      %138 = arith.addf %136, %137 : vector<16x32xf32>
      %c0_79 = arith.constant 0 : index
      %c0_80 = arith.constant 0 : index
      %139 = vector.load %arg21[%c0_79, %c0_80] : memref<16x32xf32, #tpu.memory_space<vmem>>, vector<16x32xf32>
      tpu.vector_store %arg21[%c0_79, %c0_80], %138 {strides = array<i32>} : memref<16x32xf32, #tpu.memory_space<vmem>>, vector<16x32xf32>,
    } else {
    }
    %c0_48 = arith.constant 0 : index
    %c0_49 = arith.constant 0 : index
    %35 = vector.load %arg21[%c0_48, %c0_49] : memref<16x32xf32, #tpu.memory_space<vmem>>, vector<16x32xf32>
    %36 = arith.truncf %35 : vector<16x32xf32> to vector<16x32xbf16>
    %cst = arith.constant dense<0.000000e+00> : vector<16x32xf32>
    %37 = tpu.matmul %36, %1, %cst {dimension_numbers = #tpu.dot_dimension_numbers<[1], [0], [0], [1], [0, 0, 1, 1], [], []>} : vector<16x32xbf16>, vector<32x32xbf16>, vector<16x32xf32> -> vector<16x32xf32>
    %38 = vector.broadcast %7 : vector<1x32xf32> to vector<16x32xf32>
    %39 = arith.addf %37, %38 : vector<16x32xf32>
    %cst_50 = arith.constant 0.353553385 : f32
    %40 = vector.broadcast %cst_50 : f32 to vector<16x32xf32>
    %41 = arith.mulf %39, %40 : vector<16x32xf32>
    %42 = arith.truncf %35 : vector<16x32xf32> to vector<16x32xbf16>
    %cst_51 = arith.constant dense<0.000000e+00> : vector<16x32xf32>
    %43 = tpu.matmul %42, %3, %cst_51 {dimension_numbers = #tpu.dot_dimension_numbers<[1], [0], [0], [1], [0, 0, 1, 1], [], []>} : vector<16x32xbf16>, vector<32x32xbf16>, vector<16x32xf32> -> vector<16x32xf32>
    %44 = vector.broadcast %9 : vector<1x32xf32> to vector<16x32xf32>
    %45 = arith.addf %43, %44 : vector<16x32xf32>
    %46 = arith.truncf %35 : vector<16x32xf32> to vector<16x32xbf16>
    %cst_52 = arith.constant dense<0.000000e+00> : vector<16x32xf32>
    %47 = tpu.matmul %46, %5, %cst_52 {dimension_numbers = #tpu.dot_dimension_numbers<[1], [0], [0], [1], [0, 0, 1, 1], [], []>} : vector<16x32xbf16>, vector<32x32xbf16>, vector<16x32xf32> -> vector<16x32xf32>
    %48 = vector.broadcast %11 : vector<1x32xf32> to vector<16x32xf32>
    %49 = arith.addf %47, %48 : vector<16x32xf32>
    %50 = vector.shape_cast %41 : vector<16x32xf32> to vector<16x4x8xf32>
    %51 = vector.shape_cast %45 : vector<16x32xf32> to vector<16x4x8xf32>
    %52 = vector.shape_cast %49 : vector<16x32xf32> to vector<16x4x8xf32>
    %53 = arith.truncf %50 : vector<16x4x8xf32> to vector<16x4x8xbf16>
    %54 = arith.truncf %51 : vector<16x4x8xf32> to vector<16x4x8xbf16>
    "tpu.trace_start"() <{level = 10 : i32, message = "qhd,khd->hqk"}> : () -> ()
    %cst_53 = arith.constant dense<0.000000e+00> : vector<4x16x16xf32>
    %55 = tpu.matmul %53, %54, %cst_53 {dimension_numbers = #tpu.dot_dimension_numbers<[2], [2], [0], [0], [0, 1, 0, 0, 1, 0], [1], [1]>} : vector<16x4x8xbf16>, vector<16x4x8xbf16>, vector<4x16x16xf32> -> vector<4x16x16xf32>
    "tpu.trace_stop"() : () -> ()
    %cst_54 = arith.constant dense<0xFF800000> : vector<4x16xf32>
    %56 = vector.multi_reduction <maximumf>, %55, %cst_54 [2] : vector<4x16x16xf32> to vector<4x16xf32>
    %57 = vector.shape_cast %56 : vector<4x16xf32> to vector<4x16x1xf32>
    %58 = vector.broadcast %57 : vector<4x16x1xf32> to vector<4x16x16xf32>
    %59 = arith.subf %55, %58 : vector<4x16x16xf32>
    %60 = math.exp %59 : vector<4x16x16xf32>
    %cst_55 = arith.constant dense<0.000000e+00> : vector<4x16xf32>
    %61 = vector.multi_reduction <add>, %60, %cst_55 [2] : vector<4x16x16xf32> to vector<4x16xf32>
    %62 = vector.shape_cast %61 : vector<4x16xf32> to vector<4x16x1xf32>
    %63 = arith.truncf %60 : vector<4x16x16xf32> to vector<4x16x16xbf16>
    %64 = arith.truncf %52 : vector<16x4x8xf32> to vector<16x4x8xbf16>
    "tpu.trace_start"() <{level = 10 : i32, message = "hqk,khd->hqd"}> : () -> ()
    %cst_56 = arith.constant dense<0.000000e+00> : vector<4x16x8xf32>
    %65 = tpu.matmul %63, %64, %cst_56 {dimension_numbers = #tpu.dot_dimension_numbers<[2], [0], [1], [2], [0, 0, 0, 1, 1, 2], [0], [1]>} : vector<4x16x16xbf16>, vector<16x4x8xbf16>, vector<4x16x8xf32> -> vector<4x16x8xf32>
    "tpu.trace_stop"() : () -> ()
    %66 = tpu.reciprocal %62 {approx = true} : vector<4x16x1xf32> -> vector<4x16x1xf32>
    %67 = vector.broadcast %66 : vector<4x16x1xf32> to vector<4x16x8xf32>
    %68 = arith.mulf %65, %67 : vector<4x16x8xf32>
    %69 = tpu.transpose %68, [1, 0, 2] : vector<4x16x8xf32> -> vector<16x4x8xf32>
    %70 = vector.shape_cast %69 : vector<16x4x8xf32> to vector<16x32xf32>
    %71 = arith.truncf %70 : vector<16x32xf32> to vector<16x32xbf16>
    %cst_57 = arith.constant dense<0.000000e+00> : vector<16x32xf32>
    %72 = tpu.matmul %71, %13, %cst_57 {dimension_numbers = #tpu.dot_dimension_numbers<[1], [0], [0], [1], [0, 0, 1, 1], [], []>} : vector<16x32xbf16>, vector<32x32xbf16>, vector<16x32xf32> -> vector<16x32xf32>
    %73 = vector.broadcast %15 : vector<1x32xf32> to vector<16x32xf32>
    %74 = arith.addf %72, %73 : vector<16x32xf32>
    %75 = arith.addf %35, %74 : vector<16x32xf32>
    %cst_58 = arith.constant dense<0.000000e+00> : vector<16xf32>
    %76 = vector.multi_reduction <add>, %75, %cst_58 [1] : vector<16x32xf32> to vector<16xf32>
    %77 = vector.shape_cast %76 : vector<16xf32> to vector<16x1xf32>
    %cst_59 = arith.constant 3.200000e+01 : f32
    %78 = vector.broadcast %cst_59 : f32 to vector<16x1xf32>
    %79 = arith.divf %77, %78 : vector<16x1xf32>
    %80 = vector.broadcast %79 : vector<16x1xf32> to vector<16x32xf32>
    %81 = arith.subf %75, %80 : vector<16x32xf32>
    %82 = arith.mulf %81, %81 : vector<16x32xf32>
    %cst_60 = arith.constant dense<0.000000e+00> : vector<16xf32>
    %83 = vector.multi_reduction <add>, %82, %cst_60 [1] : vector<16x32xf32> to vector<16xf32>
    %84 = vector.shape_cast %83 : vector<16xf32> to vector<16x1xf32>
    %cst_61 = arith.constant 3.200000e+01 : f32
    %85 = vector.broadcast %cst_61 : f32 to vector<16x1xf32>
    %86 = arith.divf %84, %85 : vector<16x1xf32>
    %87 = vector.broadcast %79 : vector<16x1xf32> to vector<16x32xf32>
    %88 = arith.subf %75, %87 : vector<16x32xf32>
    %cst_62 = arith.constant 9.99999974E-6 : f32
    %89 = vector.broadcast %cst_62 : f32 to vector<16x1xf32>
    %90 = arith.addf %86, %89 : vector<16x1xf32>
    %91 = math.rsqrt %90 : vector<16x1xf32>
    %92 = vector.broadcast %91 : vector<16x1xf32> to vector<16x32xf32>
    %93 = arith.mulf %88, %92 : vector<16x32xf32>
    %94 = vector.broadcast %17 : vector<1x32xf32> to vector<16x32xf32>
    %95 = arith.mulf %93, %94 : vector<16x32xf32>
    %96 = vector.broadcast %19 : vector<1x32xf32> to vector<16x32xf32>
    %97 = arith.addf %95, %96 : vector<16x32xf32>
    %98 = arith.truncf %97 : vector<16x32xf32> to vector<16x32xbf16>
    %cst_63 = arith.constant dense<0.000000e+00> : vector<16x64xf32>
    %99 = tpu.matmul %98, %21, %cst_63 {dimension_numbers = #tpu.dot_dimension_numbers<[1], [0], [0], [1], [0, 0, 1, 1], [], []>} : vector<16x32xbf16>, vector<32x64xbf16>, vector<16x64xf32> -> vector<16x64xf32>
    %100 = vector.broadcast %23 : vector<1x64xf32> to vector<16x64xf32>
    %101 = arith.addf %99, %100 : vector<16x64xf32>
    %cst_64 = arith.constant 0.000000e+00 : f32
    %102 = vector.broadcast %cst_64 : f32 to vector<16x64xf32>
    %103 = arith.maximumf %101, %102 : vector<16x64xf32>
    %104 = arith.truncf %103 : vector<16x64xf32> to vector<16x64xbf16>
    %cst_65 = arith.constant dense<0.000000e+00> : vector<16x32xf32>
    %105 = tpu.matmul %104, %25, %cst_65 {dimension_numbers = #tpu.dot_dimension_numbers<[1], [0], [0], [1], [0, 0, 1, 1], [], []>} : vector<16x64xbf16>, vector<64x32xbf16>, vector<16x32xf32> -> vector<16x32xf32>
    %106 = vector.broadcast %27 : vector<1x32xf32> to vector<16x32xf32>
    %107 = arith.addf %105, %106 : vector<16x32xf32>
    %108 = arith.addf %97, %107 : vector<16x32xf32>
    %cst_66 = arith.constant dense<0.000000e+00> : vector<16xf32>
    %109 = vector.multi_reduction <add>, %108, %cst_66 [1] : vector<16x32xf32> to vector<16xf32>
    %110 = vector.shape_cast %109 : vector<16xf32> to vector<16x1xf32>
    %cst_67 = arith.constant 3.200000e+01 : f32
    %111 = vector.broadcast %cst_67 : f32 to vector<16x1xf32>
    %112 = arith.divf %110, %111 : vector<16x1xf32>
    %113 = vector.broadcast %112 : vector<16x1xf32> to vector<16x32xf32>
    %114 = arith.subf %108, %113 : vector<16x32xf32>
    %115 = arith.mulf %114, %114 : vector<16x32xf32>
    %cst_68 = arith.constant dense<0.000000e+00> : vector<16xf32>
    %116 = vector.multi_reduction <add>, %115, %cst_68 [1] : vector<16x32xf32> to vector<16xf32>
    %117 = vector.shape_cast %116 : vector<16xf32> to vector<16x1xf32>
    %cst_69 = arith.constant 3.200000e+01 : f32
    %118 = vector.broadcast %cst_69 : f32 to vector<16x1xf32>
    %119 = arith.divf %117, %118 : vector<16x1xf32>
    %120 = vector.broadcast %112 : vector<16x1xf32> to vector<16x32xf32>
    %121 = arith.subf %108, %120 : vector<16x32xf32>
    %cst_70 = arith.constant 9.99999974E-6 : f32
    %122 = vector.broadcast %cst_70 : f32 to vector<16x1xf32>
    %123 = arith.addf %119, %122 : vector<16x1xf32>
    %124 = math.rsqrt %123 : vector<16x1xf32>
    %125 = vector.broadcast %124 : vector<16x1xf32> to vector<16x32xf32>
    %126 = arith.mulf %121, %125 : vector<16x32xf32>
    %127 = vector.broadcast %29 : vector<1x32xf32> to vector<16x32xf32>
    %128 = arith.mulf %126, %127 : vector<16x32xf32>
    %129 = vector.broadcast %31 : vector<1x32xf32> to vector<16x32xf32>
    %130 = arith.addf %128, %129 : vector<16x32xf32>
    %c0_71 = arith.constant 0 : index
    %c0_72 = arith.constant 0 : index
    %131 = vector.load %arg21[%c0_71, %c0_72] : memref<16x32xf32, #tpu.memory_space<vmem>>, vector<16x32xf32>
    tpu.vector_store %arg21[%c0_71, %c0_72], %130 {strides = array<i32>} : memref<16x32xf32, #tpu.memory_space<vmem>>, vector<16x32xf32>,
    %c1_i32 = arith.constant 1 : i32
    %132 = arith.cmpi eq, %arg1, %c1_i32 : i32
    %133 = arith.extui %132 : i1 to i32
    %c0_i32_73 = arith.constant 0 : i32
    %134 = arith.cmpi ne, %133, %c0_i32_73 : i32
    scf.if %134 {
      %c0_74 = arith.constant 0 : index
      %c0_75 = arith.constant 0 : index
      %c0_76 = arith.constant 0 : index
      %135 = vector.load %arg20[%c0_74, %c0_75, %c0_76] : memref<1x16x32xf32, #tpu.memory_space<vmem>>, vector<1x16x32xf32>
      %136 = vector.shape_cast %135 : vector<1x16x32xf32> to vector<16x32xf32>
      %137 = vector.shape_cast %130 : vector<16x32xf32> to vector<1x16x32xf32>
      tpu.vector_store %arg20[%c0_74, %c0_75, %c0_76], %137 {strides = array<i32>} : memref<1x16x32xf32, #tpu.memory_space<vmem>>, vector<1x16x32xf32>,
    } else {
    }
    return
  }
  func.func @transform_0(%arg0: i32, %arg1: i32) -> (i32, i32, i32) {
    %c0_i32 = arith.constant 0 : i32
    %c0_i32_0 = arith.constant 0 : i32
    %c0_i32_1 = arith.constant 0 : i32
    return %arg0, %c0_i32, %c0_i32_0 : i32, i32, i32
  }
  func.func @transform_1(%arg0: i32, %arg1: i32) -> (i32, i32) {
    %c0_i32 = arith.constant 0 : i32
    %c0_i32_0 = arith.constant 0 : i32
    %c0_i32_1 = arith.constant 0 : i32
    return %c0_i32, %c0_i32_0 : i32, i32
  }
  func.func @transform_2(%arg0: i32, %arg1: i32) -> (i32, i32, i32) {
    %c0_i32 = arith.constant 0 : i32
    %c0_i32_0 = arith.constant 0 : i32
    %c0_i32_1 = arith.constant 0 : i32
    return %arg1, %c0_i32, %c0_i32_0 : i32, i32, i32
  }
  func.func @transform_3(%arg0: i32, %arg1: i32) -> (i32, i32, i32) {
    %c0_i32 = arith.constant 0 : i32
    %c0_i32_0 = arith.constant 0 : i32
    %c0_i32_1 = arith.constant 0 : i32
    return %arg1, %c0_i32, %c0_i32_0 : i32, i32, i32
  }
  func.func @transform_4(%arg0: i32, %arg1: i32) -> (i32, i32, i32) {
    %c0_i32 = arith.constant 0 : i32
    %c0_i32_0 = arith.constant 0 : i32
    %c0_i32_1 = arith.constant 0 : i32
    return %arg1, %c0_i32, %c0_i32_0 : i32, i32, i32
  }
  func.func @transform_5(%arg0: i32, %arg1: i32) -> (i32, i32, i32) {
    %c0_i32 = arith.constant 0 : i32
    %c0_i32_0 = arith.constant 0 : i32
    %c0_i32_1 = arith.constant 0 : i32
    return %arg1, %c0_i32, %c0_i32_0 : i32, i32, i32
  }
  func.func @transform_6(%arg0: i32, %arg1: i32) -> (i32, i32, i32) {
    %c0_i32 = arith.constant 0 : i32
    %c0_i32_0 = arith.constant 0 : i32
    %c0_i32_1 = arith.constant 0 : i32
    return %arg1, %c0_i32, %c0_i32_0 : i32, i32, i32
  }
  func.func @transform_7(%arg0: i32, %arg1: i32) -> (i32, i32, i32) {
    %c0_i32 = arith.constant 0 : i32
    %c0_i32_0 = arith.constant 0 : i32
    %c0_i32_1 = arith.constant 0 : i32
    return %arg1, %c0_i32, %c0_i32_0 : i32, i32, i32
  }
  func.func @transform_8(%arg0: i32, %arg1: i32) -> (i32, i32, i32) {
    %c0_i32 = arith.constant 0 : i32
    %c0_i32_0 = arith.constant 0 : i32
    %c0_i32_1 = arith.constant 0 : i32
    return %arg1, %c0_i32, %c0_i32_0 : i32, i32, i32
  }
  func.func @transform_9(%arg0: i32, %arg1: i32) -> (i32, i32, i32) {
    %c0_i32 = arith.constant 0 : i32
    %c0_i32_0 = arith.constant 0 : i32
    %c0_i32_1 = arith.constant 0 : i32
    return %arg1, %c0_i32, %c0_i32_0 : i32, i32, i32
  }
  func.func @transform_10(%arg0: i32, %arg1: i32) -> (i32, i32, i32) {
    %c0_i32 = arith.constant 0 : i32
    %c0_i32_0 = arith.constant 0 : i32
    %c0_i32_1 = arith.constant 0 : i32
    return %arg1, %c0_i32, %c0_i32_0 : i32, i32, i32
  }
  func.func @transform_11(%arg0: i32, %arg1: i32) -> (i32, i32, i32) {
    %c0_i32 = arith.constant 0 : i32
    %c0_i32_0 = arith.constant 0 : i32
    %c0_i32_1 = arith.constant 0 : i32
    return %arg1, %c0_i32, %c0_i32_0 : i32, i32, i32
  }
  func.func @transform_12(%arg0: i32, %arg1: i32) -> (i32, i32, i32) {
    %c0_i32 = arith.constant 0 : i32
    %c0_i32_0 = arith.constant 0 : i32
    %c0_i32_1 = arith.constant 0 : i32
    return %arg1, %c0_i32, %c0_i32_0 : i32, i32, i32
  }
  func.func @transform_13(%arg0: i32, %arg1: i32) -> (i32, i32, i32) {
    %c0_i32 = arith.constant 0 : i32
    %c0_i32_0 = arith.constant 0 : i32
    %c0_i32_1 = arith.constant 0 : i32
    return %arg1, %c0_i32, %c0_i32_0 : i32, i32, i32
  }
  func.func @transform_14(%arg0: i32, %arg1: i32) -> (i32, i32, i32) {
    %c0_i32 = arith.constant 0 : i32
    %c0_i32_0 = arith.constant 0 : i32
    %c0_i32_1 = arith.constant 0 : i32
    return %arg1, %c0_i32, %c0_i32_0 : i32, i32, i32
  }
  func.func @transform_15(%arg0: i32, %arg1: i32) -> (i32, i32, i32) {
    %c0_i32 = arith.constant 0 : i32
    %c0_i32_0 = arith.constant 0 : i32
    %c0_i32_1 = arith.constant 0 : i32
    return %arg1, %c0_i32, %c0_i32_0 : i32, i32, i32
  }
  func.func @transform_16(%arg0: i32, %arg1: i32) -> (i32, i32, i32) {
    %c0_i32 = arith.constant 0 : i32
    %c0_i32_0 = arith.constant 0 : i32
    %c0_i32_1 = arith.constant 0 : i32
    return %arg1, %c0_i32, %c0_i32_0 : i32, i32, i32
  }
  func.func @transform_17(%arg0: i32, %arg1: i32) -> (i32, i32, i32) {
    %c0_i32 = arith.constant 0 : i32
    %c0_i32_0 = arith.constant 0 : i32
    %c0_i32_1 = arith.constant 0 : i32
    return %arg1, %c0_i32, %c0_i32_0 : i32, i32, i32
  }
  func.func @transform_18(%arg0: i32, %arg1: i32) -> (i32, i32, i32) {
    %c0_i32 = arith.constant 0 : i32
    %c0_i32_0 = arith.constant 0 : i32
    %c0_i32_1 = arith.constant 0 : i32
    return %arg0, %c0_i32, %c0_i32_0 : i32, i32, i32
  }
}

</mosaic_0001>

<llo_original>
// kernel: tpu_custom_call.1
$region0: #{tpu_custom_call.1}
  #allocation0 [shape = 'u32[]', space=smem, size = 0x4, offset = 0x4, fixed_abs, tag = 'smem constant byte address 0x4 - core index']
  #allocation1 [shape = 'u32[72,128]{1,0:T(1,128)}', space=vmem, size = 0x9000, scoped, tag = 'internal scratch']
  #allocation2 [shape = 'f32[16,32]{1,0:T(8,128)}', space=vmem, size = 0x2000, scoped, tag = 'scratch operand']
  %s0 = inlined_call_operand.vmem [shape: f32[2,16,32], index: 0, kind: input, shape index: {}]
  %s1 = inlined_call_operand.hbm [shape: f32[16,32], index: 1, kind: input, shape index: {}]
  %s2 = inlined_call_operand.vmem [shape: bf16[2,32,32], index: 2, kind: input, shape index: {}]
  %s3 = inlined_call_operand.vmem [shape: bf16[2,32,32], index: 3, kind: input, shape index: {}]
  %s4 = inlined_call_operand.hbm [shape: bf16[2,32,32], index: 4, kind: input, shape index: {}]
  %s5 = inlined_call_operand.vmem [shape: f32[2,1,32], index: 5, kind: input, shape index: {}]
  %s6 = inlined_call_operand.vmem [shape: f32[2,1,32], index: 6, kind: input, shape index: {}]
  %s7 = inlined_call_operand.hbm [shape: f32[2,1,32], index: 7, kind: input, shape index: {}]
  %s8 = inlined_call_operand.hbm [shape: bf16[2,32,32], index: 8, kind: input, shape index: {}]
  %s9 = inlined_call_operand.vmem [shape: f32[2,1,32], index: 9, kind: input, shape index: {}]
  %s10 = inlined_call_operand.vmem [shape: f32[2,1,32], index: 10, kind: input, shape index: {}]
  %s11 = inlined_call_operand.hbm [shape: f32[2,1,32], index: 11, kind: input, shape index: {}]
  %s12 = inlined_call_operand.hbm [shape: bf16[2,32,64], index: 12, kind: input, shape index: {}]
  %s13 = inlined_call_operand.vmem [shape: f32[2,1,64], index: 13, kind: input, shape index: {}]
  %s14 = inlined_call_operand.vmem [shape: bf16[2,64,32], index: 14, kind: input, shape index: {}]
  %s15 = inlined_call_operand.vmem [shape: f32[2,1,32], index: 15, kind: input, shape index: {}]
  %s16 = inlined_call_operand.vmem [shape: f32[2,1,32], index: 16, kind: input, shape index: {}]
  %s17 = inlined_call_operand.hbm [shape: f32[2,1,32], index: 17, kind: input, shape index: {}]
  %s18 = inlined_call_operand.hbm [shape: f32[2,16,32], index: 18, kind: output, shape index: {}]
  %s19 = sld [smem:[#allocation0]]
  $region141: #{tpu_custom_call.1} parent=0
    _
  %s21 = ssub.s32 1, %s19
  %s22 = scalar_select 0, %s21, %s19
  $region1: #{tpu_custom_call.1} parent=0
    #allocation3 [shape = 'u8[8192]{0}', space=vmem, size = 0x2000, scoped, tag = 'input window, operand 1, single buffered']
    #allocation4 [shape = 's32[2]{0}', space=sflag, size = 0x8, scoped, tag = 'scoped memory for tpu_custom_call.1']
    #allocation5 [shape = 's32[2]{0}', space=sflag, size = 0x8, scoped, tag = 'scoped memory for tpu_custom_call.1']
    #allocation6 [shape = 'u8[16384]{0}', space=vmem, size = 0x4000, scoped, tag = 'input window, operand 4']
    #allocation7 [shape = 's32[2]{0}', space=sflag, size = 0x8, scoped, tag = 'scoped memory for tpu_custom_call.1']
    #allocation8 [shape = 'u8[1024]{0}', space=vmem, size = 0x400, scoped, tag = 'input window, operand 7']
    #allocation9 [shape = 'u8[16384]{0}', space=vmem, size = 0x4000, scoped, tag = 'input window, operand 8']
    #allocation10 [shape = 's32[2]{0}', space=sflag, size = 0x8, scoped, tag = 'scoped memory for tpu_custom_call.1']
    #allocation11 [shape = 'u8[1024]{0}', space=vmem, size = 0x400, scoped, tag = 'input window, operand 11']
    #allocation12 [shape = 'u8[16384]{0}', space=vmem, size = 0x4000, scoped, tag = 'input window, operand 12']
    #allocation13 [shape = 's32[2]{0}', space=sflag, size = 0x8, scoped, tag = 'scoped memory for tpu_custom_call.1']
    #allocation14 [shape = 'u8[1024]{0}', space=vmem, size = 0x400, scoped, tag = 'input window, operand 17']
    #allocation15 [shape = 'u8[16384]{0}', space=vmem, size = 0x4000, scoped, tag = 'output window, operand 0']
    %23 = vsyncpa [#allocation4], 0
    %24 = vsyncpa [#allocation7], 0
    %s25 = scalar_lea.sflag [#allocation7], 1
    %26 = vsyncpa %s25, 0
    %27 = vsyncpa [#allocation10], 0
    %s28 = scalar_lea.sflag [#allocation10], 1
    %29 = vsyncpa %s28, 0
    %30 = vsyncpa [#allocation13], 0
    %s31 = scalar_lea.sflag [#allocation13], 1
    %32 = vsyncpa %s31, 0
    %33 = vsyncpa [#allocation5], 0
    %s34 = scalar_lea.sflag [#allocation5], 1
    %35 = vsyncpa %s34, 0
    loop: start=0, step=1, limit=6
    $region2: #{tpu_custom_call.1} parent=1 // loop_pre_header
      _
    $region3: #{tpu_custom_call.1} parent=1 // loop_header
      %s37 = sphi 0, %s41
      %p38 = scmp.ge.s32.totalorder %s37, 6
      %s44 = sphi 0, %s56
      %s45 = sphi 0, %s52
      %s46 = sphi 0, %s44
      %s47 = sphi 0, %s45
      %s48 = sphi 0, %s46
      %s49 = sphi 0, %s47
      %s59 = sphi 0, %s61
      %s62 = sphi 0, %s59
      %s63 = sphi 0, %s62
      %s79 = sphi 0, %s63
      %s83 = sphi 0, %s83
      %s85 = sphi 0, %s83
      %s86 = sphi 0, %s85
      %s100 = sphi 0, %s86
      %s106 = sphi 0, %s108
      %s109 = sphi 0, %s106
      %s110 = sphi 0, %s109
      %s126 = sphi 0, %s110
      %s132 = sphi 0, %s134
      %s135 = sphi 0, %s132
      %s136 = sphi 0, %s135
      %s152 = sphi 0, %s136
      %s158 = sphi 0, %s160
      %s161 = sphi 0, %s158
      %s162 = sphi 0, %s161
      %s178 = sphi 0, %s162
      %s184 = sphi 0, %s186
      %s187 = sphi 0, %s184
      %s188 = sphi 0, %s187
      %s204 = sphi 0, %s188
      %s210 = sphi 0, %s212
      %s213 = sphi 0, %s210
      %s214 = sphi 0, %s213
      %s230 = sphi 0, %s214
      %s236 = sphi 0, %s238
      %s239 = sphi 0, %s236
      %s240 = sphi 0, %s239
      %s256 = sphi 0, %s240
      %s262 = sphi 0, %s264
      %s265 = sphi 0, %s262
      %s266 = sphi 0, %s265
      %s282 = sphi 0, %s266
      %s288 = sphi 0, %s290
      %s291 = sphi 0, %s288
      %s292 = sphi 0, %s291
      %s308 = sphi 0, %s292
      %s314 = sphi 0, %s316
      %s317 = sphi 0, %s314
      %s318 = sphi 0, %s317
      %s334 = sphi 0, %s318
      %s340 = sphi 0, %s342
      %s343 = sphi 0, %s340
      %s344 = sphi 0, %s343
      %s360 = sphi 0, %s344
      %s366 = sphi 0, %s368
      %s369 = sphi 0, %s366
      %s370 = sphi 0, %s369
      %s386 = sphi 0, %s370
      %s392 = sphi 0, %s394
      %s395 = sphi 0, %s392
      %s396 = sphi 0, %s395
      %s412 = sphi 0, %s396
      %s418 = sphi 0, %s420
      %s421 = sphi 0, %s418
      %s422 = sphi 0, %s421
      %s438 = sphi 0, %s422
      %s444 = sphi 0, %s446
      %s447 = sphi 0, %s444
      %s448 = sphi 0, %s447
      %s464 = sphi 0, %s448
      %s470 = sphi 0, %s472
      %s473 = sphi 0, %s470
      %s474 = sphi 0, %s473
      %s490 = sphi 0, %s474
      %s496 = sphi 0, %s498
      %s499 = sphi 0, %s496
      %s500 = sphi 0, %s499
      %s516 = sphi 0, %s500
      %s522 = sphi 0, %s524
      %s525 = sphi 0, %s522
      %s526 = sphi 0, %s525
      %s542 = sphi 0, %s526
    $region4: #{tpu_custom_call.1} parent=1 // loop_header_branch
      %40 = sbr.rel (%p38) target = $region8
    $region5: #{tpu_custom_call.1} parent=1 // loop_body
      %s42 = ssub.s32 %s37, 1
      %s43 = ssub.s32 %s37, 2
      %s50 = sadd.s32 1, %s45
      %p51 = scmp.ge.s32.totalorder %s50, 2
      %s52 = scalar_select %p51, 0, %s50
      %s53 = sadd.s32 1, %s44
      %s54 = scalar_select %p51, %s53, %s44
      %p55 = scmp.ge.s32.totalorder %s54, 2
      %s56 = scalar_select %p55, 0, %s54
      %s57 = ssub.s32 %s44, %s56
      %p58 = scmp.eq.s32.totalorder %s57, 0
      %s60 = sadd.s32 %s59, 1
      %s61 = scalar_select %p58, %s59, %s60
      %p64 = pneg %p58
      %p65 = scmp.eq.s32.totalorder %s37, 3
      %p66 = por %p64, %p65
      %p67 = scmp.ne.s32.totalorder %s59, %s62
      %p68 = scmp.eq.s32.totalorder %s37, 0
      %p69 = por %p67, %p68
      %p70 = scmp.ne.s32.totalorder %s59, %s62
      %p71 = scmp.eq.s32.totalorder %s42, 3
      %p72 = por %p70, %p71
      %p73 = scmp.ne.s32.totalorder %s62, %s63
      %p74 = scmp.eq.s32.totalorder %s42, 0
      %p75 = por %p73, %p74
      %p76 = scmp.ne.s32.totalorder %s62, %s63
      %p77 = scmp.eq.s32.totalorder %s43, 3
      %p78 = por %p76, %p77
      %p80 = scmp.ne.s32.totalorder %s63, %s79
      %p81 = scmp.eq.s32.totalorder %s43, 0
      %p82 = por %p80, %p81
      %s84 = sadd.s32 %s83, 1
      %p87 = scmp.eq.s32.totalorder %s37, 3
      %p88 = scmp.ne.s32.totalorder %s83, %s85
      %p89 = scmp.eq.s32.totalorder %s37, 0
      %p90 = por %p88, %p89
      %p91 = scmp.ne.s32.totalorder %s83, %s85
      %p92 = scmp.eq.s32.totalorder %s42, 3
      %p93 = por %p91, %p92
      %p94 = scmp.ne.s32.totalorder %s85, %s86
      %p95 = scmp.eq.s32.totalorder %s42, 0
      %p96 = por %p94, %p95
      %p97 = scmp.ne.s32.totalorder %s85, %s86
      %p98 = scmp.eq.s32.totalorder %s43, 3
      %p99 = por %p97, %p98
      %p101 = scmp.ne.s32.totalorder %s86, %s100
      %p102 = scmp.eq.s32.totalorder %s43, 0
      %p103 = por %p101, %p102
      %s104 = ssub.s32 %s45, %s52
      %p105 = scmp.eq.s32.totalorder %s104, 0
      %s107 = sadd.s32 %s106, 1
      %s108 = scalar_select %p105, %s106, %s107
      %p111 = pneg %p105
      %p112 = scmp.eq.s32.totalorder %s37, 3
      %p113 = por %p111, %p112
      %p114 = scmp.ne.s32.totalorder %s106, %s109
      %p115 = scmp.eq.s32.totalorder %s37, 0
      %p116 = por %p114, %p115
      %p117 = scmp.ne.s32.totalorder %s106, %s109
      %p118 = scmp.eq.s32.totalorder %s42, 3
      %p119 = por %p117, %p118
      %p120 = scmp.ne.s32.totalorder %s109, %s110
      %p121 = scmp.eq.s32.totalorder %s42, 0
      %p122 = por %p120, %p121
      %p123 = scmp.ne.s32.totalorder %s109, %s110
      %p124 = scmp.eq.s32.totalorder %s43, 3
      %p125 = por %p123, %p124
      %p127 = scmp.ne.s32.totalorder %s110, %s126
      %p128 = scmp.eq.s32.totalorder %s43, 0
      %p129 = por %p127, %p128
      %s130 = ssub.s32 %s45, %s52
      %p131 = scmp.eq.s32.totalorder %s130, 0
      %s133 = sadd.s32 %s132, 1
      %s134 = scalar_select %p131, %s132, %s133
      %p137 = pneg %p131
      %p138 = scmp.eq.s32.totalorder %s37, 3
      %p139 = por %p137, %p138
      %p140 = scmp.ne.s32.totalorder %s132, %s135
      %p141 = scmp.eq.s32.totalorder %s37, 0
      %p142 = por %p140, %p141
      %p143 = scmp.ne.s32.totalorder %s132, %s135
      %p144 = scmp.eq.s32.totalorder %s42, 3
      %p145 = por %p143, %p144
      %p146 = scmp.ne.s32.totalorder %s135, %s136
      %p147 = scmp.eq.s32.totalorder %s42, 0
      %p148 = por %p146, %p147
      %p149 = scmp.ne.s32.totalorder %s135, %s136
      %p150 = scmp.eq.s32.totalorder %s43, 3
      %p151 = por %p149, %p150
      %p153 = scmp.ne.s32.totalorder %s136, %s152
      %p154 = scmp.eq.s32.totalorder %s43, 0
      %p155 = por %p153, %p154
      %s156 = ssub.s32 %s45, %s52
      %p157 = scmp.eq.s32.totalorder %s156, 0
      %s159 = sadd.s32 %s158, 1
      %s160 = scalar_select %p157, %s158, %s159
      %p163 = pneg %p157
      %p164 = scmp.eq.s32.totalorder %s37, 3
      %p165 = por %p163, %p164
      %p166 = scmp.ne.s32.totalorder %s158, %s161
      %p167 = scmp.eq.s32.totalorder %s37, 0
      %p168 = por %p166, %p167
      %p169 = scmp.ne.s32.totalorder %s158, %s161
      %p170 = scmp.eq.s32.totalorder %s42, 3
      %p171 = por %p169, %p170
      %p172 = scmp.ne.s32.totalorder %s161, %s162
      %p173 = scmp.eq.s32.totalorder %s42, 0
      %p174 = por %p172, %p173
      %p175 = scmp.ne.s32.totalorder %s161, %s162
      %p176 = scmp.eq.s32.totalorder %s43, 3
      %p177 = por %p175, %p176
      %p179 = scmp.ne.s32.totalorder %s162, %s178
      %p180 = scmp.eq.s32.totalorder %s43, 0
      %p181 = por %p179, %p180
      %s182 = ssub.s32 %s45, %s52
      %p183 = scmp.eq.s32.totalorder %s182, 0
      %s185 = sadd.s32 %s184, 1
      %s186 = scalar_select %p183, %s184, %s185
      %p189 = pneg %p183
      %p190 = scmp.eq.s32.totalorder %s37, 3
      %p191 = por %p189, %p190
      %p192 = scmp.ne.s32.totalorder %s184, %s187
      %p193 = scmp.eq.s32.totalorder %s37, 0
      %p194 = por %p192, %p193
      %p195 = scmp.ne.s32.totalorder %s184, %s187
      %p196 = scmp.eq.s32.totalorder %s42, 3
      %p197 = por %p195, %p196
      %p198 = scmp.ne.s32.totalorder %s187, %s188
      %p199 = scmp.eq.s32.totalorder %s42, 0
      %p200 = por %p198, %p199
      %p201 = scmp.ne.s32.totalorder %s187, %s188
      %p202 = scmp.eq.s32.totalorder %s43, 3
      %p203 = por %p201, %p202
      %p205 = scmp.ne.s32.totalorder %s188, %s204
      %p206 = scmp.eq.s32.totalorder %s43, 0
      %p207 = por %p205, %p206
      %s208 = ssub.s32 %s45, %s52
      %p209 = scmp.eq.s32.totalorder %s208, 0
      %s211 = sadd.s32 %s210, 1
      %s212 = scalar_select %p209, %s210, %s211
      %p215 = pneg %p209
      %p216 = scmp.eq.s32.totalorder %s37, 3
      %p217 = por %p215, %p216
      %p218 = scmp.ne.s32.totalorder %s210, %s213
      %p219 = scmp.eq.s32.totalorder %s37, 0
      %p220 = por %p218, %p219
      %p221 = scmp.ne.s32.totalorder %s210, %s213
      %p222 = scmp.eq.s32.totalorder %s42, 3
      %p223 = por %p221, %p222
      %p224 = scmp.ne.s32.totalorder %s213, %s214
      %p225 = scmp.eq.s32.totalorder %s42, 0
      %p226 = por %p224, %p225
      %p227 = scmp.ne.s32.totalorder %s213, %s214
      %p228 = scmp.eq.s32.totalorder %s43, 3
      %p229 = por %p227, %p228
      %p231 = scmp.ne.s32.totalorder %s214, %s230
      %p232 = scmp.eq.s32.totalorder %s43, 0
      %p233 = por %p231, %p232
      %s234 = ssub.s32 %s45, %s52
      %p235 = scmp.eq.s32.totalorder %s234, 0
      %s237 = sadd.s32 %s236, 1
      %s238 = scalar_select %p235, %s236, %s237
      %p241 = pneg %p235
      %p242 = scmp.eq.s32.totalorder %s37, 3
      %p243 = por %p241, %p242
      %p244 = scmp.ne.s32.totalorder %s236, %s239
      %p245 = scmp.eq.s32.totalorder %s37, 0
      %p246 = por %p244, %p245
      %p247 = scmp.ne.s32.totalorder %s236, %s239
      %p248 = scmp.eq.s32.totalorder %s42, 3
      %p249 = por %p247, %p248
      %p250 = scmp.ne.s32.totalorder %s239, %s240
      %p251 = scmp.eq.s32.totalorder %s42, 0
      %p252 = por %p250, %p251
      %p253 = scmp.ne.s32.totalorder %s239, %s240
      %p254 = scmp.eq.s32.totalorder %s43, 3
      %p255 = por %p253, %p254
      %p257 = scmp.ne.s32.totalorder %s240, %s256
      %p258 = scmp.eq.s32.totalorder %s43, 0
      %p259 = por %p257, %p258
      %s260 = ssub.s32 %s45, %s52
      %p261 = scmp.eq.s32.totalorder %s260, 0
      %s263 = sadd.s32 %s262, 1
      %s264 = scalar_select %p261, %s262, %s263
      %p267 = pneg %p261
      %p268 = scmp.eq.s32.totalorder %s37, 3
      %p269 = por %p267, %p268
      %p270 = scmp.ne.s32.totalorder %s262, %s265
      %p271 = scmp.eq.s32.totalorder %s37, 0
      %p272 = por %p270, %p271
      %p273 = scmp.ne.s32.totalorder %s262, %s265
      %p274 = scmp.eq.s32.totalorder %s42, 3
      %p275 = por %p273, %p274
      %p276 = scmp.ne.s32.totalorder %s265, %s266
      %p277 = scmp.eq.s32.totalorder %s42, 0
      %p278 = por %p276, %p277
      %p279 = scmp.ne.s32.totalorder %s265, %s266
      %p280 = scmp.eq.s32.totalorder %s43, 3
      %p281 = por %p279, %p280
      %p283 = scmp.ne.s32.totalorder %s266, %s282
      %p284 = scmp.eq.s32.totalorder %s43, 0
      %p285 = por %p283, %p284
      %s286 = ssub.s32 %s45, %s52
      %p287 = scmp.eq.s32.totalorder %s286, 0
      %s289 = sadd.s32 %s288, 1
      %s290 = scalar_select %p287, %s288, %s289
      %p293 = pneg %p287
      %p294 = scmp.eq.s32.totalorder %s37, 3
      %p295 = por %p293, %p294
      %p296 = scmp.ne.s32.totalorder %s288, %s291
      %p297 = scmp.eq.s32.totalorder %s37, 0
      %p298 = por %p296, %p297
      %p299 = scmp.ne.s32.totalorder %s288, %s291
      %p300 = scmp.eq.s32.totalorder %s42, 3
      %p301 = por %p299, %p300
      %p302 = scmp.ne.s32.totalorder %s291, %s292
      %p303 = scmp.eq.s32.totalorder %s42, 0
      %p304 = por %p302, %p303
      %p305 = scmp.ne.s32.totalorder %s291, %s292
      %p306 = scmp.eq.s32.totalorder %s43, 3
      %p307 = por %p305, %p306
      %p309 = scmp.ne.s32.totalorder %s292, %s308
      %p310 = scmp.eq.s32.totalorder %s43, 0
      %p311 = por %p309, %p310
      %s312 = ssub.s32 %s45, %s52
      %p313 = scmp.eq.s32.totalorder %s312, 0
      %s315 = sadd.s32 %s314, 1
      %s316 = scalar_select %p313, %s314, %s315
      %p319 = pneg %p313
      %p320 = scmp.eq.s32.totalorder %s37, 3
      %p321 = por %p319, %p320
      %p322 = scmp.ne.s32.totalorder %s314, %s317
      %p323 = scmp.eq.s32.totalorder %s37, 0
      %p324 = por %p322, %p323
      %p325 = scmp.ne.s32.totalorder %s314, %s317
      %p326 = scmp.eq.s32.totalorder %s42, 3
      %p327 = por %p325, %p326
      %p328 = scmp.ne.s32.totalorder %s317, %s318
      %p329 = scmp.eq.s32.totalorder %s42, 0
      %p330 = por %p328, %p329
      %p331 = scmp.ne.s32.totalorder %s317, %s318
      %p332 = scmp.eq.s32.totalorder %s43, 3
      %p333 = por %p331, %p332
      %p335 = scmp.ne.s32.totalorder %s318, %s334
      %p336 = scmp.eq.s32.totalorder %s43, 0
      %p337 = por %p335, %p336
      %s338 = ssub.s32 %s45, %s52
      %p339 = scmp.eq.s32.totalorder %s338, 0
      %s341 = sadd.s32 %s340, 1
      %s342 = scalar_select %p339, %s340, %s341
      %p345 = pneg %p339
      %p346 = scmp.eq.s32.totalorder %s37, 3
      %p347 = por %p345, %p346
      %p348 = scmp.ne.s32.totalorder %s340, %s343
      %p349 = scmp.eq.s32.totalorder %s37, 0
      %p350 = por %p348, %p349
      %p351 = scmp.ne.s32.totalorder %s340, %s343
      %p352 = scmp.eq.s32.totalorder %s42, 3
      %p353 = por %p351, %p352
      %p354 = scmp.ne.s32.totalorder %s343, %s344
      %p355 = scmp.eq.s32.totalorder %s42, 0
      %p356 = por %p354, %p355
      %p357 = scmp.ne.s32.totalorder %s343, %s344
      %p358 = scmp.eq.s32.totalorder %s43, 3
      %p359 = por %p357, %p358
      %p361 = scmp.ne.s32.totalorder %s344, %s360
      %p362 = scmp.eq.s32.totalorder %s43, 0
      %p363 = por %p361, %p362
      %s364 = ssub.s32 %s45, %s52
      %p365 = scmp.eq.s32.totalorder %s364, 0
      %s367 = sadd.s32 %s366, 1
      %s368 = scalar_select %p365, %s366, %s367
      %p371 = pneg %p365
      %p372 = scmp.eq.s32.totalorder %s37, 3
      %p373 = por %p371, %p372
      %p374 = scmp.ne.s32.totalorder %s366, %s369
      %p375 = scmp.eq.s32.totalorder %s37, 0
      %p376 = por %p374, %p375
      %p377 = scmp.ne.s32.totalorder %s366, %s369
      %p378 = scmp.eq.s32.totalorder %s42, 3
      %p379 = por %p377, %p378
      %p380 = scmp.ne.s32.totalorder %s369, %s370
      %p381 = scmp.eq.s32.totalorder %s42, 0
      %p382 = por %p380, %p381
      %p383 = scmp.ne.s32.totalorder %s369, %s370
      %p384 = scmp.eq.s32.totalorder %s43, 3
      %p385 = por %p383, %p384
      %p387 = scmp.ne.s32.totalorder %s370, %s386
      %p388 = scmp.eq.s32.totalorder %s43, 0
      %p389 = por %p387, %p388
      %s390 = ssub.s32 %s45, %s52
      %p391 = scmp.eq.s32.totalorder %s390, 0
      %s393 = sadd.s32 %s392, 1
      %s394 = scalar_select %p391, %s392, %s393
      %p397 = pneg %p391
      %p398 = scmp.eq.s32.totalorder %s37, 3
      %p399 = por %p397, %p398
      %p400 = scmp.ne.s32.totalorder %s392, %s395
      %p401 = scmp.eq.s32.totalorder %s37, 0
      %p402 = por %p400, %p401
      %p403 = scmp.ne.s32.totalorder %s392, %s395
      %p404 = scmp.eq.s32.totalorder %s42, 3
      %p405 = por %p403, %p404
      %p406 = scmp.ne.s32.totalorder %s395, %s396
      %p407 = scmp.eq.s32.totalorder %s42, 0
      %p408 = por %p406, %p407
      %p409 = scmp.ne.s32.totalorder %s395, %s396
      %p410 = scmp.eq.s32.totalorder %s43, 3
      %p411 = por %p409, %p410
      %p413 = scmp.ne.s32.totalorder %s396, %s412
      %p414 = scmp.eq.s32.totalorder %s43, 0
      %p415 = por %p413, %p414
      %s416 = ssub.s32 %s45, %s52
      %p417 = scmp.eq.s32.totalorder %s416, 0
      %s419 = sadd.s32 %s418, 1
      %s420 = scalar_select %p417, %s418, %s419
      %p423 = pneg %p417
      %p424 = scmp.eq.s32.totalorder %s37, 3
      %p425 = por %p423, %p424
      %p426 = scmp.ne.s32.totalorder %s418, %s421
      %p427 = scmp.eq.s32.totalorder %s37, 0
      %p428 = por %p426, %p427
      %p429 = scmp.ne.s32.totalorder %s418, %s421
      %p430 = scmp.eq.s32.totalorder %s42, 3
      %p431 = por %p429, %p430
      %p432 = scmp.ne.s32.totalorder %s421, %s422
      %p433 = scmp.eq.s32.totalorder %s42, 0
      %p434 = por %p432, %p433
      %p435 = scmp.ne.s32.totalorder %s421, %s422
      %p436 = scmp.eq.s32.totalorder %s43, 3
      %p437 = por %p435, %p436
      %p439 = scmp.ne.s32.totalorder %s422, %s438
      %p440 = scmp.eq.s32.totalorder %s43, 0
      %p441 = por %p439, %p440
      %s442 = ssub.s32 %s45, %s52
      %p443 = scmp.eq.s32.totalorder %s442, 0
      %s445 = sadd.s32 %s444, 1
      %s446 = scalar_select %p443, %s444, %s445
      %p449 = pneg %p443
      %p450 = scmp.eq.s32.totalorder %s37, 3
      %p451 = por %p449, %p450
      %p452 = scmp.ne.s32.totalorder %s444, %s447
      %p453 = scmp.eq.s32.totalorder %s37, 0
      %p454 = por %p452, %p453
      %p455 = scmp.ne.s32.totalorder %s444, %s447
      %p456 = scmp.eq.s32.totalorder %s42, 3
      %p457 = por %p455, %p456
      %p458 = scmp.ne.s32.totalorder %s447, %s448
      %p459 = scmp.eq.s32.totalorder %s42, 0
      %p460 = por %p458, %p459
      %p461 = scmp.ne.s32.totalorder %s447, %s448
      %p462 = scmp.eq.s32.totalorder %s43, 3
      %p463 = por %p461, %p462
      %p465 = scmp.ne.s32.totalorder %s448, %s464
      %p466 = scmp.eq.s32.totalorder %s43, 0
      %p467 = por %p465, %p466
      %s468 = ssub.s32 %s45, %s52
      %p469 = scmp.eq.s32.totalorder %s468, 0
      %s471 = sadd.s32 %s470, 1
      %s472 = scalar_select %p469, %s470, %s471
      %p475 = pneg %p469
      %p476 = scmp.eq.s32.totalorder %s37, 3
      %p477 = por %p475, %p476
      %p478 = scmp.ne.s32.totalorder %s470, %s473
      %p479 = scmp.eq.s32.totalorder %s37, 0
      %p480 = por %p478, %p479
      %p481 = scmp.ne.s32.totalorder %s470, %s473
      %p482 = scmp.eq.s32.totalorder %s42, 3
      %p483 = por %p481, %p482
      %p484 = scmp.ne.s32.totalorder %s473, %s474
      %p485 = scmp.eq.s32.totalorder %s42, 0
      %p486 = por %p484, %p485
      %p487 = scmp.ne.s32.totalorder %s473, %s474
      %p488 = scmp.eq.s32.totalorder %s43, 3
      %p489 = por %p487, %p488
      %p491 = scmp.ne.s32.totalorder %s474, %s490
      %p492 = scmp.eq.s32.totalorder %s43, 0
      %p493 = por %p491, %p492
      %s494 = ssub.s32 %s45, %s52
      %p495 = scmp.eq.s32.totalorder %s494, 0
      %s497 = sadd.s32 %s496, 1
      %s498 = scalar_select %p495, %s496, %s497
      %p501 = pneg %p495
      %p502 = scmp.eq.s32.totalorder %s37, 3
      %p503 = por %p501, %p502
      %p504 = scmp.ne.s32.totalorder %s496, %s499
      %p505 = scmp.eq.s32.totalorder %s37, 0
      %p506 = por %p504, %p505
      %p507 = scmp.ne.s32.totalorder %s496, %s499
      %p508 = scmp.eq.s32.totalorder %s42, 3
      %p509 = por %p507, %p508
      %p510 = scmp.ne.s32.totalorder %s499, %s500
      %p511 = scmp.eq.s32.totalorder %s42, 0
      %p512 = por %p510, %p511
      %p513 = scmp.ne.s32.totalorder %s499, %s500
      %p514 = scmp.eq.s32.totalorder %s43, 3
      %p515 = por %p513, %p514
      %p517 = scmp.ne.s32.totalorder %s500, %s516
      %p518 = scmp.eq.s32.totalorder %s43, 0
      %p519 = por %p517, %p518
      %s520 = ssub.s32 %s44, %s56
      %p521 = scmp.eq.s32.totalorder %s520, 0
      %s523 = sadd.s32 %s522, 1
      %s524 = scalar_select %p521, %s522, %s523
      %p527 = pneg %p521
      %p528 = scmp.eq.s32.totalorder %s37, 3
      %p529 = por %p527, %p528
      %p530 = scmp.ne.s32.totalorder %s522, %s525
      %p531 = scmp.eq.s32.totalorder %s37, 0
      %p532 = por %p530, %p531
      %p533 = scmp.ne.s32.totalorder %s522, %s525
      %p534 = scmp.eq.s32.totalorder %s42, 3
      %p535 = por %p533, %p534
      %p536 = scmp.ne.s32.totalorder %s525, %s526
      %p537 = scmp.eq.s32.totalorder %s42, 0
      %p538 = por %p536, %p537
      %p539 = scmp.ne.s32.totalorder %s525, %s526
      %p540 = scmp.eq.s32.totalorder %s43, 3
      %p541 = por %p539, %p540
      %p543 = scmp.ne.s32.totalorder %s526, %s542
      %p544 = scmp.eq.s32.totalorder %s43, 0
      %p545 = por %p543, %p544
      %p546 = scmp.le.s32.totalorder 1, %s37
      %p547 = scmp.lt.s32.totalorder %s37, 5
      %p548 = pnand %p546, %p547
      %p549 = pneg %p548
      // Predicated region
      $region9: #{tpu_custom_call.1} parent=5 // pred_check
        _
      $region10: #{tpu_custom_call.1} parent=5 // pred_check_branch
        %551 = sbr.rel (%p548) target = $region12
      $region11: #{tpu_custom_call.1} parent=5 // pred_region
        %s552 = ssub.s32 %s37, 1
        // Predicated region
        $region13: #{tpu_custom_call.1} parent=11 // pred_check
          %p553 = pneg %p96
        $region14: #{tpu_custom_call.1} parent=11 // pred_check_branch
          %555 = sbr.rel (%p553) target = $region16
        $region15: #{tpu_custom_call.1} parent=11 // pred_region
          %557 = vsyncadd [#allocation4], 0
          %s558 = sshll.u32 %s1, 4
          %s559 = int_to_ptr.hbm [resolvable:$true] %s558
          %s560 = sshll.u32 [#allocation3], 4
          %s561 = int_to_ptr.vmem [resolvable:$true] %s560
          %566 = dma.hbm_to_vmem [thread:$0]  %s559, 256, %s561, [#allocation4], 128, 128, 8
        $region16: #{tpu_custom_call.1} parent=11 // pred_fallthru
          _
      $region12: #{tpu_custom_call.1} parent=5 // pred_fallthru
        _
      %p567 = scmp.lt.s32.totalorder %s37, 4
      // Predicated region
      $region17: #{tpu_custom_call.1} parent=5 // pred_check
        %p568 = pneg %p567
      $region18: #{tpu_custom_call.1} parent=5 // pred_check_branch
        %570 = sbr.rel (%p568) target = $region20
      $region19: #{tpu_custom_call.1} parent=5 // pred_region
        // Predicated region
        $region21: #{tpu_custom_call.1} parent=19 // pred_check
          %p571 = pneg %p69
        $region22: #{tpu_custom_call.1} parent=19 // pred_check_branch
          %573 = sbr.rel (%p571) target = $region24
        $region23: #{tpu_custom_call.1} parent=19 // pred_region
          %p574 = scmp.lt.s32.totalorder %s44, 1
          %s575 = scalar_select %p574, %s44, 1
          %s576 = smul.addr %s575, 2
          %s577 = smul.addr %s576, 8
          %s578 = scalar_lea.vmem %s0, %s577
        $region24: #{tpu_custom_call.1} parent=19 // pred_fallthru
          _
        // Predicated region
        $region25: #{tpu_custom_call.1} parent=19 // pred_check
          %p579 = pneg %p116
        $region26: #{tpu_custom_call.1} parent=19 // pred_check_branch
          %581 = sbr.rel (%p579) target = $region28
        $region27: #{tpu_custom_call.1} parent=19 // pred_region
          %p582 = scmp.lt.s32.totalorder %s45, 1
          %s583 = scalar_select %p582, %s45, 1
          %s584 = smul.addr %s583, 4
          %s585 = smul.addr %s584, 4
          %s586 = scalar_lea.vmem %s2, %s585
        $region28: #{tpu_custom_call.1} parent=19 // pred_fallthru
          _
        // Predicated region
        $region29: #{tpu_custom_call.1} parent=19 // pred_check
          %p587 = pneg %p142
        $region30: #{tpu_custom_call.1} parent=19 // pred_check_branch
          %589 = sbr.rel (%p587) target = $region32
        $region31: #{tpu_custom_call.1} parent=19 // pred_region
          %p590 = scmp.lt.s32.totalorder %s45, 1
          %s591 = scalar_select %p590, %s45, 1
          %s592 = smul.addr %s591, 4
          %s593 = smul.addr %s592, 4
          %s594 = scalar_lea.vmem %s3, %s593
        $region32: #{tpu_custom_call.1} parent=19 // pred_fallthru
          _
        // Predicated region
        $region33: #{tpu_custom_call.1} parent=19 // pred_check
          %p595 = pneg %p168
        $region34: #{tpu_custom_call.1} parent=19 // pred_check_branch
          %597 = sbr.rel (%p595) target = $region36
        $region35: #{tpu_custom_call.1} parent=19 // pred_region
          %s598 = sand.u32 %s37, 1
          %s599 = scalar_lea.sflag [#allocation7], %s598
          %s600 = sand.u32 %s158, 1
          %s601 = smul.addr %s600, 16
          %s602 = scalar_lea.vmem [#allocation6], %s601
          %604 = vsyncadd %s599, 0
          %s605 = smul.addr %s45, 4
          %s606 = smul.addr %s605, 4
          %s607 = scalar_lea.hbm %s4, %s606
          %s608 = sshll.u32 %s607, 4
          %s609 = int_to_ptr.hbm [resolvable:$true] %s608
          %s610 = sshll.u32 %s602, 4
          %s611 = int_to_ptr.vmem [resolvable:$true] %s610
          %616 = dma.hbm_to_vmem [thread:$0]  %s609, 256, %s611, %s599, 64, 64, 4
        $region36: #{tpu_custom_call.1} parent=19 // pred_fallthru
          _
        // Predicated region
        $region37: #{tpu_custom_call.1} parent=19 // pred_check
          %p617 = pneg %p194
        $region38: #{tpu_custom_call.1} parent=19 // pred_check_branch
          %619 = sbr.rel (%p617) target = $region40
        $region39: #{tpu_custom_call.1} parent=19 // pred_region
          %p620 = scmp.lt.s32.totalorder %s45, 1
          %s621 = scalar_select %p620, %s45, 1
          %s622 = scalar_lea.vmem %s5, %s621
        $region40: #{tpu_custom_call.1} parent=19 // pred_fallthru
          _
        // Predicated region
        $region41: #{tpu_custom_call.1} parent=19 // pred_check
          %p623 = pneg %p220
        $region42: #{tpu_custom_call.1} parent=19 // pred_check_branch
          %625 = sbr.rel (%p623) target = $region44
        $region43: #{tpu_custom_call.1} parent=19 // pred_region
          %p626 = scmp.lt.s32.totalorder %s45, 1
          %s627 = scalar_select %p626, %s45, 1
          %s628 = scalar_lea.vmem %s6, %s627
        $region44: #{tpu_custom_call.1} parent=19 // pred_fallthru
          _
        // Predicated region
        $region45: #{tpu_custom_call.1} parent=19 // pred_check
          %p629 = pneg %p246
        $region46: #{tpu_custom_call.1} parent=19 // pred_check_branch
          %631 = sbr.rel (%p629) target = $region48
        $region47: #{tpu_custom_call.1} parent=19 // pred_region
          %s632 = sand.u32 %s37, 1
          %s633 = scalar_lea.sflag [#allocation7], %s632
          %s634 = sand.u32 %s236, 1
          %s635 = scalar_lea.vmem [#allocation8], %s634
          %637 = vsyncadd %s633, 0
          %s638 = scalar_lea.hbm %s7, %s45
          %s640 = sshll.u32 %s638, 4
          %s641 = int_to_ptr.hbm [resolvable:$true] %s640
          %s642 = sshll.u32 %s635, 4
          %s643 = int_to_ptr.vmem [resolvable:$true] %s642
          %645 = dma.hbm_to_vmem [thread:$0]  %s641, 16, %s643, %s633
        $region48: #{tpu_custom_call.1} parent=19 // pred_fallthru
          _
        // Predicated region
        $region49: #{tpu_custom_call.1} parent=19 // pred_check
          %p646 = pneg %p272
        $region50: #{tpu_custom_call.1} parent=19 // pred_check_branch
          %648 = sbr.rel (%p646) target = $region52
        $region51: #{tpu_custom_call.1} parent=19 // pred_region
          %s649 = sand.u32 %s37, 1
          %s650 = scalar_lea.sflag [#allocation10], %s649
          %s651 = sand.u32 %s262, 1
          %s652 = smul.addr %s651, 16
          %s653 = scalar_lea.vmem [#allocation9], %s652
          %655 = vsyncadd %s650, 0
          %s656 = smul.addr %s45, 4
          %s657 = smul.addr %s656, 4
          %s658 = scalar_lea.hbm %s8, %s657
          %s659 = sshll.u32 %s658, 4
          %s660 = int_to_ptr.hbm [resolvable:$true] %s659
          %s661 = sshll.u32 %s653, 4
          %s662 = int_to_ptr.vmem [resolvable:$true] %s661
          %667 = dma.hbm_to_vmem [thread:$0]  %s660, 256, %s662, %s650, 64, 64, 4
        $region52: #{tpu_custom_call.1} parent=19 // pred_fallthru
          _
        // Predicated region
        $region53: #{tpu_custom_call.1} parent=19 // pred_check
          %p668 = pneg %p298
        $region54: #{tpu_custom_call.1} parent=19 // pred_check_branch
          %670 = sbr.rel (%p668) target = $region56
        $region55: #{tpu_custom_call.1} parent=19 // pred_region
          %p671 = scmp.lt.s32.totalorder %s45, 1
          %s672 = scalar_select %p671, %s45, 1
          %s673 = scalar_lea.vmem %s9, %s672
        $region56: #{tpu_custom_call.1} parent=19 // pred_fallthru
          _
        // Predicated region
        $region57: #{tpu_custom_call.1} parent=19 // pred_check
          %p674 = pneg %p324
        $region58: #{tpu_custom_call.1} parent=19 // pred_check_branch
          %676 = sbr.rel (%p674) target = $region60
        $region59: #{tpu_custom_call.1} parent=19 // pred_region
          %p677 = scmp.lt.s32.totalorder %s45, 1
          %s678 = scalar_select %p677, %s45, 1
          %s679 = scalar_lea.vmem %s10, %s678
        $region60: #{tpu_custom_call.1} parent=19 // pred_fallthru
          _
        // Predicated region
        $region61: #{tpu_custom_call.1} parent=19 // pred_check
          %p680 = pneg %p350
        $region62: #{tpu_custom_call.1} parent=19 // pred_check_branch
          %682 = sbr.rel (%p680) target = $region64
        $region63: #{tpu_custom_call.1} parent=19 // pred_region
          %s683 = sand.u32 %s37, 1
          %s684 = scalar_lea.sflag [#allocation10], %s683
          %s685 = sand.u32 %s340, 1
          %s686 = scalar_lea.vmem [#allocation11], %s685
          %688 = vsyncadd %s684, 0
          %s689 = scalar_lea.hbm %s11, %s45
          %s691 = sshll.u32 %s689, 4
          %s692 = int_to_ptr.hbm [resolvable:$true] %s691
          %s693 = sshll.u32 %s686, 4
          %s694 = int_to_ptr.vmem [resolvable:$true] %s693
          %696 = dma.hbm_to_vmem [thread:$0]  %s692, 16, %s694, %s684
        $region64: #{tpu_custom_call.1} parent=19 // pred_fallthru
          _
        // Predicated region
        $region65: #{tpu_custom_call.1} parent=19 // pred_check
          %p697 = pneg %p376
        $region66: #{tpu_custom_call.1} parent=19 // pred_check_branch
          %699 = sbr.rel (%p697) target = $region68
        $region67: #{tpu_custom_call.1} parent=19 // pred_region
          %s700 = sand.u32 %s37, 1
          %s701 = scalar_lea.sflag [#allocation13], %s700
          %s702 = sand.u32 %s366, 1
          %s703 = smul.addr %s702, 16
          %s704 = scalar_lea.vmem [#allocation12], %s703
          %706 = vsyncadd %s701, 0
          %s707 = smul.addr %s45, 4
          %s708 = smul.addr %s707, 4
          %s709 = scalar_lea.hbm %s12, %s708
          %s710 = sshll.u32 %s709, 4
          %s711 = int_to_ptr.hbm [resolvable:$true] %s710
          %s712 = sshll.u32 %s704, 4
          %s713 = int_to_ptr.vmem [resolvable:$true] %s712
          %718 = dma.hbm_to_vmem [thread:$0]  %s711, 256, %s713, %s701, 64, 64, 4
        $region68: #{tpu_custom_call.1} parent=19 // pred_fallthru
          _
        // Predicated region
        $region69: #{tpu_custom_call.1} parent=19 // pred_check
          %p719 = pneg %p402
        $region70: #{tpu_custom_call.1} parent=19 // pred_check_branch
          %721 = sbr.rel (%p719) target = $region72
        $region71: #{tpu_custom_call.1} parent=19 // pred_region
          %p722 = scmp.lt.s32.totalorder %s45, 1
          %s723 = scalar_select %p722, %s45, 1
          %s724 = scalar_lea.vmem %s13, %s723
        $region72: #{tpu_custom_call.1} parent=19 // pred_fallthru
          _
        // Predicated region
        $region73: #{tpu_custom_call.1} parent=19 // pred_check
          %p725 = pneg %p428
        $region74: #{tpu_custom_call.1} parent=19 // pred_check_branch
          %727 = sbr.rel (%p725) target = $region76
        $region75: #{tpu_custom_call.1} parent=19 // pred_region
          %p728 = scmp.lt.s32.totalorder %s45, 1
          %s729 = scalar_select %p728, %s45, 1
          %s730 = smul.addr %s729, 8
          %s731 = smul.addr %s730, 4
          %s732 = scalar_lea.vmem %s14, %s731
        $region76: #{tpu_custom_call.1} parent=19 // pred_fallthru
          _
        // Predicated region
        $region77: #{tpu_custom_call.1} parent=19 // pred_check
          %p733 = pneg %p454
        $region78: #{tpu_custom_call.1} parent=19 // pred_check_branch
          %735 = sbr.rel (%p733) target = $region80
        $region79: #{tpu_custom_call.1} parent=19 // pred_region
          %p736 = scmp.lt.s32.totalorder %s45, 1
          %s737 = scalar_select %p736, %s45, 1
          %s738 = scalar_lea.vmem %s15, %s737
        $region80: #{tpu_custom_call.1} parent=19 // pred_fallthru
          _
        // Predicated region
        $region81: #{tpu_custom_call.1} parent=19 // pred_check
          %p739 = pneg %p480
        $region82: #{tpu_custom_call.1} parent=19 // pred_check_branch
          %741 = sbr.rel (%p739) target = $region84
        $region83: #{tpu_custom_call.1} parent=19 // pred_region
          %p742 = scmp.lt.s32.totalorder %s45, 1
          %s743 = scalar_select %p742, %s45, 1
          %s744 = scalar_lea.vmem %s16, %s743
        $region84: #{tpu_custom_call.1} parent=19 // pred_fallthru
          _
        // Predicated region
        $region85: #{tpu_custom_call.1} parent=19 // pred_check
          %p745 = pneg %p506
        $region86: #{tpu_custom_call.1} parent=19 // pred_check_branch
          %747 = sbr.rel (%p745) target = $region88
        $region87: #{tpu_custom_call.1} parent=19 // pred_region
          %s748 = sand.u32 %s37, 1
          %s749 = scalar_lea.sflag [#allocation13], %s748
          %s750 = sand.u32 %s496, 1
          %s751 = scalar_lea.vmem [#allocation14], %s750
          %753 = vsyncadd %s749, 0
          %s754 = scalar_lea.hbm %s17, %s45
          %s756 = sshll.u32 %s754, 4
          %s757 = int_to_ptr.hbm [resolvable:$true] %s756
          %s758 = sshll.u32 %s751, 4
          %s759 = int_to_ptr.vmem [resolvable:$true] %s758
          %761 = dma.hbm_to_vmem [thread:$0]  %s757, 16, %s759, %s749
        $region88: #{tpu_custom_call.1} parent=19 // pred_fallthru
          _
      $region20: #{tpu_custom_call.1} parent=5 // pred_fallthru
        _
      %p762 = scmp.le.s32.totalorder 1, %s37
      %p763 = scmp.lt.s32.totalorder %s37, 5
      %p764 = pnand %p762, %p763
      %p765 = pneg %p764
      // Predicated region
      $region89: #{tpu_custom_call.1} parent=5 // pred_check
        _
      $region90: #{tpu_custom_call.1} parent=5 // pred_check_branch
        %767 = sbr.rel (%p764) target = $region92
      $region91: #{tpu_custom_call.1} parent=5 // pred_region
        %s768 = ssub.s32 %s37, 1
        // Predicated region
        $region93: #{tpu_custom_call.1} parent=91 // pred_check
          %p769 = pneg %p96
        $region94: #{tpu_custom_call.1} parent=91 // pred_check_branch
          %771 = sbr.rel (%p769) target = $region96
        $region95: #{tpu_custom_call.1} parent=91 // pred_region
          %773 = dma.done [#allocation4], 256
        $region96: #{tpu_custom_call.1} parent=91 // pred_fallthru
          _
        %s774 = sand.u32 %s42, 1
        %s775 = scalar_lea.sflag [#allocation7], %s774
        %s776 = sand.u32 %s161, 1
        %s777 = smul.addr %s776, 16
        %s778 = scalar_lea.vmem [#allocation6], %s777
        // Predicated region
        $region97: #{tpu_custom_call.1} parent=91 // pred_check
          %p779 = pneg %p174
        $region98: #{tpu_custom_call.1} parent=91 // pred_check_branch
          %781 = sbr.rel (%p779) target = $region100
        $region99: #{tpu_custom_call.1} parent=91 // pred_region
          %783 = dma.done %s775, 256
        $region100: #{tpu_custom_call.1} parent=91 // pred_fallthru
          _
        %s784 = sand.u32 %s42, 1
        %s785 = scalar_lea.sflag [#allocation7], %s784
        %s786 = sand.u32 %s239, 1
        %s787 = scalar_lea.vmem [#allocation8], %s786
        // Predicated region
        $region101: #{tpu_custom_call.1} parent=91 // pred_check
          %p788 = pneg %p252
        $region102: #{tpu_custom_call.1} parent=91 // pred_check_branch
          %790 = sbr.rel (%p788) target = $region104
        $region103: #{tpu_custom_call.1} parent=91 // pred_region
          %792 = dma.done %s785, 16
        $region104: #{tpu_custom_call.1} parent=91 // pred_fallthru
          _
        %s793 = sand.u32 %s42, 1
        %s794 = scalar_lea.sflag [#allocation10], %s793
        %s795 = sand.u32 %s265, 1
        %s796 = smul.addr %s795, 16
        %s797 = scalar_lea.vmem [#allocation9], %s796
        // Predicated region
        $region105: #{tpu_custom_call.1} parent=91 // pred_check
          %p798 = pneg %p278
        $region106: #{tpu_custom_call.1} parent=91 // pred_check_branch
          %800 = sbr.rel (%p798) target = $region108
        $region107: #{tpu_custom_call.1} parent=91 // pred_region
          %802 = dma.done %s794, 256
        $region108: #{tpu_custom_call.1} parent=91 // pred_fallthru
          _
        %s803 = sand.u32 %s42, 1
        %s804 = scalar_lea.sflag [#allocation10], %s803
        %s805 = sand.u32 %s343, 1
        %s806 = scalar_lea.vmem [#allocation11], %s805
        // Predicated region
        $region109: #{tpu_custom_call.1} parent=91 // pred_check
          %p807 = pneg %p356
        $region110: #{tpu_custom_call.1} parent=91 // pred_check_branch
          %809 = sbr.rel (%p807) target = $region112
        $region111: #{tpu_custom_call.1} parent=91 // pred_region
          %811 = dma.done %s804, 16
        $region112: #{tpu_custom_call.1} parent=91 // pred_fallthru
          _
        %s812 = sand.u32 %s42, 1
        %s813 = scalar_lea.sflag [#allocation13], %s812
        %s814 = sand.u32 %s369, 1
        %s815 = smul.addr %s814, 16
        %s816 = scalar_lea.vmem [#allocation12], %s815
        // Predicated region
        $region113: #{tpu_custom_call.1} parent=91 // pred_check
          %p817 = pneg %p382
        $region114: #{tpu_custom_call.1} parent=91 // pred_check_branch
          %819 = sbr.rel (%p817) target = $region116
        $region115: #{tpu_custom_call.1} parent=91 // pred_region
          %821 = dma.done %s813, 256
        $region116: #{tpu_custom_call.1} parent=91 // pred_fallthru
          _
        %s822 = sand.u32 %s42, 1
        %s823 = scalar_lea.sflag [#allocation13], %s822
        %s824 = sand.u32 %s499, 1
        %s825 = scalar_lea.vmem [#allocation14], %s824
        // Predicated region
        $region117: #{tpu_custom_call.1} parent=91 // pred_check
          %p826 = pneg %p512
        $region118: #{tpu_custom_call.1} parent=91 // pred_check_branch
          %828 = sbr.rel (%p826) target = $region120
        $region119: #{tpu_custom_call.1} parent=91 // pred_region
          %830 = dma.done %s823, 16
        $region120: #{tpu_custom_call.1} parent=91 // pred_fallthru
          _
        %p831 = scmp.lt.s32.totalorder %s46, 1
        %s832 = scalar_select %p831, %s46, 1
        %s833 = smul.addr %s832, 2
        %s834 = smul.addr %s833, 8
        %s835 = scalar_lea.vmem %s0, %s834
        %p836 = pneg %p75
        %p837 = pneg %p72
        %p838 = pneg %p96
        %p839 = pneg %p93
        %p840 = scmp.lt.s32.totalorder %s47, 1
        %s841 = scalar_select %p840, %s47, 1
        %s842 = smul.addr %s841, 4
        %s843 = smul.addr %s842, 4
        %s844 = scalar_lea.vmem %s2, %s843
        %p845 = pneg %p122
        %p846 = pneg %p119
        %p847 = scmp.lt.s32.totalorder %s47, 1
        %s848 = scalar_select %p847, %s47, 1
        %s849 = smul.addr %s848, 4
        %s850 = smul.addr %s849, 4
        %s851 = scalar_lea.vmem %s3, %s850
        %p852 = pneg %p148
        %p853 = pneg %p145
        %s854 = sand.u32 %s42, 1
        %s855 = scalar_lea.sflag [#allocation7], %s854
        %s856 = sand.u32 %s161, 1
        %s857 = smul.addr %s856, 16
        %s858 = scalar_lea.vmem [#allocation6], %s857
        %p859 = pneg %p174
        %p860 = pneg %p171
        %p861 = scmp.lt.s32.totalorder %s47, 1
        %s862 = scalar_select %p861, %s47, 1
        %s863 = scalar_lea.vmem %s5, %s862
        %p864 = pneg %p200
        %p865 = pneg %p197
        %p866 = scmp.lt.s32.totalorder %s47, 1
        %s867 = scalar_select %p866, %s47, 1
        %s868 = scalar_lea.vmem %s6, %s867
        %p869 = pneg %p226
        %p870 = pneg %p223
        %s871 = sand.u32 %s42, 1
        %s872 = scalar_lea.sflag [#allocation7], %s871
        %s873 = sand.u32 %s239, 1
        %s874 = scalar_lea.vmem [#allocation8], %s873
        %p875 = pneg %p252
        %p876 = pneg %p249
        %s877 = sand.u32 %s42, 1
        %s878 = scalar_lea.sflag [#allocation10], %s877
        %s879 = sand.u32 %s265, 1
        %s880 = smul.addr %s879, 16
        %s881 = scalar_lea.vmem [#allocation9], %s880
        %p882 = pneg %p278
        %p883 = pneg %p275
        %p884 = scmp.lt.s32.totalorder %s47, 1
        %s885 = scalar_select %p884, %s47, 1
        %s886 = scalar_lea.vmem %s9, %s885
        %p887 = pneg %p304
        %p888 = pneg %p301
        %p889 = scmp.lt.s32.totalorder %s47, 1
        %s890 = scalar_select %p889, %s47, 1
        %s891 = scalar_lea.vmem %s10, %s890
        %p892 = pneg %p330
        %p893 = pneg %p327
        %s894 = sand.u32 %s42, 1
        %s895 = scalar_lea.sflag [#allocation10], %s894
        %s896 = sand.u32 %s343, 1
        %s897 = scalar_lea.vmem [#allocation11], %s896
        %p898 = pneg %p356
        %p899 = pneg %p353
        %s900 = sand.u32 %s42, 1
        %s901 = scalar_lea.sflag [#allocation13], %s900
        %s902 = sand.u32 %s369, 1
        %s903 = smul.addr %s902, 16
        %s904 = scalar_lea.vmem [#allocation12], %s903
        %p905 = pneg %p382
        %p906 = pneg %p379
        %p907 = scmp.lt.s32.totalorder %s47, 1
        %s908 = scalar_select %p907, %s47, 1
        %s909 = scalar_lea.vmem %s13, %s908
        %p910 = pneg %p408
        %p911 = pneg %p405
        %p912 = scmp.lt.s32.totalorder %s47, 1
        %s913 = scalar_select %p912, %s47, 1
        %s914 = smul.addr %s913, 8
        %s915 = smul.addr %s914, 4
        %s916 = scalar_lea.vmem %s14, %s915
        %p917 = pneg %p434
        %p918 = pneg %p431
        %p919 = scmp.lt.s32.totalorder %s47, 1
        %s920 = scalar_select %p919, %s47, 1
        %s921 = scalar_lea.vmem %s15, %s920
        %p922 = pneg %p460
        %p923 = pneg %p457
        %p924 = scmp.lt.s32.totalorder %s47, 1
        %s925 = scalar_select %p924, %s47, 1
        %s926 = scalar_lea.vmem %s16, %s925
        %p927 = pneg %p486
        %p928 = pneg %p483
        %s929 = sand.u32 %s42, 1
        %s930 = scalar_lea.sflag [#allocation13], %s929
        %s931 = sand.u32 %s499, 1
        %s932 = scalar_lea.vmem [#allocation14], %s931
        %p933 = pneg %p512
        %p934 = pneg %p509
        %p935 = pneg %p538
        %p936 = pneg %p535
        %s937 = sand.u32 %s525, 1
        %s938 = scalar_lea.sflag [#allocation5], %s937
        %s939 = sand.u32 %s525, 1
        %s940 = smul.addr %s939, 16
        %s941 = scalar_lea.vmem [#allocation15], %s940
        %p942 = scmp.lt.s32.totalorder %s46, 1
        %s943 = scalar_select %p942, %s46, 1
        %s944 = smul.addr %s943, 2
        %s945 = smul.addr %s944, 8
        %s946 = scalar_lea.vmem %s0, %s945
        %p947 = scmp.lt.s32.totalorder %s47, 1
        %s948 = scalar_select %p947, %s47, 1
        %s949 = smul.addr %s948, 4
        %s950 = smul.addr %s949, 4
        %s951 = scalar_lea.vmem %s2, %s950
        %p952 = scmp.lt.s32.totalorder %s47, 1
        %s953 = scalar_select %p952, %s47, 1
        %s954 = smul.addr %s953, 4
        %s955 = smul.addr %s954, 4
        %s956 = scalar_lea.vmem %s3, %s955
        %p957 = scmp.lt.s32.totalorder %s47, 1
        %s958 = scalar_select %p957, %s47, 1
        %s959 = scalar_lea.vmem %s5, %s958
        %p960 = scmp.lt.s32.totalorder %s47, 1
        %s961 = scalar_select %p960, %s47, 1
        %s962 = scalar_lea.vmem %s6, %s961
        %p963 = scmp.lt.s32.totalorder %s47, 1
        %s964 = scalar_select %p963, %s47, 1
        %s965 = scalar_lea.vmem %s9, %s964
        %p966 = scmp.lt.s32.totalorder %s47, 1
        %s967 = scalar_select %p966, %s47, 1
        %s968 = scalar_lea.vmem %s10, %s967
        %p969 = scmp.lt.s32.totalorder %s47, 1
        %s970 = scalar_select %p969, %s47, 1
        %s971 = scalar_lea.vmem %s13, %s970
        %p972 = scmp.lt.s32.totalorder %s47, 1
        %s973 = scalar_select %p972, %s47, 1
        %s974 = smul.addr %s973, 8
        %s975 = smul.addr %s974, 4
        %s976 = scalar_lea.vmem %s14, %s975
        %p977 = scmp.lt.s32.totalorder %s47, 1
        %s978 = scalar_select %p977, %s47, 1
        %s979 = scalar_lea.vmem %s15, %s978
        %p980 = scmp.lt.s32.totalorder %s47, 1
        %s981 = scalar_select %p980, %s47, 1
        %s982 = scalar_lea.vmem %s16, %s981
        %v984 = vld [vmem:[%s951] sm:$0xf]
        %v985 = vld [vmem:[%s951 + $0x4] sm:$0xf]
        %v986 = vld [vmem:[%s951 + $0x8] sm:$0xf]
        %v987 = vld [vmem:[%s951 + $0xc] sm:$0xf]
        %v988 = vld [vmem:[%s956] sm:$0xf]
        %v989 = vld [vmem:[%s956 + $0x4] sm:$0xf]
        %v990 = vld [vmem:[%s956 + $0x8] sm:$0xf]
        %v991 = vld [vmem:[%s956 + $0xc] sm:$0xf]
        %v992 = vld [vmem:[%s778] sm:$0xf]
        %v993 = vld [vmem:[%s778 + $0x4] sm:$0xf]
        %v994 = vld [vmem:[%s778 + $0x8] sm:$0xf]
        %v995 = vld [vmem:[%s778 + $0xc] sm:$0xf]
        %v996 = vld [vmem:[%s959] sm:$0x1]
        %v997 = vld [vmem:[%s962] sm:$0x1]
        %v998 = vld [vmem:[%s787] sm:$0x1]
        %v999 = vld [vmem:[%s797] sm:$0xf]
        %v1000 = vld [vmem:[%s797 + $0x4] sm:$0xf]
        %v1001 = vld [vmem:[%s797 + $0x8] sm:$0xf]
        %v1002 = vld [vmem:[%s797 + $0xc] sm:$0xf]
        %v1003 = vld [vmem:[%s965] sm:$0x1]
        %v1004 = vld [vmem:[%s968] sm:$0x1]
        %v1005 = vld [vmem:[%s806] sm:$0x1]
        %v1006 = vld [vmem:[%s816] sm:$0xf]
        %v1007 = vld [vmem:[%s816 + $0x4] sm:$0xf]
        %v1008 = vld [vmem:[%s816 + $0x8] sm:$0xf]
        %v1009 = vld [vmem:[%s816 + $0xc] sm:$0xf]
        %v1010 = vld [vmem:[%s971] sm:$0x1]
        %v1011 = vld [vmem:[%s976] sm:$0xf]
        %v1012 = vld [vmem:[%s976 + $0x4] sm:$0xf]
        %v1013 = vld [vmem:[%s976 + $0x8] sm:$0xf]
        %v1014 = vld [vmem:[%s976 + $0xc] sm:$0xf]
        %v1015 = vld [vmem:[%s976 + $0x10] sm:$0xf]
        %v1016 = vld [vmem:[%s976 + $0x14] sm:$0xf]
        %v1017 = vld [vmem:[%s976 + $0x18] sm:$0xf]
        %v1018 = vld [vmem:[%s976 + $0x1c] sm:$0xf]
        %v1019 = vld [vmem:[%s979] sm:$0x1]
        %v1020 = vld [vmem:[%s982] sm:$0x1]
        %v1021 = vld [vmem:[%s825] sm:$0x1]
        %p1022 = scmp.eq.s32.totalorder %s47, 0
        // Predicated region
        $region121: #{tpu_custom_call.1} parent=91 // pred_check
          %p1023 = pneg %p1022
        $region122: #{tpu_custom_call.1} parent=91 // pred_check_branch
          %1025 = sbr.rel (%p1023) target = $region124
        $region123: #{tpu_custom_call.1} parent=91 // pred_region
          %v1026 = vld [vmem:[%s946] sm:$0xff]
          %v1027 = vld [vmem:[%s946 + $0x8] sm:$0xff]
          %v1028 = vld [vmem:[#allocation3] sm:$0xff]
          %v1029 = vld [vmem:[#allocation3 + $0x8] sm:$0xff]
          %v1030 = vadd.f32 %v1026, %v1028
          %v1031 = vadd.f32 %v1027, %v1029
          %vm1032 = vcmask 261120
          %1033 = vst.msk [vmem:[#allocation2] sm:$0xff] %vm1032, %v1030
          %1034 = vst.msk [vmem:[#allocation2 + $0x8] sm:$0xff] %vm1032, %v1031
        $region124: #{tpu_custom_call.1} parent=91 // pred_fallthru
          _
        %v1035 = vld [vmem:[#allocation2] sm:$0xff]
        %v1036 = vld [vmem:[#allocation2 + $0x8] sm:$0xff]
        %v1037 = vpack.c.bf16 %v1036, %v1035
        %v1039 = vperm.slane %v996, 0
        %v1045 = vunpack.c.l.b16 %v984
        %v1046 = vunpack.c.l.b16 %v985
        %v1047 = vunpack.c.l.b16 %v986
        %v1048 = vunpack.c.l.b16 %v987
        %v1049 = vpack.c.b16 %v1046, %v1045
        %v1050 = vpack.c.b16 %v1048, %v1047
        %vm1053 = vcmask 261120
        %v1055 = vsel %vm1053, %v1037, 0
        %1057 = vmatpush.bf16.msra.mxu0 0
        %1058 = vmatpush.bf16.msra.mxu0 0
        %1059 = vmatpush.bf16.msra.mxu0 0
        %1060 = vmatpush.bf16.msra.mxu0 0
        %1061 = vmatpush.bf16.msra.mxu0 0
        %1062 = vmatpush.bf16.msra.mxu0 0
        %1063 = vmatpush.bf16.msra.mxu0 %v1050
        %1064 = vmatpush.bf16.msra.mxu0 %v1049
        %1065 = vmatmul.bf16.gmra.mxu0 %v1055
        %v1066 = vpop.f32.mrf.mxu0
        %v1067 = vadd.f32 %v1039, %v1066
        %v1068 = vpop.f32.mrf.mxu0
        %v1069 = vadd.f32 %v1039, %v1068
        %1070 = vdwg.mxu0
        %v1071 = vmul.f32 %v1067, 0.35355338
        %v1072 = vmul.f32 %v1069, 0.35355338
        %v1074 = vperm.slane %v997, 0
        %v1080 = vunpack.c.l.b16 %v988
        %v1081 = vunpack.c.l.b16 %v989
        %v1082 = vunpack.c.l.b16 %v990
        %v1083 = vunpack.c.l.b16 %v991
        %v1084 = vpack.c.b16 %v1081, %v1080
        %v1085 = vpack.c.b16 %v1083, %v1082
        %1088 = vmatpush.bf16.msra.mxu0 0
        %1089 = vmatpush.bf16.msra.mxu0 0
        %1090 = vmatpush.bf16.msra.mxu0 0
        %1091 = vmatpush.bf16.msra.mxu0 0
        %1092 = vmatpush.bf16.msra.mxu0 0
        %1093 = vmatpush.bf16.msra.mxu0 0
        %1094 = vmatpush.bf16.msra.mxu0 %v1085
        %1095 = vmatpush.bf16.msra.mxu0 %v1084
        %1096 = vmatmul.bf16.gmra.mxu0 %v1055
        %v1097 = vpop.f32.mrf.mxu0
        %v1098 = vadd.f32 %v1074, %v1097
        %v1099 = vpop.f32.mrf.mxu0
        %v1100 = vadd.f32 %v1074, %v1099
        %1101 = vdwg.mxu0
        %v1103 = vperm.slane %v998, 0
        %v1109 = vunpack.c.l.b16 %v992
        %v1110 = vunpack.c.l.b16 %v993
        %v1111 = vunpack.c.l.b16 %v994
        %v1112 = vunpack.c.l.b16 %v995
        %v1113 = vpack.c.b16 %v1110, %v1109
        %v1114 = vpack.c.b16 %v1112, %v1111
        %1117 = vmatpush.bf16.msra.mxu0 0
        %1118 = vmatpush.bf16.msra.mxu0 0
        %1119 = vmatpush.bf16.msra.mxu0 0
        %1120 = vmatpush.bf16.msra.mxu0 0
        %1121 = vmatpush.bf16.msra.mxu0 0
        %1122 = vmatpush.bf16.msra.mxu0 0
        %1123 = vmatpush.bf16.msra.mxu0 %v1114
        %1124 = vmatpush.bf16.msra.mxu0 %v1113
        %1125 = vmatmul.bf16.gmra.mxu0 %v1055
        %v1126 = vpop.f32.mrf.mxu0
        %v1127 = vadd.f32 %v1103, %v1126
        %v1128 = vpop.f32.mrf.mxu0
        %v1129 = vadd.f32 %v1103, %v1128
        %1130 = vdwg.mxu0
        %1133 = vrot.lane.b32.xlu0 %v1071, 120
        %v1134 = vpop.permute.xlu0 %1133
        %1135 = vrot.lane.b32.xlu0 %v1072, 120
        %v1136 = vpop.permute.xlu0 %1135
        %1139 = vrot.lane.b32.xlu0 %v1071, 112
        %v1140 = vpop.permute.xlu0 %1139
        %1141 = vrot.lane.b32.xlu0 %v1072, 112
        %v1142 = vpop.permute.xlu0 %1141
        %1145 = vrot.lane.b32.xlu0 %v1071, 104
        %v1146 = vpop.permute.xlu0 %1145
        %1147 = vrot.lane.b32.xlu0 %v1072, 104
        %v1148 = vpop.permute.xlu0 %1147
        %v1151 = vrot.slane %v1140, 4
        %vm1152 = vcmask 1047556
        %v1153 = vsel %vm1152, %v1151, %v1071
        %v1154 = vrot.slane %v1071, 4
        %v1155 = vsel %vm1152, %v1140, %v1154
        %v1157 = vunpack.c.l.s4 1983009808
        %v1158 = vunpack.c.0.s8 %v1157
        %v1159 = vperm.slane %v1153, %v1158
        %v1161 = vunpack.c.l.s4 1983009808
        %v1162 = vunpack.c.0.s8 %v1161
        %v1163 = vperm.slane %v1155, %v1162
        %v1164 = vrot.slane %v1146, 4
        %v1165 = vsel %vm1152, %v1164, %v1134
        %v1166 = vrot.slane %v1134, 4
        %v1167 = vsel %vm1152, %v1146, %v1166
        %v1169 = vunpack.c.l.s4 1983009808
        %v1170 = vunpack.c.0.s8 %v1169
        %v1171 = vperm.slane %v1165, %v1170
        %v1173 = vunpack.c.l.s4 1983009808
        %v1174 = vunpack.c.0.s8 %v1173
        %v1175 = vperm.slane %v1167, %v1174
        %v1176 = vrot.slane %v1171, 4
        %v1177 = vsel %vm1152, %v1176, %v1159
        %v1178 = vrot.slane %v1159, 4
        %v1179 = vsel %vm1152, %v1171, %v1178
        %v1181 = vunpack.c.l.s4 1934713408
        %v1182 = vunpack.c.0.s8 %v1181
        %v1183 = vperm.slane %v1177, %v1182
        %v1185 = vunpack.c.l.s4 1934713408
        %v1186 = vunpack.c.0.s8 %v1185
        %v1187 = vperm.slane %v1179, %v1186
        %v1188 = vrot.slane %v1175, 4
        %v1189 = vsel %vm1152, %v1188, %v1163
        %v1190 = vrot.slane %v1163, 4
        %v1191 = vsel %vm1152, %v1175, %v1190
        %v1193 = vunpack.c.l.s4 1934713408
        %v1194 = vunpack.c.0.s8 %v1193
        %v1195 = vperm.slane %v1189, %v1194
        %v1197 = vunpack.c.l.s4 1934713408
        %v1198 = vunpack.c.0.s8 %v1197
        %v1199 = vperm.slane %v1191, %v1198
        %v1200 = vrot.slane %v1183, 4
        %v1201 = vsel %vm1152, 0.0, %v1200
        %v1202 = vrot.slane %v1187, 4
        %v1203 = vsel %vm1152, 0.0, %v1202
        %v1204 = vrot.slane %v1195, 4
        %v1205 = vsel %vm1152, 0.0, %v1204
        %v1206 = vrot.slane %v1199, 4
        %v1207 = vsel %vm1152, 0.0, %v1206
        %v1208 = vrot.slane %v1142, 4
        %v1209 = vsel %vm1152, %v1208, %v1072
        %v1210 = vrot.slane %v1072, 4
        %v1211 = vsel %vm1152, %v1142, %v1210
        %v1213 = vunpack.c.l.s4 1983009808
        %v1214 = vunpack.c.0.s8 %v1213
        %v1215 = vperm.slane %v1209, %v1214
        %v1217 = vunpack.c.l.s4 1983009808
        %v1218 = vunpack.c.0.s8 %v1217
        %v1219 = vperm.slane %v1211, %v1218
        %v1220 = vrot.slane %v1148, 4
        %v1221 = vsel %vm1152, %v1220, %v1136
        %v1222 = vrot.slane %v1136, 4
        %v1223 = vsel %vm1152, %v1148, %v1222
        %v1225 = vunpack.c.l.s4 1983009808
        %v1226 = vunpack.c.0.s8 %v1225
        %v1227 = vperm.slane %v1221, %v1226
        %v1229 = vunpack.c.l.s4 1983009808
        %v1230 = vunpack.c.0.s8 %v1229
        %v1231 = vperm.slane %v1223, %v1230
        %v1232 = vrot.slane %v1227, 4
        %v1233 = vsel %vm1152, %v1232, %v1215
        %v1234 = vrot.slane %v1215, 4
        %v1235 = vsel %vm1152, %v1227, %v1234
        %v1237 = vunpack.c.l.s4 1934713408
        %v1238 = vunpack.c.0.s8 %v1237
        %v1239 = vperm.slane %v1233, %v1238
        %v1241 = vunpack.c.l.s4 1934713408
        %v1242 = vunpack.c.0.s8 %v1241
        %v1243 = vperm.slane %v1235, %v1242
        %v1244 = vrot.slane %v1231, 4
        %v1245 = vsel %vm1152, %v1244, %v1219
        %v1246 = vrot.slane %v1219, 4
        %v1247 = vsel %vm1152, %v1231, %v1246
        %v1249 = vunpack.c.l.s4 1934713408
        %v1250 = vunpack.c.0.s8 %v1249
        %v1251 = vperm.slane %v1245, %v1250
        %v1253 = vunpack.c.l.s4 1934713408
        %v1254 = vunpack.c.0.s8 %v1253
        %v1255 = vperm.slane %v1247, %v1254
        %v1256 = vrot.slane %v1239, 4
        %v1257 = vsel %vm1152, 0.0, %v1256
        %v1258 = vrot.slane %v1243, 4
        %v1259 = vsel %vm1152, 0.0, %v1258
        %v1260 = vrot.slane %v1251, 4
        %v1261 = vsel %vm1152, 0.0, %v1260
        %v1262 = vrot.slane %v1255, 4
        %v1263 = vsel %vm1152, 0.0, %v1262
        %1266 = vrot.lane.b32.xlu0 %v1098, 120
        %v1267 = vpop.permute.xlu0 %1266
        %1268 = vrot.lane.b32.xlu0 %v1100, 120
        %v1269 = vpop.permute.xlu0 %1268
        %1272 = vrot.lane.b32.xlu0 %v1098, 112
        %v1273 = vpop.permute.xlu0 %1272
        %1274 = vrot.lane.b32.xlu0 %v1100, 112
        %v1275 = vpop.permute.xlu0 %1274
        %1278 = vrot.lane.b32.xlu0 %v1098, 104
        %v1279 = vpop.permute.xlu0 %1278
        %1280 = vrot.lane.b32.xlu0 %v1100, 104
        %v1281 = vpop.permute.xlu0 %1280
        %v1284 = vrot.slane %v1273, 4
        %v1285 = vsel %vm1152, %v1284, %v1098
        %v1286 = vrot.slane %v1098, 4
        %v1287 = vsel %vm1152, %v1273, %v1286
        %v1289 = vunpack.c.l.s4 1983009808
        %v1290 = vunpack.c.0.s8 %v1289
        %v1291 = vperm.slane %v1285, %v1290
        %v1293 = vunpack.c.l.s4 1983009808
        %v1294 = vunpack.c.0.s8 %v1293
        %v1295 = vperm.slane %v1287, %v1294
        %v1296 = vrot.slane %v1279, 4
        %v1297 = vsel %vm1152, %v1296, %v1267
        %v1298 = vrot.slane %v1267, 4
        %v1299 = vsel %vm1152, %v1279, %v1298
        %v1301 = vunpack.c.l.s4 1983009808
        %v1302 = vunpack.c.0.s8 %v1301
        %v1303 = vperm.slane %v1297, %v1302
        %v1305 = vunpack.c.l.s4 1983009808
        %v1306 = vunpack.c.0.s8 %v1305
        %v1307 = vperm.slane %v1299, %v1306
        %v1308 = vrot.slane %v1303, 4
        %v1309 = vsel %vm1152, %v1308, %v1291
        %v1310 = vrot.slane %v1291, 4
        %v1311 = vsel %vm1152, %v1303, %v1310
        %v1313 = vunpack.c.l.s4 1934713408
        %v1314 = vunpack.c.0.s8 %v1313
        %v1315 = vperm.slane %v1309, %v1314
        %v1317 = vunpack.c.l.s4 1934713408
        %v1318 = vunpack.c.0.s8 %v1317
        %v1319 = vperm.slane %v1311, %v1318
        %v1320 = vrot.slane %v1307, 4
        %v1321 = vsel %vm1152, %v1320, %v1295
        %v1322 = vrot.slane %v1295, 4
        %v1323 = vsel %vm1152, %v1307, %v1322
        %v1325 = vunpack.c.l.s4 1934713408
        %v1326 = vunpack.c.0.s8 %v1325
        %v1327 = vperm.slane %v1321, %v1326
        %v1329 = vunpack.c.l.s4 1934713408
        %v1330 = vunpack.c.0.s8 %v1329
        %v1331 = vperm.slane %v1323, %v1330
        %v1332 = vrot.slane %v1315, 4
        %v1333 = vsel %vm1152, 0.0, %v1332
        %v1334 = vrot.slane %v1319, 4
        %v1335 = vsel %vm1152, 0.0, %v1334
        %v1336 = vrot.slane %v1327, 4
        %v1337 = vsel %vm1152, 0.0, %v1336
        %v1338 = vrot.slane %v1331, 4
        %v1339 = vsel %vm1152, 0.0, %v1338
        %v1340 = vrot.slane %v1275, 4
        %v1341 = vsel %vm1152, %v1340, %v1100
        %v1342 = vrot.slane %v1100, 4
        %v1343 = vsel %vm1152, %v1275, %v1342
        %v1345 = vunpack.c.l.s4 1983009808
        %v1346 = vunpack.c.0.s8 %v1345
        %v1347 = vperm.slane %v1341, %v1346
        %v1349 = vunpack.c.l.s4 1983009808
        %v1350 = vunpack.c.0.s8 %v1349
        %v1351 = vperm.slane %v1343, %v1350
        %v1352 = vrot.slane %v1281, 4
        %v1353 = vsel %vm1152, %v1352, %v1269
        %v1354 = vrot.slane %v1269, 4
        %v1355 = vsel %vm1152, %v1281, %v1354
        %v1357 = vunpack.c.l.s4 1983009808
        %v1358 = vunpack.c.0.s8 %v1357
        %v1359 = vperm.slane %v1353, %v1358
        %v1361 = vunpack.c.l.s4 1983009808
        %v1362 = vunpack.c.0.s8 %v1361
        %v1363 = vperm.slane %v1355, %v1362
        %v1364 = vrot.slane %v1359, 4
        %v1365 = vsel %vm1152, %v1364, %v1347
        %v1366 = vrot.slane %v1347, 4
        %v1367 = vsel %vm1152, %v1359, %v1366
        %v1369 = vunpack.c.l.s4 1934713408
        %v1370 = vunpack.c.0.s8 %v1369
        %v1371 = vperm.slane %v1365, %v1370
        %v1373 = vunpack.c.l.s4 1934713408
        %v1374 = vunpack.c.0.s8 %v1373
        %v1375 = vperm.slane %v1367, %v1374
        %v1376 = vrot.slane %v1363, 4
        %v1377 = vsel %vm1152, %v1376, %v1351
        %v1378 = vrot.slane %v1351, 4
        %v1379 = vsel %vm1152, %v1363, %v1378
        %v1381 = vunpack.c.l.s4 1934713408
        %v1382 = vunpack.c.0.s8 %v1381
        %v1383 = vperm.slane %v1377, %v1382
        %v1385 = vunpack.c.l.s4 1934713408
        %v1386 = vunpack.c.0.s8 %v1385
        %v1387 = vperm.slane %v1379, %v1386
        %v1388 = vrot.slane %v1371, 4
        %v1389 = vsel %vm1152, 0.0, %v1388
        %v1390 = vrot.slane %v1375, 4
        %v1391 = vsel %vm1152, 0.0, %v1390
        %v1392 = vrot.slane %v1383, 4
        %v1393 = vsel %vm1152, 0.0, %v1392
        %v1394 = vrot.slane %v1387, 4
        %v1395 = vsel %vm1152, 0.0, %v1394
        %1398 = vrot.lane.b32.xlu0 %v1127, 120
        %v1399 = vpop.permute.xlu0 %1398
        %1400 = vrot.lane.b32.xlu0 %v1129, 120
        %v1401 = vpop.permute.xlu0 %1400
        %1404 = vrot.lane.b32.xlu0 %v1127, 112
        %v1405 = vpop.permute.xlu0 %1404
        %1406 = vrot.lane.b32.xlu0 %v1129, 112
        %v1407 = vpop.permute.xlu0 %1406
        %1410 = vrot.lane.b32.xlu0 %v1127, 104
        %v1411 = vpop.permute.xlu0 %1410
        %1412 = vrot.lane.b32.xlu0 %v1129, 104
        %v1413 = vpop.permute.xlu0 %1412
        %v1416 = vrot.slane %v1405, 4
        %v1417 = vsel %vm1152, %v1416, %v1127
        %v1418 = vrot.slane %v1127, 4
        %v1419 = vsel %vm1152, %v1405, %v1418
        %v1421 = vunpack.c.l.s4 1983009808
        %v1422 = vunpack.c.0.s8 %v1421
        %v1423 = vperm.slane %v1417, %v1422
        %v1425 = vunpack.c.l.s4 1983009808
        %v1426 = vunpack.c.0.s8 %v1425
        %v1427 = vperm.slane %v1419, %v1426
        %v1428 = vrot.slane %v1411, 4
        %v1429 = vsel %vm1152, %v1428, %v1399
        %v1430 = vrot.slane %v1399, 4
        %v1431 = vsel %vm1152, %v1411, %v1430
        %v1433 = vunpack.c.l.s4 1983009808
        %v1434 = vunpack.c.0.s8 %v1433
        %v1435 = vperm.slane %v1429, %v1434
        %v1437 = vunpack.c.l.s4 1983009808
        %v1438 = vunpack.c.0.s8 %v1437
        %v1439 = vperm.slane %v1431, %v1438
        %v1440 = vrot.slane %v1435, 4
        %v1441 = vsel %vm1152, %v1440, %v1423
        %v1442 = vrot.slane %v1423, 4
        %v1443 = vsel %vm1152, %v1435, %v1442
        %v1445 = vunpack.c.l.s4 1934713408
        %v1446 = vunpack.c.0.s8 %v1445
        %v1447 = vperm.slane %v1441, %v1446
        %v1449 = vunpack.c.l.s4 1934713408
        %v1450 = vunpack.c.0.s8 %v1449
        %v1451 = vperm.slane %v1443, %v1450
        %v1452 = vrot.slane %v1439, 4
        %v1453 = vsel %vm1152, %v1452, %v1427
        %v1454 = vrot.slane %v1427, 4
        %v1455 = vsel %vm1152, %v1439, %v1454
        %v1457 = vunpack.c.l.s4 1934713408
        %v1458 = vunpack.c.0.s8 %v1457
        %v1459 = vperm.slane %v1453, %v1458
        %v1461 = vunpack.c.l.s4 1934713408
        %v1462 = vunpack.c.0.s8 %v1461
        %v1463 = vperm.slane %v1455, %v1462
        %v1464 = vrot.slane %v1447, 4
        %v1465 = vsel %vm1152, 0.0, %v1464
        %v1466 = vrot.slane %v1451, 4
        %v1467 = vsel %vm1152, 0.0, %v1466
        %v1468 = vrot.slane %v1459, 4
        %v1469 = vsel %vm1152, 0.0, %v1468
        %v1470 = vrot.slane %v1463, 4
        %v1471 = vsel %vm1152, 0.0, %v1470
        %v1472 = vrot.slane %v1407, 4
        %v1473 = vsel %vm1152, %v1472, %v1129
        %v1474 = vrot.slane %v1129, 4
        %v1475 = vsel %vm1152, %v1407, %v1474
        %v1477 = vunpack.c.l.s4 1983009808
        %v1478 = vunpack.c.0.s8 %v1477
        %v1479 = vperm.slane %v1473, %v1478
        %v1481 = vunpack.c.l.s4 1983009808
        %v1482 = vunpack.c.0.s8 %v1481
        %v1483 = vperm.slane %v1475, %v1482
        %v1484 = vrot.slane %v1413, 4
        %v1485 = vsel %vm1152, %v1484, %v1401
        %v1486 = vrot.slane %v1401, 4
        %v1487 = vsel %vm1152, %v1413, %v1486
        %v1489 = vunpack.c.l.s4 1983009808
        %v1490 = vunpack.c.0.s8 %v1489
        %v1491 = vperm.slane %v1485, %v1490
        %v1493 = vunpack.c.l.s4 1983009808
        %v1494 = vunpack.c.0.s8 %v1493
        %v1495 = vperm.slane %v1487, %v1494
        %v1496 = vrot.slane %v1491, 4
        %v1497 = vsel %vm1152, %v1496, %v1479
        %v1498 = vrot.slane %v1479, 4
        %v1499 = vsel %vm1152, %v1491, %v1498
        %v1501 = vunpack.c.l.s4 1934713408
        %v1502 = vunpack.c.0.s8 %v1501
        %v1503 = vperm.slane %v1497, %v1502
        %v1505 = vunpack.c.l.s4 1934713408
        %v1506 = vunpack.c.0.s8 %v1505
        %v1507 = vperm.slane %v1499, %v1506
        %v1508 = vrot.slane %v1495, 4
        %v1509 = vsel %vm1152, %v1508, %v1483
        %v1510 = vrot.slane %v1483, 4
        %v1511 = vsel %vm1152, %v1495, %v1510
        %v1513 = vunpack.c.l.s4 1934713408
        %v1514 = vunpack.c.0.s8 %v1513
        %v1515 = vperm.slane %v1509, %v1514
        %v1517 = vunpack.c.l.s4 1934713408
        %v1518 = vunpack.c.0.s8 %v1517
        %v1519 = vperm.slane %v1511, %v1518
        %v1520 = vrot.slane %v1503, 4
        %v1521 = vsel %vm1152, 0.0, %v1520
        %v1522 = vrot.slane %v1507, 4
        %v1523 = vsel %vm1152, 0.0, %v1522
        %v1524 = vrot.slane %v1515, 4
        %v1525 = vsel %vm1152, 0.0, %v1524
        %v1526 = vrot.slane %v1519, 4
        %v1527 = vsel %vm1152, 0.0, %v1526
        %v1528 = vpack.c.bf16 %v1183, %v1183
        %v1529 = vpack.c.bf16 %v1201, %v1201
        %v1530 = vpack.c.bf16 %v1187, %v1187
        %v1531 = vpack.c.bf16 %v1203, %v1203
        %v1532 = vpack.c.bf16 %v1195, %v1195
        %v1533 = vpack.c.bf16 %v1205, %v1205
        %v1534 = vpack.c.bf16 %v1199, %v1199
        %v1535 = vpack.c.bf16 %v1207, %v1207
        %v1536 = vpack.c.bf16 %v1239, %v1239
        %v1537 = vpack.c.bf16 %v1257, %v1257
        %v1538 = vpack.c.bf16 %v1243, %v1243
        %v1539 = vpack.c.bf16 %v1259, %v1259
        %v1540 = vpack.c.bf16 %v1251, %v1251
        %v1541 = vpack.c.bf16 %v1261, %v1261
        %v1542 = vpack.c.bf16 %v1255, %v1255
        %v1543 = vpack.c.bf16 %v1263, %v1263
        %v1544 = vpack.c.bf16 %v1315, %v1315
        %v1545 = vpack.c.bf16 %v1333, %v1333
        %v1546 = vpack.c.bf16 %v1319, %v1319
        %v1547 = vpack.c.bf16 %v1335, %v1335
        %v1548 = vpack.c.bf16 %v1327, %v1327
        %v1549 = vpack.c.bf16 %v1337, %v1337
        %v1550 = vpack.c.bf16 %v1331, %v1331
        %v1551 = vpack.c.bf16 %v1339, %v1339
        %v1552 = vpack.c.bf16 %v1371, %v1371
        %v1553 = vpack.c.bf16 %v1389, %v1389
        %v1554 = vpack.c.bf16 %v1375, %v1375
        %v1555 = vpack.c.bf16 %v1391, %v1391
        %v1556 = vpack.c.bf16 %v1383, %v1383
        %v1557 = vpack.c.bf16 %v1393, %v1393
        %v1558 = vpack.c.bf16 %v1387, %v1387
        %v1559 = vpack.c.bf16 %v1395, %v1395
        %v1560 = vrot.slane %v1532, 4
        %vm1561 = vcmask 1047556
        %v1562 = vsel %vm1561, %v1560, %v1528
        %v1564 = vunpack.c.l.s4 1983009808
        %v1565 = vunpack.c.0.s8 %v1564
        %v1566 = vperm.slane %v1562, %v1565
        %v1567 = vrot.slane %v1534, 4
        %v1568 = vsel %vm1561, %v1567, %v1530
        %v1570 = vunpack.c.l.s4 1983009808
        %v1571 = vunpack.c.0.s8 %v1570
        %v1572 = vperm.slane %v1568, %v1571
        %v1573 = vrot.slane %v1572, 4
        %v1574 = vsel %vm1561, %v1573, %v1566
        %v1576 = vunpack.c.l.s4 1934713408
        %v1577 = vunpack.c.0.s8 %v1576
        %v1578 = vperm.slane %v1574, %v1577
        %v1579 = vrot.slane %v1578, 4
        %v1580 = vsel %vm1561, 0, %v1579
        %v1581 = vrot.slane %v1533, 4
        %v1582 = vsel %vm1561, %v1581, %v1529
        %v1584 = vunpack.c.l.s4 1983009808
        %v1585 = vunpack.c.0.s8 %v1584
        %v1586 = vperm.slane %v1582, %v1585
        %v1587 = vrot.slane %v1535, 4
        %v1588 = vsel %vm1561, %v1587, %v1531
        %v1590 = vunpack.c.l.s4 1983009808
        %v1591 = vunpack.c.0.s8 %v1590
        %v1592 = vperm.slane %v1588, %v1591
        %v1593 = vrot.slane %v1592, 4
        %v1594 = vsel %vm1561, %v1593, %v1586
        %v1596 = vunpack.c.l.s4 1934713408
        %v1597 = vunpack.c.0.s8 %v1596
        %v1598 = vperm.slane %v1594, %v1597
        %v1599 = vrot.slane %v1598, 4
        %v1600 = vsel %vm1561, 0, %v1599
        %v1601 = vrot.slane %v1540, 4
        %v1602 = vsel %vm1561, %v1601, %v1536
        %v1604 = vunpack.c.l.s4 1983009808
        %v1605 = vunpack.c.0.s8 %v1604
        %v1606 = vperm.slane %v1602, %v1605
        %v1607 = vrot.slane %v1542, 4
        %v1608 = vsel %vm1561, %v1607, %v1538
        %v1610 = vunpack.c.l.s4 1983009808
        %v1611 = vunpack.c.0.s8 %v1610
        %v1612 = vperm.slane %v1608, %v1611
        %v1613 = vrot.slane %v1612, 4
        %v1614 = vsel %vm1561, %v1613, %v1606
        %v1616 = vunpack.c.l.s4 1934713408
        %v1617 = vunpack.c.0.s8 %v1616
        %v1618 = vperm.slane %v1614, %v1617
        %v1619 = vrot.slane %v1618, 4
        %v1620 = vsel %vm1561, 0, %v1619
        %v1621 = vrot.slane %v1541, 4
        %v1622 = vsel %vm1561, %v1621, %v1537
        %v1624 = vunpack.c.l.s4 1983009808
        %v1625 = vunpack.c.0.s8 %v1624
        %v1626 = vperm.slane %v1622, %v1625
        %v1627 = vrot.slane %v1543, 4
        %v1628 = vsel %vm1561, %v1627, %v1539
        %v1630 = vunpack.c.l.s4 1983009808
        %v1631 = vunpack.c.0.s8 %v1630
        %v1632 = vperm.slane %v1628, %v1631
        %v1633 = vrot.slane %v1632, 4
        %v1634 = vsel %vm1561, %v1633, %v1626
        %v1636 = vunpack.c.l.s4 1934713408
        %v1637 = vunpack.c.0.s8 %v1636
        %v1638 = vperm.slane %v1634, %v1637
        %v1639 = vrot.slane %v1638, 4
        %v1640 = vsel %vm1561, 0, %v1639
        %v1643 = vpack.i.b16 %v1598, %v1578
        %v1644 = vshrl.u32 %v1578, 16
        %v1645 = vshrl.u32 %v1598, 16
        %v1646 = vpack.i.b16 %v1645, %v1644
        %v1649 = vpack.i.b16 %v1600, %v1580
        %v1650 = vshrl.u32 %v1580, 16
        %v1651 = vshrl.u32 %v1600, 16
        %v1652 = vpack.i.b16 %v1651, %v1650
        %v1655 = vpack.i.b16 %v1638, %v1618
        %v1656 = vshrl.u32 %v1618, 16
        %v1657 = vshrl.u32 %v1638, 16
        %v1658 = vpack.i.b16 %v1657, %v1656
        %v1661 = vpack.i.b16 %v1640, %v1620
        %v1662 = vshrl.u32 %v1620, 16
        %v1663 = vshrl.u32 %v1640, 16
        %v1664 = vpack.i.b16 %v1663, %v1662
        %1665 = vxpose.xlu0.c.b16.start [1/8] %v1544, 128
        %1666 = vxpose.xlu0.c.b16.cont [2/8] 0, 128
        %1667 = vxpose.xlu0.c.b16.cont [3/8] 0, 128
        %1668 = vxpose.xlu0.c.b16.cont [4/8] 0, 128
        %1669 = vxpose.xlu0.c.b16.cont [5/8] 0, 128
        %1670 = vxpose.xlu0.c.b16.cont [6/8] 0, 128
        %1671 = vxpose.xlu0.c.b16.cont [7/8] 0, 128
        %1672 = vxpose.xlu0.c.b16.end [8/8] 0, 128
        %v1673 = vpop.trf.xlu0
        %v1674 = vpop.trf.xlu0
        %v1675 = vpop.trf.xlu0
        %v1676 = vpop.trf.xlu0
        %v1677 = vpop.trf.xlu0
        %v1678 = vpop.trf.xlu0
        %v1679 = vpop.trf.xlu0
        %v1680 = vpop.trf.xlu0
        %1681 = vxpose.xlu0.c.b16.start [1/8] %v1545, 128
        %1682 = vxpose.xlu0.c.b16.cont [2/8] 0, 128
        %1683 = vxpose.xlu0.c.b16.cont [3/8] 0, 128
        %1684 = vxpose.xlu0.c.b16.cont [4/8] 0, 128
        %1685 = vxpose.xlu0.c.b16.cont [5/8] 0, 128
        %1686 = vxpose.xlu0.c.b16.cont [6/8] 0, 128
        %1687 = vxpose.xlu0.c.b16.cont [7/8] 0, 128
        %1688 = vxpose.xlu0.c.b16.end [8/8] 0, 128
        %v1689 = vpop.trf.xlu0
        %v1690 = vpop.trf.xlu0
        %v1691 = vpop.trf.xlu0
        %v1692 = vpop.trf.xlu0
        %v1693 = vpop.trf.xlu0
        %v1694 = vpop.trf.xlu0
        %v1695 = vpop.trf.xlu0
        %v1696 = vpop.trf.xlu0
        %1697 = vxpose.xlu0.c.b16.start [1/8] %v1546, 128
        %1698 = vxpose.xlu0.c.b16.cont [2/8] 0, 128
        %1699 = vxpose.xlu0.c.b16.cont [3/8] 0, 128
        %1700 = vxpose.xlu0.c.b16.cont [4/8] 0, 128
        %1701 = vxpose.xlu0.c.b16.cont [5/8] 0, 128
        %1702 = vxpose.xlu0.c.b16.cont [6/8] 0, 128
        %1703 = vxpose.xlu0.c.b16.cont [7/8] 0, 128
        %1704 = vxpose.xlu0.c.b16.end [8/8] 0, 128
        %v1705 = vpop.trf.xlu0
        %v1706 = vpop.trf.xlu0
        %v1707 = vpop.trf.xlu0
        %v1708 = vpop.trf.xlu0
        %v1709 = vpop.trf.xlu0
        %v1710 = vpop.trf.xlu0
        %v1711 = vpop.trf.xlu0
        %v1712 = vpop.trf.xlu0
        %1713 = vxpose.xlu0.c.b16.start [1/8] %v1547, 128
        %1714 = vxpose.xlu0.c.b16.cont [2/8] 0, 128
        %1715 = vxpose.xlu0.c.b16.cont [3/8] 0, 128
        %1716 = vxpose.xlu0.c.b16.cont [4/8] 0, 128
        %1717 = vxpose.xlu0.c.b16.cont [5/8] 0, 128
        %1718 = vxpose.xlu0.c.b16.cont [6/8] 0, 128
        %1719 = vxpose.xlu0.c.b16.cont [7/8] 0, 128
        %1720 = vxpose.xlu0.c.b16.end [8/8] 0, 128
        %v1721 = vpop.trf.xlu0
        %v1722 = vpop.trf.xlu0
        %v1723 = vpop.trf.xlu0
        %v1724 = vpop.trf.xlu0
        %v1725 = vpop.trf.xlu0
        %v1726 = vpop.trf.xlu0
        %v1727 = vpop.trf.xlu0
        %v1728 = vpop.trf.xlu0
        %1729 = vxpose.xlu0.c.b16.start [1/8] %v1548, 128
        %1730 = vxpose.xlu0.c.b16.cont [2/8] 0, 128
        %1731 = vxpose.xlu0.c.b16.cont [3/8] 0, 128
        %1732 = vxpose.xlu0.c.b16.cont [4/8] 0, 128
        %1733 = vxpose.xlu0.c.b16.cont [5/8] 0, 128
        %1734 = vxpose.xlu0.c.b16.cont [6/8] 0, 128
        %1735 = vxpose.xlu0.c.b16.cont [7/8] 0, 128
        %1736 = vxpose.xlu0.c.b16.end [8/8] 0, 128
        %v1737 = vpop.trf.xlu0
        %v1738 = vpop.trf.xlu0
        %v1739 = vpop.trf.xlu0
        %v1740 = vpop.trf.xlu0
        %v1741 = vpop.trf.xlu0
        %v1742 = vpop.trf.xlu0
        %v1743 = vpop.trf.xlu0
        %v1744 = vpop.trf.xlu0
        %1745 = vxpose.xlu0.c.b16.start [1/8] %v1549, 128
        %1746 = vxpose.xlu0.c.b16.cont [2/8] 0, 128
        %1747 = vxpose.xlu0.c.b16.cont [3/8] 0, 128
        %1748 = vxpose.xlu0.c.b16.cont [4/8] 0, 128
        %1749 = vxpose.xlu0.c.b16.cont [5/8] 0, 128
        %1750 = vxpose.xlu0.c.b16.cont [6/8] 0, 128
        %1751 = vxpose.xlu0.c.b16.cont [7/8] 0, 128
        %1752 = vxpose.xlu0.c.b16.end [8/8] 0, 128
        %v1753 = vpop.trf.xlu0
        %v1754 = vpop.trf.xlu0
        %v1755 = vpop.trf.xlu0
        %v1756 = vpop.trf.xlu0
        %v1757 = vpop.trf.xlu0
        %v1758 = vpop.trf.xlu0
        %v1759 = vpop.trf.xlu0
        %v1760 = vpop.trf.xlu0
        %1761 = vxpose.xlu0.c.b16.start [1/8] %v1550, 128
        %1762 = vxpose.xlu0.c.b16.cont [2/8] 0, 128
        %1763 = vxpose.xlu0.c.b16.cont [3/8] 0, 128
        %1764 = vxpose.xlu0.c.b16.cont [4/8] 0, 128
        %1765 = vxpose.xlu0.c.b16.cont [5/8] 0, 128
        %1766 = vxpose.xlu0.c.b16.cont [6/8] 0, 128
        %1767 = vxpose.xlu0.c.b16.cont [7/8] 0, 128
        %1768 = vxpose.xlu0.c.b16.end [8/8] 0, 128
        %v1769 = vpop.trf.xlu0
        %v1770 = vpop.trf.xlu0
        %v1771 = vpop.trf.xlu0
        %v1772 = vpop.trf.xlu0
        %v1773 = vpop.trf.xlu0
        %v1774 = vpop.trf.xlu0
        %v1775 = vpop.trf.xlu0
        %v1776 = vpop.trf.xlu0
        %1777 = vxpose.xlu0.c.b16.start [1/8] %v1551, 128
        %1778 = vxpose.xlu0.c.b16.cont [2/8] 0, 128
        %1779 = vxpose.xlu0.c.b16.cont [3/8] 0, 128
        %1780 = vxpose.xlu0.c.b16.cont [4/8] 0, 128
        %1781 = vxpose.xlu0.c.b16.cont [5/8] 0, 128
        %1782 = vxpose.xlu0.c.b16.cont [6/8] 0, 128
        %1783 = vxpose.xlu0.c.b16.cont [7/8] 0, 128
        %1784 = vxpose.xlu0.c.b16.end [8/8] 0, 128
        %v1785 = vpop.trf.xlu0
        %v1786 = vpop.trf.xlu0
        %v1787 = vpop.trf.xlu0
        %v1788 = vpop.trf.xlu0
        %v1789 = vpop.trf.xlu0
        %v1790 = vpop.trf.xlu0
        %v1791 = vpop.trf.xlu0
        %v1792 = vpop.trf.xlu0
        %1793 = vxpose.xlu0.c.b16.start [1/8] %v1552, 128
        %1794 = vxpose.xlu0.c.b16.cont [2/8] 0, 128
        %1795 = vxpose.xlu0.c.b16.cont [3/8] 0, 128
        %1796 = vxpose.xlu0.c.b16.cont [4/8] 0, 128
        %1797 = vxpose.xlu0.c.b16.cont [5/8] 0, 128
        %1798 = vxpose.xlu0.c.b16.cont [6/8] 0, 128
        %1799 = vxpose.xlu0.c.b16.cont [7/8] 0, 128
        %1800 = vxpose.xlu0.c.b16.end [8/8] 0, 128
        %v1801 = vpop.trf.xlu0
        %v1802 = vpop.trf.xlu0
        %v1803 = vpop.trf.xlu0
        %v1804 = vpop.trf.xlu0
        %v1805 = vpop.trf.xlu0
        %v1806 = vpop.trf.xlu0
        %v1807 = vpop.trf.xlu0
        %v1808 = vpop.trf.xlu0
        %1809 = vxpose.xlu0.c.b16.start [1/8] %v1553, 128
        %1810 = vxpose.xlu0.c.b16.cont [2/8] 0, 128
        %1811 = vxpose.xlu0.c.b16.cont [3/8] 0, 128
        %1812 = vxpose.xlu0.c.b16.cont [4/8] 0, 128
        %1813 = vxpose.xlu0.c.b16.cont [5/8] 0, 128
        %1814 = vxpose.xlu0.c.b16.cont [6/8] 0, 128
        %1815 = vxpose.xlu0.c.b16.cont [7/8] 0, 128
        %1816 = vxpose.xlu0.c.b16.end [8/8] 0, 128
        %v1817 = vpop.trf.xlu0
        %v1818 = vpop.trf.xlu0
        %v1819 = vpop.trf.xlu0
        %v1820 = vpop.trf.xlu0
        %v1821 = vpop.trf.xlu0
        %v1822 = vpop.trf.xlu0
        %v1823 = vpop.trf.xlu0
        %v1824 = vpop.trf.xlu0
        %1825 = vxpose.xlu0.c.b16.start [1/8] %v1554, 128
        %1826 = vxpose.xlu0.c.b16.cont [2/8] 0, 128
        %1827 = vxpose.xlu0.c.b16.cont [3/8] 0, 128
        %1828 = vxpose.xlu0.c.b16.cont [4/8] 0, 128
        %1829 = vxpose.xlu0.c.b16.cont [5/8] 0, 128
        %1830 = vxpose.xlu0.c.b16.cont [6/8] 0, 128
        %1831 = vxpose.xlu0.c.b16.cont [7/8] 0, 128
        %1832 = vxpose.xlu0.c.b16.end [8/8] 0, 128
        %v1833 = vpop.trf.xlu0
        %v1834 = vpop.trf.xlu0
        %v1835 = vpop.trf.xlu0
        %v1836 = vpop.trf.xlu0
        %v1837 = vpop.trf.xlu0
        %v1838 = vpop.trf.xlu0
        %v1839 = vpop.trf.xlu0
        %v1840 = vpop.trf.xlu0
        %1841 = vxpose.xlu0.c.b16.start [1/8] %v1555, 128
        %1842 = vxpose.xlu0.c.b16.cont [2/8] 0, 128
        %1843 = vxpose.xlu0.c.b16.cont [3/8] 0, 128
        %1844 = vxpose.xlu0.c.b16.cont [4/8] 0, 128
        %1845 = vxpose.xlu0.c.b16.cont [5/8] 0, 128
        %1846 = vxpose.xlu0.c.b16.cont [6/8] 0, 128
        %1847 = vxpose.xlu0.c.b16.cont [7/8] 0, 128
        %1848 = vxpose.xlu0.c.b16.end [8/8] 0, 128
        %v1849 = vpop.trf.xlu0
        %v1850 = vpop.trf.xlu0
        %v1851 = vpop.trf.xlu0
        %v1852 = vpop.trf.xlu0
        %v1853 = vpop.trf.xlu0
        %v1854 = vpop.trf.xlu0
        %v1855 = vpop.trf.xlu0
        %v1856 = vpop.trf.xlu0
        %1857 = vxpose.xlu0.c.b16.start [1/8] %v1556, 128
        %1858 = vxpose.xlu0.c.b16.cont [2/8] 0, 128
        %1859 = vxpose.xlu0.c.b16.cont [3/8] 0, 128
        %1860 = vxpose.xlu0.c.b16.cont [4/8] 0, 128
        %1861 = vxpose.xlu0.c.b16.cont [5/8] 0, 128
        %1862 = vxpose.xlu0.c.b16.cont [6/8] 0, 128
        %1863 = vxpose.xlu0.c.b16.cont [7/8] 0, 128
        %1864 = vxpose.xlu0.c.b16.end [8/8] 0, 128
        %v1865 = vpop.trf.xlu0
        %v1866 = vpop.trf.xlu0
        %v1867 = vpop.trf.xlu0
        %v1868 = vpop.trf.xlu0
        %v1869 = vpop.trf.xlu0
        %v1870 = vpop.trf.xlu0
        %v1871 = vpop.trf.xlu0
        %v1872 = vpop.trf.xlu0
        %1873 = vxpose.xlu0.c.b16.start [1/8] %v1557, 128
        %1874 = vxpose.xlu0.c.b16.cont [2/8] 0, 128
        %1875 = vxpose.xlu0.c.b16.cont [3/8] 0, 128
        %1876 = vxpose.xlu0.c.b16.cont [4/8] 0, 128
        %1877 = vxpose.xlu0.c.b16.cont [5/8] 0, 128
        %1878 = vxpose.xlu0.c.b16.cont [6/8] 0, 128
        %1879 = vxpose.xlu0.c.b16.cont [7/8] 0, 128
        %1880 = vxpose.xlu0.c.b16.end [8/8] 0, 128
        %v1881 = vpop.trf.xlu0
        %v1882 = vpop.trf.xlu0
        %v1883 = vpop.trf.xlu0
        %v1884 = vpop.trf.xlu0
        %v1885 = vpop.trf.xlu0
        %v1886 = vpop.trf.xlu0
        %v1887 = vpop.trf.xlu0
        %v1888 = vpop.trf.xlu0
        %1889 = vxpose.xlu0.c.b16.start [1/8] %v1558, 128
        %1890 = vxpose.xlu0.c.b16.cont [2/8] 0, 128
        %1891 = vxpose.xlu0.c.b16.cont [3/8] 0, 128
        %1892 = vxpose.xlu0.c.b16.cont [4/8] 0, 128
        %1893 = vxpose.xlu0.c.b16.cont [5/8] 0, 128
        %1894 = vxpose.xlu0.c.b16.cont [6/8] 0, 128
        %1895 = vxpose.xlu0.c.b16.cont [7/8] 0, 128
        %1896 = vxpose.xlu0.c.b16.end [8/8] 0, 128
        %v1897 = vpop.trf.xlu0
        %v1898 = vpop.trf.xlu0
        %v1899 = vpop.trf.xlu0
        %v1900 = vpop.trf.xlu0
        %v1901 = vpop.trf.xlu0
        %v1902 = vpop.trf.xlu0
        %v1903 = vpop.trf.xlu0
        %v1904 = vpop.trf.xlu0
        %1905 = vxpose.xlu0.c.b16.start [1/8] %v1559, 128
        %1906 = vxpose.xlu0.c.b16.cont [2/8] 0, 128
        %1907 = vxpose.xlu0.c.b16.cont [3/8] 0, 128
        %1908 = vxpose.xlu0.c.b16.cont [4/8] 0, 128
        %1909 = vxpose.xlu0.c.b16.cont [5/8] 0, 128
        %1910 = vxpose.xlu0.c.b16.cont [6/8] 0, 128
        %1911 = vxpose.xlu0.c.b16.cont [7/8] 0, 128
        %1912 = vxpose.xlu0.c.b16.end [8/8] 0, 128
        %v1913 = vpop.trf.xlu0
        %v1914 = vpop.trf.xlu0
        %v1915 = vpop.trf.xlu0
        %v1916 = vpop.trf.xlu0
        %v1917 = vpop.trf.xlu0
        %v1918 = vpop.trf.xlu0
        %v1919 = vpop.trf.xlu0
        %v1920 = vpop.trf.xlu0
        %v1921 = vrot.slane %v1737, 4
        %v1922 = vsel %vm1561, %v1921, %v1673
        %v1924 = vunpack.c.l.s4 1983009808
        %v1925 = vunpack.c.0.s8 %v1924
        %v1926 = vperm.slane %v1922, %v1925
        %v1927 = vrot.slane %v1769, 4
        %v1928 = vsel %vm1561, %v1927, %v1705
        %v1930 = vunpack.c.l.s4 1983009808
        %v1931 = vunpack.c.0.s8 %v1930
        %v1932 = vperm.slane %v1928, %v1931
        %v1933 = vrot.slane %v1865, 4
        %v1934 = vsel %vm1561, %v1933, %v1801
        %v1936 = vunpack.c.l.s4 1983009808
        %v1937 = vunpack.c.0.s8 %v1936
        %v1938 = vperm.slane %v1934, %v1937
        %v1939 = vrot.slane %v1897, 4
        %v1940 = vsel %vm1561, %v1939, %v1833
        %v1942 = vunpack.c.l.s4 1983009808
        %v1943 = vunpack.c.0.s8 %v1942
        %v1944 = vperm.slane %v1940, %v1943
        %v1945 = vrot.slane %v1932, 4
        %v1946 = vsel %vm1561, %v1945, %v1926
        %v1947 = vrot.slane %v1926, 4
        %v1948 = vsel %vm1561, %v1932, %v1947
        %v1950 = vunpack.c.l.s4 1934713408
        %v1951 = vunpack.c.0.s8 %v1950
        %v1952 = vperm.slane %v1946, %v1951
        %v1954 = vunpack.c.l.s4 1934713408
        %v1955 = vunpack.c.0.s8 %v1954
        %v1956 = vperm.slane %v1948, %v1955
        %v1957 = vrot.slane %v1944, 4
        %v1958 = vsel %vm1561, %v1957, %v1938
        %v1959 = vrot.slane %v1938, 4
        %v1960 = vsel %vm1561, %v1944, %v1959
        %v1962 = vunpack.c.l.s4 1934713408
        %v1963 = vunpack.c.0.s8 %v1962
        %v1964 = vperm.slane %v1958, %v1963
        %v1966 = vunpack.c.l.s4 1934713408
        %v1967 = vunpack.c.0.s8 %v1966
        %v1968 = vperm.slane %v1960, %v1967
        %v1969 = vrot.slane %v1964, 4
        %v1970 = vsel %vm1561, %v1969, %v1952
        %v1971 = vrot.slane %v1952, 4
        %v1972 = vsel %vm1561, %v1964, %v1971
        %v1973 = vrot.slane %v1968, 4
        %v1974 = vsel %vm1561, %v1973, %v1956
        %v1975 = vrot.slane %v1956, 4
        %v1976 = vsel %vm1561, %v1968, %v1975
        %v1977 = vrot.slane %v1753, 4
        %v1978 = vsel %vm1561, %v1977, %v1689
        %v1980 = vunpack.c.l.s4 1983009808
        %v1981 = vunpack.c.0.s8 %v1980
        %v1982 = vperm.slane %v1978, %v1981
        %v1983 = vrot.slane %v1785, 4
        %v1984 = vsel %vm1561, %v1983, %v1721
        %v1986 = vunpack.c.l.s4 1983009808
        %v1987 = vunpack.c.0.s8 %v1986
        %v1988 = vperm.slane %v1984, %v1987
        %v1989 = vrot.slane %v1881, 4
        %v1990 = vsel %vm1561, %v1989, %v1817
        %v1992 = vunpack.c.l.s4 1983009808
        %v1993 = vunpack.c.0.s8 %v1992
        %v1994 = vperm.slane %v1990, %v1993
        %v1995 = vrot.slane %v1913, 4
        %v1996 = vsel %vm1561, %v1995, %v1849
        %v1998 = vunpack.c.l.s4 1983009808
        %v1999 = vunpack.c.0.s8 %v1998
        %v2000 = vperm.slane %v1996, %v1999
        %v2001 = vrot.slane %v1988, 4
        %v2002 = vsel %vm1561, %v2001, %v1982
        %v2003 = vrot.slane %v1982, 4
        %v2004 = vsel %vm1561, %v1988, %v2003
        %v2006 = vunpack.c.l.s4 1934713408
        %v2007 = vunpack.c.0.s8 %v2006
        %v2008 = vperm.slane %v2002, %v2007
        %v2010 = vunpack.c.l.s4 1934713408
        %v2011 = vunpack.c.0.s8 %v2010
        %v2012 = vperm.slane %v2004, %v2011
        %v2013 = vrot.slane %v2000, 4
        %v2014 = vsel %vm1561, %v2013, %v1994
        %v2015 = vrot.slane %v1994, 4
        %v2016 = vsel %vm1561, %v2000, %v2015
        %v2018 = vunpack.c.l.s4 1934713408
        %v2019 = vunpack.c.0.s8 %v2018
        %v2020 = vperm.slane %v2014, %v2019
        %v2022 = vunpack.c.l.s4 1934713408
        %v2023 = vunpack.c.0.s8 %v2022
        %v2024 = vperm.slane %v2016, %v2023
        %v2025 = vrot.slane %v2020, 4
        %v2026 = vsel %vm1561, %v2025, %v2008
        %v2027 = vrot.slane %v2008, 4
        %v2028 = vsel %vm1561, %v2020, %v2027
        %v2029 = vrot.slane %v2024, 4
        %v2030 = vsel %vm1561, %v2029, %v2012
        %v2031 = vrot.slane %v2012, 4
        %v2032 = vsel %vm1561, %v2024, %v2031
        %v2035 = vpack.i.b16 %v2026, %v1970
        %v2037 = vshrl.u32 %v1970, 16
        %v2038 = vshrl.u32 %v2026, 16
        %v2039 = vpack.i.b16 %v2038, %v2037
        %v2043 = vpack.i.b16 %v2028, %v1972
        %v2045 = vshrl.u32 %v1972, 16
        %v2046 = vshrl.u32 %v2028, 16
        %v2047 = vpack.i.b16 %v2046, %v2045
        %v2051 = vpack.i.b16 %v2030, %v1974
        %v2053 = vshrl.u32 %v1974, 16
        %v2054 = vshrl.u32 %v2030, 16
        %v2055 = vpack.i.b16 %v2054, %v2053
        %v2059 = vpack.i.b16 %v2032, %v1976
        %v2061 = vshrl.u32 %v1976, 16
        %v2062 = vshrl.u32 %v2032, 16
        %v2063 = vpack.i.b16 %v2062, %v2061
        %2065 = vxpose.xlu0.c.b16.start [1/8] %v2035, 128
        %2066 = vxpose.xlu0.c.b16.cont [2/8] 0, 128
        %2067 = vxpose.xlu0.c.b16.cont [3/8] 0, 128
        %2068 = vxpose.xlu0.c.b16.cont [4/8] 0, 128
        %2069 = vxpose.xlu0.c.b16.cont [5/8] 0, 128
        %2070 = vxpose.xlu0.c.b16.cont [6/8] 0, 128
        %2071 = vxpose.xlu0.c.b16.cont [7/8] 0, 128
        %2072 = vxpose.xlu0.c.b16.end [8/8] 0, 128
        %v2073 = vpop.trf.xlu0
        %v2074 = vpop.trf.xlu0
        %v2075 = vpop.trf.xlu0
        %v2076 = vpop.trf.xlu0
        %v2077 = vpop.trf.xlu0
        %v2078 = vpop.trf.xlu0
        %v2079 = vpop.trf.xlu0
        %v2080 = vpop.trf.xlu0
        %2081 = vxpose.xlu0.c.b16.start [1/8] %v2039, 128
        %2082 = vxpose.xlu0.c.b16.cont [2/8] 0, 128
        %2083 = vxpose.xlu0.c.b16.cont [3/8] 0, 128
        %2084 = vxpose.xlu0.c.b16.cont [4/8] 0, 128
        %2085 = vxpose.xlu0.c.b16.cont [5/8] 0, 128
        %2086 = vxpose.xlu0.c.b16.cont [6/8] 0, 128
        %2087 = vxpose.xlu0.c.b16.cont [7/8] 0, 128
        %2088 = vxpose.xlu0.c.b16.end [8/8] 0, 128
        %v2089 = vpop.trf.xlu0
        %v2090 = vpop.trf.xlu0
        %v2091 = vpop.trf.xlu0
        %v2092 = vpop.trf.xlu0
        %v2093 = vpop.trf.xlu0
        %v2094 = vpop.trf.xlu0
        %v2095 = vpop.trf.xlu0
        %v2096 = vpop.trf.xlu0
        %2097 = vxpose.xlu0.c.b16.start [1/8] %v2043, 128
        %2098 = vxpose.xlu0.c.b16.cont [2/8] 0, 128
        %2099 = vxpose.xlu0.c.b16.cont [3/8] 0, 128
        %2100 = vxpose.xlu0.c.b16.cont [4/8] 0, 128
        %2101 = vxpose.xlu0.c.b16.cont [5/8] 0, 128
        %2102 = vxpose.xlu0.c.b16.cont [6/8] 0, 128
        %2103 = vxpose.xlu0.c.b16.cont [7/8] 0, 128
        %2104 = vxpose.xlu0.c.b16.end [8/8] 0, 128
        %v2105 = vpop.trf.xlu0
        %v2106 = vpop.trf.xlu0
        %v2107 = vpop.trf.xlu0
        %v2108 = vpop.trf.xlu0
        %v2109 = vpop.trf.xlu0
        %v2110 = vpop.trf.xlu0
        %v2111 = vpop.trf.xlu0
        %v2112 = vpop.trf.xlu0
        %2113 = vxpose.xlu0.c.b16.start [1/8] %v2047, 128
        %2114 = vxpose.xlu0.c.b16.cont [2/8] 0, 128
        %2115 = vxpose.xlu0.c.b16.cont [3/8] 0, 128
        %2116 = vxpose.xlu0.c.b16.cont [4/8] 0, 128
        %2117 = vxpose.xlu0.c.b16.cont [5/8] 0, 128
        %2118 = vxpose.xlu0.c.b16.cont [6/8] 0, 128
        %2119 = vxpose.xlu0.c.b16.cont [7/8] 0, 128
        %2120 = vxpose.xlu0.c.b16.end [8/8] 0, 128
        %v2121 = vpop.trf.xlu0
        %v2122 = vpop.trf.xlu0
        %v2123 = vpop.trf.xlu0
        %v2124 = vpop.trf.xlu0
        %v2125 = vpop.trf.xlu0
        %v2126 = vpop.trf.xlu0
        %v2127 = vpop.trf.xlu0
        %v2128 = vpop.trf.xlu0
        %2129 = vxpose.xlu0.c.b16.start [1/8] %v2051, 128
        %2130 = vxpose.xlu0.c.b16.cont [2/8] 0, 128
        %2131 = vxpose.xlu0.c.b16.cont [3/8] 0, 128
        %2132 = vxpose.xlu0.c.b16.cont [4/8] 0, 128
        %2133 = vxpose.xlu0.c.b16.cont [5/8] 0, 128
        %2134 = vxpose.xlu0.c.b16.cont [6/8] 0, 128
        %2135 = vxpose.xlu0.c.b16.cont [7/8] 0, 128
        %2136 = vxpose.xlu0.c.b16.end [8/8] 0, 128
        %v2137 = vpop.trf.xlu0
        %v2138 = vpop.trf.xlu0
        %v2139 = vpop.trf.xlu0
        %v2140 = vpop.trf.xlu0
        %v2141 = vpop.trf.xlu0
        %v2142 = vpop.trf.xlu0
        %v2143 = vpop.trf.xlu0
        %v2144 = vpop.trf.xlu0
        %2145 = vxpose.xlu0.c.b16.start [1/8] %v2055, 128
        %2146 = vxpose.xlu0.c.b16.cont [2/8] 0, 128
        %2147 = vxpose.xlu0.c.b16.cont [3/8] 0, 128
        %2148 = vxpose.xlu0.c.b16.cont [4/8] 0, 128
        %2149 = vxpose.xlu0.c.b16.cont [5/8] 0, 128
        %2150 = vxpose.xlu0.c.b16.cont [6/8] 0, 128
        %2151 = vxpose.xlu0.c.b16.cont [7/8] 0, 128
        %2152 = vxpose.xlu0.c.b16.end [8/8] 0, 128
        %v2153 = vpop.trf.xlu0
        %v2154 = vpop.trf.xlu0
        %v2155 = vpop.trf.xlu0
        %v2156 = vpop.trf.xlu0
        %v2157 = vpop.trf.xlu0
        %v2158 = vpop.trf.xlu0
        %v2159 = vpop.trf.xlu0
        %v2160 = vpop.trf.xlu0
        %2161 = vxpose.xlu0.c.b16.start [1/8] %v2059, 128
        %2162 = vxpose.xlu0.c.b16.cont [2/8] 0, 128
        %2163 = vxpose.xlu0.c.b16.cont [3/8] 0, 128
        %2164 = vxpose.xlu0.c.b16.cont [4/8] 0, 128
        %2165 = vxpose.xlu0.c.b16.cont [5/8] 0, 128
        %2166 = vxpose.xlu0.c.b16.cont [6/8] 0, 128
        %2167 = vxpose.xlu0.c.b16.cont [7/8] 0, 128
        %2168 = vxpose.xlu0.c.b16.end [8/8] 0, 128
        %v2169 = vpop.trf.xlu0
        %v2170 = vpop.trf.xlu0
        %v2171 = vpop.trf.xlu0
        %v2172 = vpop.trf.xlu0
        %v2173 = vpop.trf.xlu0
        %v2174 = vpop.trf.xlu0
        %v2175 = vpop.trf.xlu0
        %v2176 = vpop.trf.xlu0
        %2177 = vxpose.xlu0.c.b16.start [1/8] %v2063, 128
        %2178 = vxpose.xlu0.c.b16.cont [2/8] 0, 128
        %2179 = vxpose.xlu0.c.b16.cont [3/8] 0, 128
        %2180 = vxpose.xlu0.c.b16.cont [4/8] 0, 128
        %2181 = vxpose.xlu0.c.b16.cont [5/8] 0, 128
        %2182 = vxpose.xlu0.c.b16.cont [6/8] 0, 128
        %2183 = vxpose.xlu0.c.b16.cont [7/8] 0, 128
        %2184 = vxpose.xlu0.c.b16.end [8/8] 0, 128
        %v2185 = vpop.trf.xlu0
        %v2186 = vpop.trf.xlu0
        %v2187 = vpop.trf.xlu0
        %v2188 = vpop.trf.xlu0
        %v2189 = vpop.trf.xlu0
        %v2190 = vpop.trf.xlu0
        %v2191 = vpop.trf.xlu0
        %v2192 = vpop.trf.xlu0
        %v2193 = vrot.slane %v2137, 4
        %v2194 = vsel %vm1561, %v2193, %v2073
        %v2196 = vunpack.c.l.s4 1983009808
        %v2197 = vunpack.c.0.s8 %v2196
        %v2198 = vperm.slane %v2194, %v2197
        %v2199 = vrot.slane %v2169, 4
        %v2200 = vsel %vm1561, %v2199, %v2105
        %v2202 = vunpack.c.l.s4 1983009808
        %v2203 = vunpack.c.0.s8 %v2202
        %v2204 = vperm.slane %v2200, %v2203
        %v2205 = vrot.slane %v2204, 4
        %v2206 = vsel %vm1561, %v2205, %v2198
        %v2208 = vunpack.c.l.s4 1934713408
        %v2209 = vunpack.c.0.s8 %v2208
        %v2210 = vperm.slane %v2206, %v2209
        %v2211 = vrot.slane %v2210, 4
        %v2212 = vsel %vm1561, 0, %v2211
        %v2213 = vrot.slane %v2153, 4
        %v2214 = vsel %vm1561, %v2213, %v2089
        %v2216 = vunpack.c.l.s4 1983009808
        %v2217 = vunpack.c.0.s8 %v2216
        %v2218 = vperm.slane %v2214, %v2217
        %v2219 = vrot.slane %v2185, 4
        %v2220 = vsel %vm1561, %v2219, %v2121
        %v2222 = vunpack.c.l.s4 1983009808
        %v2223 = vunpack.c.0.s8 %v2222
        %v2224 = vperm.slane %v2220, %v2223
        %v2225 = vrot.slane %v2224, 4
        %v2226 = vsel %vm1561, %v2225, %v2218
        %v2228 = vunpack.c.l.s4 1934713408
        %v2229 = vunpack.c.0.s8 %v2228
        %v2230 = vperm.slane %v2226, %v2229
        %v2231 = vrot.slane %v2230, 4
        %v2232 = vsel %vm1561, 0, %v2231
        %v2235 = vpack.i.b16 %v2230, %v2210
        %v2236 = vshrl.u32 %v2210, 16
        %v2237 = vshrl.u32 %v2230, 16
        %v2238 = vpack.i.b16 %v2237, %v2236
        %v2241 = vpack.i.b16 %v2232, %v2212
        %v2242 = vshrl.u32 %v2212, 16
        %v2243 = vshrl.u32 %v2232, 16
        %v2244 = vpack.i.b16 %v2243, %v2242
        %v2245 = vunpack.c.l.b16 %v1643
        %v2246 = vunpack.c.l.b16 %v1655
        %v2247 = vpack.c.b16 %v2246, %v2245
        %vm2248 = vcmask 64512
        %v2250 = vsel %vm2248, %v2247, 0
        %vm2252 = vcmask 1043456
        %v2254 = vsel %vm2252, %v2235, 0
        %2256 = vmatpush.bf16.msra.mxu0 0
        %2257 = vmatpush.bf16.msra.mxu0 0
        %2258 = vmatpush.bf16.msra.mxu0 0
        %2259 = vmatpush.bf16.msra.mxu0 0
        %2260 = vmatpush.bf16.msra.mxu0 0
        %2261 = vmatpush.bf16.msra.mxu0 0
        %2262 = vmatpush.bf16.msra.mxu0 0
        %2263 = vmatpush.bf16.msra.mxu0 %v2254
        %2264 = vmatmul.bf16.gmra.mxu0 %v2250
        %v2265 = vpop.f32.mrf.mxu0
        %v2266 = vadd.f32 0.0, %v2265
        %v2267 = vpop.f32.mrf.mxu0
        %v2268 = vadd.f32 0.0, %v2267
        %2269 = vdwg.mxu0
        %v2270 = vunpack.c.l.b16 %v1646
        %v2271 = vunpack.c.l.b16 %v1658
        %v2272 = vpack.c.b16 %v2271, %v2270
        %v2274 = vsel %vm2248, %v2272, 0
        %v2277 = vsel %vm2252, %v2238, 0
        %2279 = vmatpush.bf16.msra.mxu0 0
        %2280 = vmatpush.bf16.msra.mxu0 0
        %2281 = vmatpush.bf16.msra.mxu0 0
        %2282 = vmatpush.bf16.msra.mxu0 0
        %2283 = vmatpush.bf16.msra.mxu0 0
        %2284 = vmatpush.bf16.msra.mxu0 0
        %2285 = vmatpush.bf16.msra.mxu0 0
        %2286 = vmatpush.bf16.msra.mxu0 %v2277
        %2287 = vmatmul.bf16.gmra.mxu0 %v2274
        %v2288 = vpop.f32.mrf.mxu0
        %v2289 = vadd.f32 0.0, %v2288
        %v2290 = vpop.f32.mrf.mxu0
        %v2291 = vadd.f32 0.0, %v2290
        %2292 = vdwg.mxu0
        %v2293 = vunpack.c.l.b16 %v1649
        %v2294 = vunpack.c.l.b16 %v1661
        %v2295 = vpack.c.b16 %v2294, %v2293
        %v2297 = vsel %vm2248, %v2295, 0
        %v2300 = vsel %vm2252, %v2241, 0
        %2302 = vmatpush.bf16.msra.mxu0 0
        %2303 = vmatpush.bf16.msra.mxu0 0
        %2304 = vmatpush.bf16.msra.mxu0 0
        %2305 = vmatpush.bf16.msra.mxu0 0
        %2306 = vmatpush.bf16.msra.mxu0 0
        %2307 = vmatpush.bf16.msra.mxu0 0
        %2308 = vmatpush.bf16.msra.mxu0 0
        %2309 = vmatpush.bf16.msra.mxu0 %v2300
        %2310 = vmatmul.bf16.gmra.mxu0 %v2297
        %v2311 = vpop.f32.mrf.mxu0
        %v2312 = vadd.f32 0.0, %v2311
        %v2313 = vpop.f32.mrf.mxu0
        %v2314 = vadd.f32 0.0, %v2313
        %2315 = vdwg.mxu0
        %v2316 = vunpack.c.l.b16 %v1652
        %v2317 = vunpack.c.l.b16 %v1664
        %v2318 = vpack.c.b16 %v2317, %v2316
        %v2320 = vsel %vm2248, %v2318, 0
        %v2323 = vsel %vm2252, %v2244, 0
        %2325 = vmatpush.bf16.msra.mxu0 0
        %2326 = vmatpush.bf16.msra.mxu0 0
        %2327 = vmatpush.bf16.msra.mxu0 0
        %2328 = vmatpush.bf16.msra.mxu0 0
        %2329 = vmatpush.bf16.msra.mxu0 0
        %2330 = vmatpush.bf16.msra.mxu0 0
        %2331 = vmatpush.bf16.msra.mxu0 0
        %2332 = vmatpush.bf16.msra.mxu0 %v2323
        %2333 = vmatmul.bf16.gmra.mxu0 %v2320
        %v2334 = vpop.f32.mrf.mxu0
        %v2335 = vadd.f32 0.0, %v2334
        %v2336 = vpop.f32.mrf.mxu0
        %v2337 = vadd.f32 0.0, %v2336
        %2338 = vdwg.mxu0
        %vm2339 = vcmask 130048
        %v2340 = vsel %vm2339, %v2266, -inf
        %2341 = vmax.xlane.f32.xlu0 %v2340
        %v2342 = vpop.xlane.xlu0 %2341
        %v2343 = vsel %vm2339, %v2268, -inf
        %2344 = vmax.xlane.f32.xlu0 %v2343
        %v2345 = vpop.xlane.xlu0 %2344
        %v2346 = vsel %vm2339, %v2289, -inf
        %2347 = vmax.xlane.f32.xlu0 %v2346
        %v2348 = vpop.xlane.xlu0 %2347
        %v2349 = vsel %vm2339, %v2291, -inf
        %2350 = vmax.xlane.f32.xlu0 %v2349
        %v2351 = vpop.xlane.xlu0 %2350
        %v2352 = vsel %vm2339, %v2312, -inf
        %2353 = vmax.xlane.f32.xlu0 %v2352
        %v2354 = vpop.xlane.xlu0 %2353
        %v2355 = vsel %vm2339, %v2314, -inf
        %2356 = vmax.xlane.f32.xlu0 %v2355
        %v2357 = vpop.xlane.xlu0 %2356
        %v2358 = vsel %vm2339, %v2335, -inf
        %2359 = vmax.xlane.f32.xlu0 %v2358
        %v2360 = vpop.xlane.xlu0 %2359
        %v2361 = vsel %vm2339, %v2337, -inf
        %2362 = vmax.xlane.f32.xlu0 %v2361
        %v2363 = vpop.xlane.xlu0 %2362
        %v2364 = vsub.f32 %v2266, %v2342
        %v2365 = vsub.f32 %v2268, %v2345
        %v2366 = vsub.f32 %v2289, %v2348
        %v2367 = vsub.f32 %v2291, %v2351
        %v2368 = vsub.f32 %v2312, %v2354
        %v2369 = vsub.f32 %v2314, %v2357
        %v2370 = vsub.f32 %v2335, %v2360
        %v2371 = vsub.f32 %v2337, %v2363
        %v2372 = vmul.f32 %v2364, 1.442695
        %v2373 = vpow.pop %v2372
        %v2374 = vmul.f32 %v2365, 1.442695
        %v2375 = vpow.pop %v2374
        %v2376 = vmul.f32 %v2366, 1.442695
        %v2377 = vpow.pop %v2376
        %v2378 = vmul.f32 %v2367, 1.442695
        %v2379 = vpow.pop %v2378
        %v2380 = vmul.f32 %v2368, 1.442695
        %v2381 = vpow.pop %v2380
        %v2382 = vmul.f32 %v2369, 1.442695
        %v2383 = vpow.pop %v2382
        %v2384 = vmul.f32 %v2370, 1.442695
        %v2385 = vpow.pop %v2384
        %v2386 = vmul.f32 %v2371, 1.442695
        %v2387 = vpow.pop %v2386
        %v2388 = vsel %vm2339, %v2373, 0.0
        %2389 = vadd.xlane.f32.xlu0 %v2388
        %v2390 = vpop.xlane.xlu0 %2389
        %v2391 = vsel %vm2339, %v2375, 0.0
        %2392 = vadd.xlane.f32.xlu0 %v2391
        %v2393 = vpop.xlane.xlu0 %2392
        %v2394 = vsel %vm2339, %v2377, 0.0
        %2395 = vadd.xlane.f32.xlu0 %v2394
        %v2396 = vpop.xlane.xlu0 %2395
        %v2397 = vsel %vm2339, %v2379, 0.0
        %2398 = vadd.xlane.f32.xlu0 %v2397
        %v2399 = vpop.xlane.xlu0 %2398
        %v2400 = vsel %vm2339, %v2381, 0.0
        %2401 = vadd.xlane.f32.xlu0 %v2400
        %v2402 = vpop.xlane.xlu0 %2401
        %v2403 = vsel %vm2339, %v2383, 0.0
        %2404 = vadd.xlane.f32.xlu0 %v2403
        %v2405 = vpop.xlane.xlu0 %2404
        %v2406 = vsel %vm2339, %v2385, 0.0
        %2407 = vadd.xlane.f32.xlu0 %v2406
        %v2408 = vpop.xlane.xlu0 %2407
        %v2409 = vsel %vm2339, %v2387, 0.0
        %2410 = vadd.xlane.f32.xlu0 %v2409
        %v2411 = vpop.xlane.xlu0 %2410
        %v2412 = vpack.c.bf16 %v2373, %v2373
        %v2413 = vpack.c.bf16 %v2375, %v2375
        %v2414 = vpack.c.bf16 %v2377, %v2377
        %v2415 = vpack.c.bf16 %v2379, %v2379
        %v2416 = vpack.c.bf16 %v2381, %v2381
        %v2417 = vpack.c.bf16 %v2383, %v2383
        %v2418 = vpack.c.bf16 %v2385, %v2385
        %v2419 = vpack.c.bf16 %v2387, %v2387
        %v2420 = vpack.c.bf16 %v1447, %v1447
        %v2421 = vpack.c.bf16 %v1465, %v1465
        %v2422 = vpack.c.bf16 %v1451, %v1451
        %v2423 = vpack.c.bf16 %v1467, %v1467
        %v2424 = vpack.c.bf16 %v1459, %v1459
        %v2425 = vpack.c.bf16 %v1469, %v1469
        %v2426 = vpack.c.bf16 %v1463, %v1463
        %v2427 = vpack.c.bf16 %v1471, %v1471
        %v2428 = vpack.c.bf16 %v1503, %v1503
        %v2429 = vpack.c.bf16 %v1521, %v1521
        %v2430 = vpack.c.bf16 %v1507, %v1507
        %v2431 = vpack.c.bf16 %v1523, %v1523
        %v2432 = vpack.c.bf16 %v1515, %v1515
        %v2433 = vpack.c.bf16 %v1525, %v1525
        %v2434 = vpack.c.bf16 %v1519, %v1519
        %v2435 = vpack.c.bf16 %v1527, %v1527
        %v2436 = vrot.slane %v2424, 4
        %v2437 = vsel %vm1561, %v2436, %v2420
        %v2439 = vunpack.c.l.s4 1983009808
        %v2440 = vunpack.c.0.s8 %v2439
        %v2441 = vperm.slane %v2437, %v2440
        %v2442 = vrot.slane %v2426, 4
        %v2443 = vsel %vm1561, %v2442, %v2422
        %v2445 = vunpack.c.l.s4 1983009808
        %v2446 = vunpack.c.0.s8 %v2445
        %v2447 = vperm.slane %v2443, %v2446
        %v2448 = vrot.slane %v2447, 4
        %v2449 = vsel %vm1561, %v2448, %v2441
        %v2451 = vunpack.c.l.s4 1934713408
        %v2452 = vunpack.c.0.s8 %v2451
        %v2453 = vperm.slane %v2449, %v2452
        %v2454 = vrot.slane %v2453, 4
        %v2455 = vsel %vm1561, 0, %v2454
        %v2456 = vrot.slane %v2425, 4
        %v2457 = vsel %vm1561, %v2456, %v2421
        %v2459 = vunpack.c.l.s4 1983009808
        %v2460 = vunpack.c.0.s8 %v2459
        %v2461 = vperm.slane %v2457, %v2460
        %v2462 = vrot.slane %v2427, 4
        %v2463 = vsel %vm1561, %v2462, %v2423
        %v2465 = vunpack.c.l.s4 1983009808
        %v2466 = vunpack.c.0.s8 %v2465
        %v2467 = vperm.slane %v2463, %v2466
        %v2468 = vrot.slane %v2467, 4
        %v2469 = vsel %vm1561, %v2468, %v2461
        %v2471 = vunpack.c.l.s4 1934713408
        %v2472 = vunpack.c.0.s8 %v2471
        %v2473 = vperm.slane %v2469, %v2472
        %v2474 = vrot.slane %v2473, 4
        %v2475 = vsel %vm1561, 0, %v2474
        %v2476 = vrot.slane %v2432, 4
        %v2477 = vsel %vm1561, %v2476, %v2428
        %v2479 = vunpack.c.l.s4 1983009808
        %v2480 = vunpack.c.0.s8 %v2479
        %v2481 = vperm.slane %v2477, %v2480
        %v2482 = vrot.slane %v2434, 4
        %v2483 = vsel %vm1561, %v2482, %v2430
        %v2485 = vunpack.c.l.s4 1983009808
        %v2486 = vunpack.c.0.s8 %v2485
        %v2487 = vperm.slane %v2483, %v2486
        %v2488 = vrot.slane %v2487, 4
        %v2489 = vsel %vm1561, %v2488, %v2481
        %v2491 = vunpack.c.l.s4 1934713408
        %v2492 = vunpack.c.0.s8 %v2491
        %v2493 = vperm.slane %v2489, %v2492
        %v2494 = vrot.slane %v2493, 4
        %v2495 = vsel %vm1561, 0, %v2494
        %v2496 = vrot.slane %v2433, 4
        %v2497 = vsel %vm1561, %v2496, %v2429
        %v2499 = vunpack.c.l.s4 1983009808
        %v2500 = vunpack.c.0.s8 %v2499
        %v2501 = vperm.slane %v2497, %v2500
        %v2502 = vrot.slane %v2435, 4
        %v2503 = vsel %vm1561, %v2502, %v2431
        %v2505 = vunpack.c.l.s4 1983009808
        %v2506 = vunpack.c.0.s8 %v2505
        %v2507 = vperm.slane %v2503, %v2506
        %v2508 = vrot.slane %v2507, 4
        %v2509 = vsel %vm1561, %v2508, %v2501
        %v2511 = vunpack.c.l.s4 1934713408
        %v2512 = vunpack.c.0.s8 %v2511
        %v2513 = vperm.slane %v2509, %v2512
        %v2514 = vrot.slane %v2513, 4
        %v2515 = vsel %vm1561, 0, %v2514
        %v2518 = vpack.i.b16 %v2473, %v2453
        %v2519 = vshrl.u32 %v2453, 16
        %v2520 = vshrl.u32 %v2473, 16
        %v2521 = vpack.i.b16 %v2520, %v2519
        %v2524 = vpack.i.b16 %v2475, %v2455
        %v2525 = vshrl.u32 %v2455, 16
        %v2526 = vshrl.u32 %v2475, 16
        %v2527 = vpack.i.b16 %v2526, %v2525
        %v2530 = vpack.i.b16 %v2513, %v2493
        %v2531 = vshrl.u32 %v2493, 16
        %v2532 = vshrl.u32 %v2513, 16
        %v2533 = vpack.i.b16 %v2532, %v2531
        %v2536 = vpack.i.b16 %v2515, %v2495
        %v2537 = vshrl.u32 %v2495, 16
        %v2538 = vshrl.u32 %v2515, 16
        %v2539 = vpack.i.b16 %v2538, %v2537
        %v2542 = vunpack.c.l.b16 %v2412
        %v2543 = vunpack.c.l.b16 %v2413
        %v2544 = vpack.c.b16 %v2543, %v2542
        %v2545 = vunpack.c.l.b16 %v2518
        %v2546 = vunpack.c.l.b16 %v2530
        %v2547 = vpack.c.b16 %v2546, %v2545
        %v2550 = vsel %vm2339, %v2544, 0
        %2552 = vmatpush.bf16.msra.mxu0 0
        %2553 = vmatpush.bf16.msra.mxu0 0
        %2554 = vmatpush.bf16.msra.mxu0 0
        %2555 = vmatpush.bf16.msra.mxu0 0
        %2556 = vmatpush.bf16.msra.mxu0 0
        %2557 = vmatpush.bf16.msra.mxu0 0
        %2558 = vmatpush.bf16.msra.mxu0 0
        %2559 = vmatpush.bf16.msra.mxu0 %v2547
        %2560 = vmatmul.bf16.gmra.mxu0 %v2550
        %v2561 = vpop.f32.mrf.mxu0
        %v2562 = vadd.f32 0.0, %v2561
        %v2563 = vpop.f32.mrf.mxu0
        %v2564 = vadd.f32 0.0, %v2563
        %2565 = vdwg.mxu0
        %v2568 = vunpack.c.l.b16 %v2414
        %v2569 = vunpack.c.l.b16 %v2415
        %v2570 = vpack.c.b16 %v2569, %v2568
        %v2571 = vunpack.c.l.b16 %v2521
        %v2572 = vunpack.c.l.b16 %v2533
        %v2573 = vpack.c.b16 %v2572, %v2571
        %v2576 = vsel %vm2339, %v2570, 0
        %2578 = vmatpush.bf16.msra.mxu0 0
        %2579 = vmatpush.bf16.msra.mxu0 0
        %2580 = vmatpush.bf16.msra.mxu0 0
        %2581 = vmatpush.bf16.msra.mxu0 0
        %2582 = vmatpush.bf16.msra.mxu0 0
        %2583 = vmatpush.bf16.msra.mxu0 0
        %2584 = vmatpush.bf16.msra.mxu0 0
        %2585 = vmatpush.bf16.msra.mxu0 %v2573
        %2586 = vmatmul.bf16.gmra.mxu0 %v2576
        %v2587 = vpop.f32.mrf.mxu0
        %v2588 = vadd.f32 0.0, %v2587
        %v2589 = vpop.f32.mrf.mxu0
        %v2590 = vadd.f32 0.0, %v2589
        %2591 = vdwg.mxu0
        %v2594 = vunpack.c.l.b16 %v2416
        %v2595 = vunpack.c.l.b16 %v2417
        %v2596 = vpack.c.b16 %v2595, %v2594
        %v2597 = vunpack.c.l.b16 %v2524
        %v2598 = vunpack.c.l.b16 %v2536
        %v2599 = vpack.c.b16 %v2598, %v2597
        %v2602 = vsel %vm2339, %v2596, 0
        %2604 = vmatpush.bf16.msra.mxu0 0
        %2605 = vmatpush.bf16.msra.mxu0 0
        %2606 = vmatpush.bf16.msra.mxu0 0
        %2607 = vmatpush.bf16.msra.mxu0 0
        %2608 = vmatpush.bf16.msra.mxu0 0
        %2609 = vmatpush.bf16.msra.mxu0 0
        %2610 = vmatpush.bf16.msra.mxu0 0
        %2611 = vmatpush.bf16.msra.mxu0 %v2599
        %2612 = vmatmul.bf16.gmra.mxu0 %v2602
        %v2613 = vpop.f32.mrf.mxu0
        %v2614 = vadd.f32 0.0, %v2613
        %v2615 = vpop.f32.mrf.mxu0
        %v2616 = vadd.f32 0.0, %v2615
        %2617 = vdwg.mxu0
        %v2620 = vunpack.c.l.b16 %v2418
        %v2621 = vunpack.c.l.b16 %v2419
        %v2622 = vpack.c.b16 %v2621, %v2620
        %v2623 = vunpack.c.l.b16 %v2527
        %v2624 = vunpack.c.l.b16 %v2539
        %v2625 = vpack.c.b16 %v2624, %v2623
        %v2628 = vsel %vm2339, %v2622, 0
        %2630 = vmatpush.bf16.msra.mxu0 0
        %2631 = vmatpush.bf16.msra.mxu0 0
        %2632 = vmatpush.bf16.msra.mxu0 0
        %2633 = vmatpush.bf16.msra.mxu0 0
        %2634 = vmatpush.bf16.msra.mxu0 0
        %2635 = vmatpush.bf16.msra.mxu0 0
        %2636 = vmatpush.bf16.msra.mxu0 0
        %2637 = vmatpush.bf16.msra.mxu0 %v2625
        %2638 = vmatmul.bf16.gmra.mxu0 %v2628
        %v2639 = vpop.f32.mrf.mxu0
        %v2640 = vadd.f32 0.0, %v2639
        %v2641 = vpop.f32.mrf.mxu0
        %v2642 = vadd.f32 0.0, %v2641
        %2643 = vdwg.mxu0
        %v2644 = vrcp.pop %v2390
        %v2645 = vrcp.pop %v2393
        %v2646 = vrcp.pop %v2396
        %v2647 = vrcp.pop %v2399
        %v2648 = vrcp.pop %v2402
        %v2649 = vrcp.pop %v2405
        %v2650 = vrcp.pop %v2408
        %v2651 = vrcp.pop %v2411
        %v2652 = vmul.f32 %v2562, %v2644
        %v2653 = vmul.f32 %v2564, %v2645
        %v2654 = vmul.f32 %v2588, %v2646
        %v2655 = vmul.f32 %v2590, %v2647
        %v2656 = vmul.f32 %v2614, %v2648
        %v2657 = vmul.f32 %v2616, %v2649
        %v2658 = vmul.f32 %v2640, %v2650
        %v2659 = vmul.f32 %v2642, %v2651
        %v2660 = vrot.slane %v2656, 4
        %v2661 = vsel %vm1152, %v2660, %v2652
        %v2662 = vrot.slane %v2652, 4
        %v2663 = vsel %vm1152, %v2656, %v2662
        %v2665 = vunpack.c.l.s4 1983009808
        %v2666 = vunpack.c.0.s8 %v2665
        %v2667 = vperm.slane %v2661, %v2666
        %v2669 = vunpack.c.l.s4 1983009808
        %v2670 = vunpack.c.0.s8 %v2669
        %v2671 = vperm.slane %v2663, %v2670
        %v2672 = vrot.slane %v2658, 4
        %v2673 = vsel %vm1152, %v2672, %v2654
        %v2674 = vrot.slane %v2654, 4
        %v2675 = vsel %vm1152, %v2658, %v2674
        %v2677 = vunpack.c.l.s4 1983009808
        %v2678 = vunpack.c.0.s8 %v2677
        %v2679 = vperm.slane %v2673, %v2678
        %v2681 = vunpack.c.l.s4 1983009808
        %v2682 = vunpack.c.0.s8 %v2681
        %v2683 = vperm.slane %v2675, %v2682
        %v2684 = vrot.slane %v2679, 4
        %v2685 = vsel %vm1152, %v2684, %v2667
        %v2686 = vrot.slane %v2667, 4
        %v2687 = vsel %vm1152, %v2679, %v2686
        %v2689 = vunpack.c.l.s4 1934713408
        %v2690 = vunpack.c.0.s8 %v2689
        %v2691 = vperm.slane %v2685, %v2690
        %v2693 = vunpack.c.l.s4 1934713408
        %v2694 = vunpack.c.0.s8 %v2693
        %v2695 = vperm.slane %v2687, %v2694
        %v2696 = vrot.slane %v2683, 4
        %v2697 = vsel %vm1152, %v2696, %v2671
        %v2698 = vrot.slane %v2671, 4
        %v2699 = vsel %vm1152, %v2683, %v2698
        %v2701 = vunpack.c.l.s4 1934713408
        %v2702 = vunpack.c.0.s8 %v2701
        %v2703 = vperm.slane %v2697, %v2702
        %v2705 = vunpack.c.l.s4 1934713408
        %v2706 = vunpack.c.0.s8 %v2705
        %v2707 = vperm.slane %v2699, %v2706
        %v2708 = vrot.slane %v2691, 4
        %v2709 = vsel %vm1152, 0.0, %v2708
        %v2710 = vrot.slane %v2695, 4
        %v2711 = vsel %vm1152, 0.0, %v2710
        %v2712 = vrot.slane %v2703, 4
        %v2713 = vsel %vm1152, 0.0, %v2712
        %v2714 = vrot.slane %v2707, 4
        %v2715 = vsel %vm1152, 0.0, %v2714
        %v2716 = vrot.slane %v2657, 4
        %v2717 = vsel %vm1152, %v2716, %v2653
        %v2718 = vrot.slane %v2653, 4
        %v2719 = vsel %vm1152, %v2657, %v2718
        %v2721 = vunpack.c.l.s4 1983009808
        %v2722 = vunpack.c.0.s8 %v2721
        %v2723 = vperm.slane %v2717, %v2722
        %v2725 = vunpack.c.l.s4 1983009808
        %v2726 = vunpack.c.0.s8 %v2725
        %v2727 = vperm.slane %v2719, %v2726
        %v2728 = vrot.slane %v2659, 4
        %v2729 = vsel %vm1152, %v2728, %v2655
        %v2730 = vrot.slane %v2655, 4
        %v2731 = vsel %vm1152, %v2659, %v2730
        %v2733 = vunpack.c.l.s4 1983009808
        %v2734 = vunpack.c.0.s8 %v2733
        %v2735 = vperm.slane %v2729, %v2734
        %v2737 = vunpack.c.l.s4 1983009808
        %v2738 = vunpack.c.0.s8 %v2737
        %v2739 = vperm.slane %v2731, %v2738
        %v2740 = vrot.slane %v2735, 4
        %v2741 = vsel %vm1152, %v2740, %v2723
        %v2742 = vrot.slane %v2723, 4
        %v2743 = vsel %vm1152, %v2735, %v2742
        %v2745 = vunpack.c.l.s4 1934713408
        %v2746 = vunpack.c.0.s8 %v2745
        %v2747 = vperm.slane %v2741, %v2746
        %v2749 = vunpack.c.l.s4 1934713408
        %v2750 = vunpack.c.0.s8 %v2749
        %v2751 = vperm.slane %v2743, %v2750
        %v2752 = vrot.slane %v2739, 4
        %v2753 = vsel %vm1152, %v2752, %v2727
        %v2754 = vrot.slane %v2727, 4
        %v2755 = vsel %vm1152, %v2739, %v2754
        %v2757 = vunpack.c.l.s4 1934713408
        %v2758 = vunpack.c.0.s8 %v2757
        %v2759 = vperm.slane %v2753, %v2758
        %v2761 = vunpack.c.l.s4 1934713408
        %v2762 = vunpack.c.0.s8 %v2761
        %v2763 = vperm.slane %v2755, %v2762
        %v2764 = vrot.slane %v2747, 4
        %v2765 = vsel %vm1152, 0.0, %v2764
        %v2766 = vrot.slane %v2751, 4
        %v2767 = vsel %vm1152, 0.0, %v2766
        %v2768 = vrot.slane %v2759, 4
        %v2769 = vsel %vm1152, 0.0, %v2768
        %v2770 = vrot.slane %v2763, 4
        %v2771 = vsel %vm1152, 0.0, %v2770
        %v2772 = vsel %vm1152, %v2710, %v2691
        %v2774 = vunpack.c.l.s4 1983009808
        %v2775 = vunpack.c.0.s8 %v2774
        %v2776 = vperm.slane %v2772, %v2775
        %v2777 = vrot.slane %v2711, 4
        %v2778 = vsel %vm1152, %v2777, %v2709
        %v2780 = vunpack.c.l.s4 1983009808
        %v2781 = vunpack.c.0.s8 %v2780
        %v2782 = vperm.slane %v2778, %v2781
        %v2783 = vsel %vm1152, %v2714, %v2703
        %v2785 = vunpack.c.l.s4 1983009808
        %v2786 = vunpack.c.0.s8 %v2785
        %v2787 = vperm.slane %v2783, %v2786
        %v2788 = vrot.slane %v2715, 4
        %v2789 = vsel %vm1152, %v2788, %v2713
        %v2791 = vunpack.c.l.s4 1983009808
        %v2792 = vunpack.c.0.s8 %v2791
        %v2793 = vperm.slane %v2789, %v2792
        %v2794 = vrot.slane %v2782, 4
        %v2795 = vsel %vm1152, %v2794, %v2776
        %v2796 = vrot.slane %v2776, 4
        %v2797 = vsel %vm1152, %v2782, %v2796
        %v2799 = vunpack.c.l.s4 1934713408
        %v2800 = vunpack.c.0.s8 %v2799
        %v2801 = vperm.slane %v2795, %v2800
        %v2803 = vunpack.c.l.s4 1934713408
        %v2804 = vunpack.c.0.s8 %v2803
        %v2805 = vperm.slane %v2797, %v2804
        %v2806 = vrot.slane %v2793, 4
        %v2807 = vsel %vm1152, %v2806, %v2787
        %v2808 = vrot.slane %v2787, 4
        %v2809 = vsel %vm1152, %v2793, %v2808
        %v2811 = vunpack.c.l.s4 1934713408
        %v2812 = vunpack.c.0.s8 %v2811
        %v2813 = vperm.slane %v2807, %v2812
        %v2815 = vunpack.c.l.s4 1934713408
        %v2816 = vunpack.c.0.s8 %v2815
        %v2817 = vperm.slane %v2809, %v2816
        %v2818 = vrot.slane %v2813, 4
        %v2819 = vsel %vm1152, %v2818, %v2801
        %v2820 = vrot.slane %v2801, 4
        %v2821 = vsel %vm1152, %v2813, %v2820
        %v2822 = vrot.slane %v2817, 4
        %v2823 = vsel %vm1152, %v2822, %v2805
        %v2824 = vrot.slane %v2805, 4
        %v2825 = vsel %vm1152, %v2817, %v2824
        %v2826 = vsel %vm1152, %v2766, %v2747
        %v2828 = vunpack.c.l.s4 1983009808
        %v2829 = vunpack.c.0.s8 %v2828
        %v2830 = vperm.slane %v2826, %v2829
        %v2831 = vrot.slane %v2767, 4
        %v2832 = vsel %vm1152, %v2831, %v2765
        %v2834 = vunpack.c.l.s4 1983009808
        %v2835 = vunpack.c.0.s8 %v2834
        %v2836 = vperm.slane %v2832, %v2835
        %v2837 = vsel %vm1152, %v2770, %v2759
        %v2839 = vunpack.c.l.s4 1983009808
        %v2840 = vunpack.c.0.s8 %v2839
        %v2841 = vperm.slane %v2837, %v2840
        %v2842 = vrot.slane %v2771, 4
        %v2843 = vsel %vm1152, %v2842, %v2769
        %v2845 = vunpack.c.l.s4 1983009808
        %v2846 = vunpack.c.0.s8 %v2845
        %v2847 = vperm.slane %v2843, %v2846
        %v2848 = vrot.slane %v2836, 4
        %v2849 = vsel %vm1152, %v2848, %v2830
        %v2850 = vrot.slane %v2830, 4
        %v2851 = vsel %vm1152, %v2836, %v2850
        %v2853 = vunpack.c.l.s4 1934713408
        %v2854 = vunpack.c.0.s8 %v2853
        %v2855 = vperm.slane %v2849, %v2854
        %v2857 = vunpack.c.l.s4 1934713408
        %v2858 = vunpack.c.0.s8 %v2857
        %v2859 = vperm.slane %v2851, %v2858
        %v2860 = vrot.slane %v2847, 4
        %v2861 = vsel %vm1152, %v2860, %v2841
        %v2862 = vrot.slane %v2841, 4
        %v2863 = vsel %vm1152, %v2847, %v2862
        %v2865 = vunpack.c.l.s4 1934713408
        %v2866 = vunpack.c.0.s8 %v2865
        %v2867 = vperm.slane %v2861, %v2866
        %v2869 = vunpack.c.l.s4 1934713408
        %v2870 = vunpack.c.0.s8 %v2869
        %v2871 = vperm.slane %v2863, %v2870
        %v2872 = vrot.slane %v2867, 4
        %v2873 = vsel %vm1152, %v2872, %v2855
        %v2874 = vrot.slane %v2855, 4
        %v2875 = vsel %vm1152, %v2867, %v2874
        %v2876 = vrot.slane %v2871, 4
        %v2877 = vsel %vm1152, %v2876, %v2859
        %v2878 = vrot.slane %v2859, 4
        %v2879 = vsel %vm1152, %v2871, %v2878
        %2882 = vrot.lane.b32.xlu0 %v2821, 8
        %v2883 = vpop.permute.xlu0 %2882
        %2884 = vrot.lane.b32.xlu0 %v2875, 8
        %v2885 = vpop.permute.xlu0 %2884
        %2890 = vrot.lane.b32.xlu0 %v2823, 16
        %v2891 = vpop.permute.xlu0 %2890
        %2892 = vrot.lane.b32.xlu0 %v2877, 16
        %v2893 = vpop.permute.xlu0 %2892
        %2898 = vrot.lane.b32.xlu0 %v2825, 24
        %v2899 = vpop.permute.xlu0 %2898
        %2900 = vrot.lane.b32.xlu0 %v2879, 24
        %v2901 = vpop.permute.xlu0 %2900
        %v2904 = vsel %vm2248, %v2819, %v2883
        %v2905 = vsel %vm2248, %v2873, %v2885
        %v2906 = vsel %vm2339, %v2904, %v2891
        %v2907 = vsel %vm2339, %v2905, %v2893
        %vm2908 = vcmask 195584
        %v2909 = vsel %vm2908, %v2906, %v2899
        %v2910 = vsel %vm2908, %v2907, %v2901
        %v2911 = vpack.c.bf16 %v2910, %v2909
        %v2913 = vperm.slane %v1003, 0
        %v2919 = vunpack.c.l.b16 %v999
        %v2920 = vunpack.c.l.b16 %v1000
        %v2921 = vunpack.c.l.b16 %v1001
        %v2922 = vunpack.c.l.b16 %v1002
        %v2923 = vpack.c.b16 %v2920, %v2919
        %v2924 = vpack.c.b16 %v2922, %v2921
        %v2928 = vsel %vm1053, %v2911, 0
        %2930 = vmatpush.bf16.msra.mxu0 0
        %2931 = vmatpush.bf16.msra.mxu0 0
        %2932 = vmatpush.bf16.msra.mxu0 0
        %2933 = vmatpush.bf16.msra.mxu0 0
        %2934 = vmatpush.bf16.msra.mxu0 0
        %2935 = vmatpush.bf16.msra.mxu0 0
        %2936 = vmatpush.bf16.msra.mxu0 %v2924
        %2937 = vmatpush.bf16.msra.mxu0 %v2923
        %2938 = vmatmul.bf16.gmra.mxu0 %v2928
        %v2939 = vpop.f32.mrf.mxu0
        %v2940 = vadd.f32 %v2913, %v2939
        %v2941 = vpop.f32.mrf.mxu0
        %v2942 = vadd.f32 %v2913, %v2941
        %2943 = vdwg.mxu0
        %v2944 = vadd.f32 %v1035, %v2940
        %v2945 = vadd.f32 %v1036, %v2942
        %v2946 = vsel %vm1053, %v2944, 0.0
        %2947 = vadd.xlane.f32.xlu0 %v2946
        %v2948 = vpop.xlane.xlu0 %2947
        %v2949 = vsel %vm1053, %v2945, 0.0
        %2950 = vadd.xlane.f32.xlu0 %v2949
        %v2951 = vpop.xlane.xlu0 %2950
        %v2952 = vrcp.pop 32.0
        %v2953 = vmul.f32 32.0, %v2952
        %v2954 = vsub.f32 1.0, %v2953
        %v2955 = vmul.f32 %v2952, %v2954
        %v2956 = vadd.f32 %v2952, %v2955
        %vm2957 = vweird.f32 %v2952
        %v2958 = vsel %vm2957, %v2952, %v2956
        %v2959 = vmul.f32 %v2948, %v2958
        %v2960 = vmul.f32 %v2951, %v2958
        %v2961 = vsub.f32 %v2944, %v2959
        %v2962 = vsub.f32 %v2945, %v2960
        %v2963 = vmul.f32 %v2961, %v2961
        %v2964 = vmul.f32 %v2962, %v2962
        %v2965 = vsel %vm1053, %v2963, 0.0
        %2966 = vadd.xlane.f32.xlu0 %v2965
        %v2967 = vpop.xlane.xlu0 %2966
        %v2968 = vsel %vm1053, %v2964, 0.0
        %2969 = vadd.xlane.f32.xlu0 %v2968
        %v2970 = vpop.xlane.xlu0 %2969
        %v2971 = vmul.f32 %v2967, %v2958
        %v2972 = vmul.f32 %v2970, %v2958
        %v2973 = vadd.f32 %v2971, 1e-05
        %v2974 = vadd.f32 %v2972, 1e-05
        %v2975 = vrsqrt.pop %v2973
        %v2976 = vmul.f32 %v2975, %v2973
        %v2977 = vmul.f32 %v2976, %v2975
        %v2978 = vmul.f32 0.5, %v2977
        %v2979 = vsub.f32 1.5, %v2978
        %v2980 = vmul.f32 %v2975, %v2979
        %vm2981 = vweird.f32 %v2973
        %vm2982 = vweird.f32 %v2975
        %vm2983 = vmor %vm2981, %vm2982
        %v2984 = vsel %vm2983, %v2975, %v2980
        %v2985 = vrsqrt.pop %v2974
        %v2986 = vmul.f32 %v2985, %v2974
        %v2987 = vmul.f32 %v2986, %v2985
        %v2988 = vmul.f32 0.5, %v2987
        %v2989 = vsub.f32 1.5, %v2988
        %v2990 = vmul.f32 %v2985, %v2989
        %vm2991 = vweird.f32 %v2974
        %vm2992 = vweird.f32 %v2985
        %vm2993 = vmor %vm2991, %vm2992
        %v2994 = vsel %vm2993, %v2985, %v2990
        %v2995 = vmul.f32 %v2961, %v2984
        %v2996 = vmul.f32 %v2962, %v2994
        %v2998 = vperm.slane %v1004, 0
        %v3000 = vmul.f32 %v2995, %v2998
        %v3001 = vmul.f32 %v2996, %v2998
        %v3003 = vperm.slane %v1005, 0
        %v3005 = vadd.f32 %v3000, %v3003
        %v3006 = vadd.f32 %v3001, %v3003
        %v3007 = vpack.c.bf16 %v3006, %v3005
        %v3009 = vperm.slane %v1010, 0
        %v3015 = vunpack.c.l.b16 %v1006
        %v3016 = vunpack.c.l.b16 %v1007
        %v3017 = vunpack.c.l.b16 %v1008
        %v3018 = vunpack.c.l.b16 %v1009
        %v3019 = vpack.c.b16 %v3016, %v3015
        %v3020 = vpack.c.b16 %v3018, %v3017
        %v3024 = vsel %vm1053, %v3007, 0
        %3026 = vmatpush.bf16.msra.mxu0 0
        %3027 = vmatpush.bf16.msra.mxu0 0
        %3028 = vmatpush.bf16.msra.mxu0 0
        %3029 = vmatpush.bf16.msra.mxu0 0
        %3030 = vmatpush.bf16.msra.mxu0 0
        %3031 = vmatpush.bf16.msra.mxu0 0
        %3032 = vmatpush.bf16.msra.mxu0 %v3020
        %3033 = vmatpush.bf16.msra.mxu0 %v3019
        %3034 = vmatmul.bf16.gmra.mxu0 %v3024
        %v3035 = vpop.f32.mrf.mxu0
        %v3036 = vadd.f32 %v3009, %v3035
        %v3037 = vpop.f32.mrf.mxu0
        %v3038 = vadd.f32 %v3009, %v3037
        %3039 = vdwg.mxu0
        %v3040 = vmax.f32 %v3036, 0.0
        %v3041 = vmax.f32 %v3038, 0.0
        %v3042 = vpack.c.bf16 %v3041, %v3040
        %v3044 = vperm.slane %v1019, 0
        %v3054 = vunpack.c.l.b16 %v1011
        %v3055 = vunpack.c.l.b16 %v1012
        %v3056 = vunpack.c.l.b16 %v1013
        %v3057 = vunpack.c.l.b16 %v1014
        %v3058 = vunpack.c.l.b16 %v1015
        %v3059 = vunpack.c.l.b16 %v1016
        %v3060 = vunpack.c.l.b16 %v1017
        %v3061 = vunpack.c.l.b16 %v1018
        %v3062 = vpack.c.b16 %v3055, %v3054
        %v3063 = vpack.c.b16 %v3057, %v3056
        %v3064 = vpack.c.b16 %v3059, %v3058
        %v3065 = vpack.c.b16 %v3061, %v3060
        %vm3070 = vcmask 523264
        %v3072 = vsel %vm3070, %v3042, 0
        %3074 = vmatpush.bf16.msra.mxu0 0
        %3075 = vmatpush.bf16.msra.mxu0 0
        %3076 = vmatpush.bf16.msra.mxu0 0
        %3077 = vmatpush.bf16.msra.mxu0 0
        %3078 = vmatpush.bf16.msra.mxu0 %v3065
        %3079 = vmatpush.bf16.msra.mxu0 %v3064
        %3080 = vmatpush.bf16.msra.mxu0 %v3063
        %3081 = vmatpush.bf16.msra.mxu0 %v3062
        %3082 = vmatmul.bf16.gmra.mxu0 %v3072
        %v3083 = vpop.f32.mrf.mxu0
        %v3084 = vadd.f32 %v3044, %v3083
        %v3085 = vpop.f32.mrf.mxu0
        %v3086 = vadd.f32 %v3044, %v3085
        %3087 = vdwg.mxu0
        %v3088 = vadd.f32 %v3005, %v3084
        %v3089 = vadd.f32 %v3006, %v3086
        %v3090 = vsel %vm1053, %v3088, 0.0
        %3091 = vadd.xlane.f32.xlu0 %v3090
        %v3092 = vpop.xlane.xlu0 %3091
        %v3093 = vsel %vm1053, %v3089, 0.0
        %3094 = vadd.xlane.f32.xlu0 %v3093
        %v3095 = vpop.xlane.xlu0 %3094
        %v3096 = vmul.f32 %v3092, %v2958
        %v3097 = vmul.f32 %v3095, %v2958
        %v3098 = vsub.f32 %v3088, %v3096
        %v3099 = vsub.f32 %v3089, %v3097
        %v3100 = vmul.f32 %v3098, %v3098
        %v3101 = vmul.f32 %v3099, %v3099
        %v3102 = vsel %vm1053, %v3100, 0.0
        %3103 = vadd.xlane.f32.xlu0 %v3102
        %v3104 = vpop.xlane.xlu0 %3103
        %v3105 = vsel %vm1053, %v3101, 0.0
        %3106 = vadd.xlane.f32.xlu0 %v3105
        %v3107 = vpop.xlane.xlu0 %3106
        %v3108 = vmul.f32 %v3104, %v2958
        %v3109 = vmul.f32 %v3107, %v2958
        %v3110 = vadd.f32 %v3108, 1e-05
        %v3111 = vadd.f32 %v3109, 1e-05
        %v3112 = vrsqrt.pop %v3110
        %v3113 = vmul.f32 %v3112, %v3110
        %v3114 = vmul.f32 %v3113, %v3112
        %v3115 = vmul.f32 0.5, %v3114
        %v3116 = vsub.f32 1.5, %v3115
        %v3117 = vmul.f32 %v3112, %v3116
        %vm3118 = vweird.f32 %v3110
        %vm3119 = vweird.f32 %v3112
        %vm3120 = vmor %vm3118, %vm3119
        %v3121 = vsel %vm3120, %v3112, %v3117
        %v3122 = vrsqrt.pop %v3111
        %v3123 = vmul.f32 %v3122, %v3111
        %v3124 = vmul.f32 %v3123, %v3122
        %v3125 = vmul.f32 0.5, %v3124
        %v3126 = vsub.f32 1.5, %v3125
        %v3127 = vmul.f32 %v3122, %v3126
        %vm3128 = vweird.f32 %v3111
        %vm3129 = vweird.f32 %v3122
        %vm3130 = vmor %vm3128, %vm3129
        %v3131 = vsel %vm3130, %v3122, %v3127
        %v3132 = vmul.f32 %v3098, %v3121
        %v3133 = vmul.f32 %v3099, %v3131
        %v3135 = vperm.slane %v1020, 0
        %v3137 = vmul.f32 %v3132, %v3135
        %v3138 = vmul.f32 %v3133, %v3135
        %v3140 = vperm.slane %v1021, 0
        %v3142 = vadd.f32 %v3137, %v3140
        %v3143 = vadd.f32 %v3138, %v3140
        %3144 = vst.msk [vmem:[#allocation2] sm:$0xff] %vm1053, %v3142
        %3145 = vst.msk [vmem:[#allocation2 + $0x8] sm:$0xff] %vm1053, %v3143
        %p3146 = scmp.eq.s32.totalorder %s47, 1
        // Predicated region
        $region125: #{tpu_custom_call.1} parent=91 // pred_check
          %p3147 = pneg %p3146
        $region126: #{tpu_custom_call.1} parent=91 // pred_check_branch
          %3149 = sbr.rel (%p3147) target = $region128
        $region127: #{tpu_custom_call.1} parent=91 // pred_region
          %3150 = vst.msk [vmem:[%s941] sm:$0xff] %vm1053, %v3142
          %3151 = vst.msk [vmem:[%s941 + $0x8] sm:$0xff] %vm1053, %v3143
        $region128: #{tpu_custom_call.1} parent=91 // pred_fallthru
          _
        %s3152 = sand.u32 %s525, 1
        %s3153 = scalar_lea.sflag [#allocation5], %s3152
        %s3154 = sand.u32 %s525, 1
        %s3155 = smul.addr %s3154, 16
        %s3156 = scalar_lea.vmem [#allocation15], %s3155
        // Predicated region
        $region129: #{tpu_custom_call.1} parent=91 // pred_check
          %p3157 = pneg %p535
        $region130: #{tpu_custom_call.1} parent=91 // pred_check_branch
          %3159 = sbr.rel (%p3157) target = $region132
        $region131: #{tpu_custom_call.1} parent=91 // pred_region
          %3161 = vsyncadd %s3153, 0
          %s3162 = smul.addr %s46, 2
          %s3163 = smul.addr %s3162, 8
          %s3164 = scalar_lea.hbm %s18, %s3163
          %s3165 = sshll.u32 %s3156, 4
          %s3166 = int_to_ptr.vmem [resolvable:$true] %s3165
          %s3167 = sshll.u32 %s3164, 4
          %s3168 = int_to_ptr.hbm [resolvable:$true] %s3167
          %3173 = dma.vmem_to_hbm [thread:$0]  %s3166, 256, %s3168, %s3153, 128, 128, 8
        $region132: #{tpu_custom_call.1} parent=91 // pred_fallthru
          _
      $region92: #{tpu_custom_call.1} parent=5 // pred_fallthru
        _
      %p3174 = scmp.le.s32.totalorder 2, %s37
      // Predicated region
      $region133: #{tpu_custom_call.1} parent=5 // pred_check
        %p3175 = pneg %p3174
      $region134: #{tpu_custom_call.1} parent=5 // pred_check_branch
        %3177 = sbr.rel (%p3175) target = $region136
      $region135: #{tpu_custom_call.1} parent=5 // pred_region
        %s3178 = ssub.s32 %s37, 2
        // Predicated region
        $region137: #{tpu_custom_call.1} parent=135 // pred_check
          %p3179 = pneg %p541
        $region138: #{tpu_custom_call.1} parent=135 // pred_check_branch
          %3181 = sbr.rel (%p3179) target = $region140
        $region139: #{tpu_custom_call.1} parent=135 // pred_region
          %s3182 = sand.u32 %s526, 1
          %s3183 = scalar_lea.sflag [#allocation5], %s3182
          %s3184 = sand.u32 %s526, 1
          %s3185 = smul.addr %s3184, 16
          %s3186 = scalar_lea.vmem [#allocation15], %s3185
          %3188 = dma.done %s3183, 256
        $region140: #{tpu_custom_call.1} parent=135 // pred_fallthru
          _
      $region136: #{tpu_custom_call.1} parent=5 // pred_fallthru
        _
    $region6: #{tpu_custom_call.1} parent=1 // loop_footer
      %s41 = sadd.s32 1, %s37
    $region7: #{tpu_custom_call.1} parent=1 // loop_footer_branch
      %36 = sbr.rel target = $region3
    $region8: #{tpu_custom_call.1} parent=1 // loop_exit
      _
    %3189 = vsyncpa [#allocation4], 1
    %s3190 = scalar_lea.sflag [#allocation4], 1
    %3191 = vsyncpa %s3190, 1
    %3192 = vsyncpa [#allocation7], 1
    %s3193 = scalar_lea.sflag [#allocation7], 1
    %3194 = vsyncpa %s3193, 1
    %3195 = vsyncpa [#allocation10], 1
    %s3196 = scalar_lea.sflag [#allocation10], 1
    %3197 = vsyncpa %s3196, 1
    %3198 = vsyncpa [#allocation13], 1
    %s3199 = scalar_lea.sflag [#allocation13], 1
    %3200 = vsyncpa %s3199, 1
    %3201 = vsyncpa [#allocation5], 1
    %s3202 = scalar_lea.sflag [#allocation5], 1
    %3203 = vsyncpa %s3202, 1

</llo_original>
